<compile_context>
chip_gen: v6e
topology: v6e:2x2x1
jax: 0.10.0
libtpu: 0.0.40
codegen_flags: <defaults>
</compile_context>

<pallas_src>
import functools
import math

import jax
import jax.numpy as jnp
from jax import lax
from jax.experimental import pallas as pl
from jax.experimental.pallas import tpu as pltpu


def _round_up(x, m):
    return ((x + m - 1) // m) * m


# ----------------------------------------------------------------------------
# shared in-kernel helpers (f32 math on the VPU/EUP)
# ----------------------------------------------------------------------------
def _layernorm(x, gamma, beta, eps=1e-5):
    mu = jnp.mean(x, axis=-1, keepdims=True)
    var = jnp.mean((x - mu) ** 2, axis=-1, keepdims=True)
    return (x - mu) * lax.rsqrt(var + eps) * gamma + beta


def _erf(x):
    # Abramowitz & Stegun 7.1.26 polynomial, |err| <= 1.5e-7: gives an
    # (effectively) erf-exact GELU without relying on a lax.erf lowering.
    p = 0.3275911
    a1, a2, a3, a4, a5 = (0.254829592, -0.284496736, 1.421413741,
                          -1.453152027, 1.061405429)
    s = jnp.where(x >= 0.0, 1.0, -1.0)
    ax = jnp.abs(x)
    t = 1.0 / (1.0 + p * ax)
    poly = t * (a1 + t * (a2 + t * (a3 + t * (a4 + t * a5))))
    return s * (1.0 - poly * jnp.exp(-ax * ax))


def _gelu(x):
    return 0.5 * x * (1.0 + _erf(x * 0.7071067811865476))


# ----------------------------------------------------------------------------
# Pallas kernels
# ----------------------------------------------------------------------------
def _tokenizer_kernel(p_ref, w_ref, o_ref, yp_ref, *, H1, W1, H2, W2,
                      pool_k, pool_s, pool_p):
    """Fused conv(im2col matmul, bias=False) + ReLU + MaxPool for one image."""
    D = w_ref.shape[-1]
    # conv as one bf16 matmul over the im2col patches, f32 accumulation
    y = jnp.dot(p_ref[0], w_ref[...], preferred_element_type=jnp.float32)
    y = jnp.maximum(y, 0.0)                                   # ReLU
    # ReLU output >= 0  =>  zero padding is equivalent to -inf pool padding.
    # Build the padded pool input directly in VMEM (no HBM round trip).
    yp_ref[...] = jnp.zeros_like(yp_ref)
    yp_ref[pool_p:pool_p + H1, pool_p:pool_p + W1, :] = y.reshape(H1, W1, D)
    # horizontal taps: strided reads along the sublane (W) axis
    colmax = None
    for kx in range(pool_k):
        col = yp_ref[:, pl.ds(kx, W2, pool_s), :]             # (Hp, W2, D)
        colmax = col if colmax is None else jnp.maximum(colmax, col)
    # vertical taps: static row indexing (H2 is small at these shapes).
    # TODO(synk): switch to lax.fori_loop(unroll=True) row blocks at realistic H2.
    for h2 in range(H2):
        row = colmax[pool_s * h2]
        for ky in range(1, pool_k):
            row = jnp.maximum(row, colmax[pool_s * h2 + ky])
        o_ref[0, h2] = row                                    # (W2, D)


def _transformer_kernel(x_ref, pe_ref, vec_ref, wqkv_ref, wproj_ref, wfc1_ref,
                        wfc2_ref, hln_ref, clsw_ref, clsb_ref, o_ref, tok_ref,
                        *, num_heads):
    """Grid = (batch_block, layer).  TB batch elements' tokens live in a VMEM
    scratch across the layer axis; the classifier head is fused in the last
    layer's step."""
    layer = pl.program_id(1)
    TB, N, D = x_ref.shape
    M = TB * N
    hd = D // num_heads
    hidden = wfc1_ref.shape[-1]

    @pl.when(layer == 0)
    def _():
        # fused sine positional-embedding add; tokens stay VMEM-resident
        tok_ref[...] = (x_ref[...] + pe_ref[...]).reshape(M, D)

    x = tok_ref[...]                                          # (M, D) f32

    # packed per-layer vectors:
    # [ln1_g, ln1_b, ln2_g, ln2_b, b_qkv, b_proj, b_fc1, b_fc2]
    vecs = vec_ref[0]                                         # (8, PW)
    ln1_g = vecs[0:1, :D]
    ln1_b = vecs[1:2, :D]
    ln2_g = vecs[2:3, :D]
    ln2_b = vecs[3:4, :D]
    b_qkv = vecs[4:5, :3 * D]
    b_proj = vecs[5:6, :D]
    b_fc1 = vecs[6:7, :hidden]
    b_fc2 = vecs[7:8, :D]

    # --- multi-head self attention (pre-norm); 1/sqrt(hd) pre-folded into W_q ---
    h = _layernorm(x, ln1_g, ln1_b)
    qkv = jnp.dot(h.astype(jnp.bfloat16), wqkv_ref[0],
                  preferred_element_type=jnp.float32) + b_qkv  # (M, 3D) f32
    qkv3 = qkv.reshape(TB, N, 3 * D)
    attn = jnp.zeros((M, D), jnp.float32)
    # TODO(synk): at large head counts fold heads into the einsum batch axis
    # (head-major qkv layout) instead of this unrolled loop.
    for hh in range(num_heads):
        q = qkv3[:, :, hh * hd:(hh + 1) * hd].astype(jnp.bfloat16)
        k = qkv3[:, :, D + hh * hd:D + (hh + 1) * hd].astype(jnp.bfloat16)
        v = qkv3[:, :, 2 * D + hh * hd:2 * D + (hh + 1) * hd].astype(jnp.bfloat16)
        s = jnp.einsum('bqd,bkd->bqk', q, k,
                       preferred_element_type=jnp.float32)    # (TB, N, N)
        s = s - jnp.max(s, axis=-1, keepdims=True)
        p = jnp.exp(s)
        p = p / jnp.sum(p, axis=-1, keepdims=True)            # exact softmax denom
        o_h = jnp.einsum('bqk,bkd->bqd', p.astype(jnp.bfloat16), v,
                         preferred_element_type=jnp.float32)  # (TB, N, hd)
        # accumulate each head through its (hd, D) slab of W_proj:
        # no lane-axis concatenate of narrow head slices.
        attn = attn + jnp.dot(o_h.reshape(M, hd).astype(jnp.bfloat16),
                              wproj_ref[0, hh],
                              preferred_element_type=jnp.float32)
    x = x + attn + b_proj                                     # residual

    # --- MLP ---
    h2 = _layernorm(x, ln2_g, ln2_b)
    h2 = jnp.dot(h2.astype(jnp.bfloat16), wfc1_ref[0],
                 preferred_element_type=jnp.float32) + b_fc1
    h2 = _gelu(h2)                                            # erf-exact (poly)
    h2 = jnp.dot(h2.astype(jnp.bfloat16), wfc2_ref[0],
                 preferred_element_type=jnp.float32) + b_fc2
    x = x + h2                                                # residual
    tok_ref[...] = x

    # --- fused head: final LN + SeqPool + classifier (lane-dense logits) ---
    @pl.when(layer == pl.num_programs(1) - 1)
    def _():
        xn = _layernorm(x, hln_ref[0:1, :], hln_ref[1:2, :])
        # Reference: F.softmax(attention_pool(x), dim=-1) over a SIZE-1 axis is
        # identically 1.0, so SeqPool reduces to the plain token sum
        # (attention_pool params are mathematically inert in this forward).
        pooled = jnp.sum(xn.reshape(TB, N, D), axis=1)        # (TB, D)
        logits = jnp.dot(pooled.astype(jnp.bfloat16), clsw_ref[...],
                         preferred_element_type=jnp.float32) + clsb_ref[...]
        o_ref[0] = logits                                     # (TB, Cpad=128)


# ----------------------------------------------------------------------------
# wrappers
# ----------------------------------------------------------------------------
def conv_tokenizer(x_nchw, conv_w, *, ksize=7, stride=2, pad=3,
                   pool_k=3, pool_s=2, pool_p=1):
    """Conv2d(k=7,s=2,p=3,bias=False) + ReLU + MaxPool2d(3,2,1) + flatten,
    fused into one kernel per batch element."""
    B, Cin, H, W = x_nchw.shape
    Kpad, D = conv_w.shape                                    # conv_w pre-padded/bf16
    x = jnp.transpose(x_nchw, (0, 2, 3, 1))                   # NHWC
    H1 = (H + 2 * pad - ksize) // stride + 1
    W1 = (W + 2 * pad - ksize) // stride + 1
    xp = jnp.pad(x, ((0, 0), (pad, pad), (pad, pad), (0, 0)))

    # im2col (wrapper glue).
    # TODO(synk): move im2col in-kernel (per-tap shifted-slice accumulation) for
    # realistic image sizes; at these shapes the patch materialization is tiny.
    taps = []
    for ky in range(ksize):
        for kx in range(ksize):
            taps.append(xp[:, ky:ky + stride * H1:stride,
                           kx:kx + stride * W1:stride, :])
    K = ksize * ksize * Cin
    patches = jnp.stack(taps, axis=3).reshape(B, H1 * W1, K)
    patches = jnp.pad(patches, ((0, 0), (0, 0), (0, Kpad - K)))
    patches = patches.astype(jnp.bfloat16)                    # bf16 MXU operand

    H2 = (H1 + 2 * pool_p - pool_k) // pool_s + 1
    W2 = (W1 + 2 * pool_p - pool_k) // pool_s + 1
    Hp, Wp = H1 + 2 * pool_p, W1 + 2 * pool_p

    # NOTE: output last dim is D (lane-dense once embed_dim >= 128, as in real
    # CCTs).  Per-image grid keeps the VMEM footprint small (v7x 64 MiB safe);
    # TODO(synk): additionally tile over output-row blocks at realistic H1.
    z = pl.pallas_call(
        functools.partial(_tokenizer_kernel, H1=H1, W1=W1, H2=H2, W2=W2,
                          pool_k=pool_k, pool_s=pool_s, pool_p=pool_p),
        out_shape=jax.ShapeDtypeStruct((B, H2, W2, D), jnp.float32),
        grid=(B,),
        in_specs=[pl.BlockSpec((1, H1 * W1, Kpad), lambda b: (b, 0, 0)),
                  pl.BlockSpec((Kpad, D), lambda b: (0, 0))],
        out_specs=pl.BlockSpec((1, H2, W2, D), lambda b: (b, 0, 0, 0)),
        scratch_shapes=[pltpu.VMEM((Hp, Wp, D), jnp.float32)],
        compiler_params=pltpu.CompilerParams(
            dimension_semantics=("parallel",),
            vmem_limit_bytes=32 * 1024 * 1024),
    )(patches, conv_w)
    return z.reshape(B, H2 * W2, D)                           # (B, N, D)


def _pick_batch_block(batch):
    """Largest TB dividing batch while keeping >= 2 parallel grid blocks
    (dual-TensorCore v7x); falls back to 1."""
    if batch <= 1:
        return max(batch, 1)
    for tb in range(batch // 2, 0, -1):
        if batch % tb == 0:
            return tb
    return 1


def transformer_classifier(tokens, pos_embed, params, *, num_heads, num_classes):
    """All transformer layers + final norm + SeqPool + classifier in ONE call."""
    B, N, D = tokens.shape
    assert D % num_heads == 0
    hd = D // num_heads
    L = params['w_qkv'].shape[0]
    Hf = params['w_fc1'].shape[-1]
    PW = params['ln_vecs'].shape[-1]
    CP = params['cls_w'].shape[-1]                            # padded classes (x128)
    TB = _pick_batch_block(B)

    in_specs = [
        pl.BlockSpec((TB, N, D), lambda b, l: (b, 0, 0)),     # tokens (batch block)
        pl.BlockSpec((1, N, D), lambda b, l: (0, 0, 0)),      # sine pos-embed
        pl.BlockSpec((1, 8, PW), lambda b, l: (l, 0, 0)),     # packed LN/bias vectors
        pl.BlockSpec((1, D, 3 * D), lambda b, l: (l, 0, 0)),  # w_qkv (bf16, Q pre-scaled)
        pl.BlockSpec((1, num_heads, hd, D),
                     lambda b, l: (l, 0, 0, 0)),              # w_proj, head-major (bf16)
        pl.BlockSpec((1, D, Hf), lambda b, l: (l, 0, 0)),     # w_fc1 (bf16)
        pl.BlockSpec((1, Hf, D), lambda b, l: (l, 0, 0)),     # w_fc2 (bf16)
        pl.BlockSpec((2, D), lambda b, l: (0, 0)),            # final LN gamma/beta
        pl.BlockSpec((D, CP), lambda b, l: (0, 0)),           # classifier W (padded)
        pl.BlockSpec((1, CP), lambda b, l: (0, 0)),           # classifier bias (padded)
    ]
    out = pl.pallas_call(
        functools.partial(_transformer_kernel, num_heads=num_heads),
        out_shape=jax.ShapeDtypeStruct((B // TB, TB, CP), jnp.float32),
        grid=(B // TB, L),
        in_specs=in_specs,
        out_specs=pl.BlockSpec((1, TB, CP), lambda b, l: (b, 0, 0)),
        scratch_shapes=[pltpu.VMEM((TB * N, D), jnp.float32)],
        compiler_params=pltpu.CompilerParams(
            dimension_semantics=("parallel", "arbitrary"),
            # explicit scoped-VMEM budget with headroom (safe on v5e/v6e/v7x)
            vmem_limit_bytes=32 * 1024 * 1024),
    )(tokens, pos_embed, params['ln_vecs'], params['w_qkv'], params['w_proj'],
      params['w_fc1'], params['w_fc2'], params['head_ln'],
      params['cls_w'], params['cls_b'])
    return out.reshape(B, CP)[:, :num_classes]


def sinusoidal_pos_embed(seq_len, dim):
    pos = jnp.arange(seq_len, dtype=jnp.float32)[:, None]
    i = jnp.arange(dim // 2, dtype=jnp.float32)[None, :]
    angle = pos / jnp.power(10000.0, (2.0 * i) / dim)
    pe = jnp.zeros((seq_len, dim), jnp.float32)
    pe = pe.at[:, 0::2].set(jnp.sin(angle))
    pe = pe.at[:, 1::2].set(jnp.cos(angle))
    return pe[None]                                           # (1, N, D)


def cct_forward(x_nchw, params, *, num_heads, num_classes):
    tokens = conv_tokenizer(x_nchw, params['conv_w'])         # (B, N, D) f32
    _, N, D = tokens.shape
    pe = sinusoidal_pos_embed(N, D)                           # constant under jit
    # dropout(p=0.0) / attn dropout / stochastic depth -> identity at eval time
    return transformer_classifier(tokens, pe, params,
                                  num_heads=num_heads, num_classes=num_classes)


# ----------------------------------------------------------------------------
# deterministic parameter init (synthetic; mirrors the reference init scheme)
# ----------------------------------------------------------------------------
def init_params(key, *, cin, embed_dim, num_heads, mlp_ratio, num_layers,
                num_classes, kernel_size=7):
    D = embed_dim
    hd = D // num_heads
    hidden = D * mlp_ratio
    pad_w = _round_up(max(3 * D, hidden), 128)
    K = kernel_size * kernel_size * cin
    Kpad = _round_up(K, 128)
    CP = _round_up(num_classes, 128)
    qscale = 1.0 / math.sqrt(hd)
    keys = iter(jax.random.split(key, 4 + 4 * num_layers))

    def tn(k, shape, std=0.02):
        return (std * jax.random.truncated_normal(k, -2.0, 2.0, shape)).astype(jnp.float32)

    def pack_rows(rows):
        out = jnp.zeros((len(rows), pad_w), jnp.float32)
        for i, r in enumerate(rows):
            out = out.at[i, :r.shape[0]].set(r)
        return out

    w_qkv, w_proj, w_fc1, w_fc2, ln_vecs = [], [], [], [], []
    for _ in range(num_layers):
        wq = tn(next(keys), (D, 3 * D))
        # fold the 1/sqrt(head_dim) attention scale into the Q columns (offline);
        # the q-bias (zero at init) would carry the same fold.
        wq = wq.at[:, :D].multiply(qscale)
        w_qkv.append(wq.astype(jnp.bfloat16))
        w_proj.append(tn(next(keys), (D, D)).reshape(num_heads, hd, D)
                      .astype(jnp.bfloat16))                   # head-major
        w_fc1.append(tn(next(keys), (D, hidden)).astype(jnp.bfloat16))
        w_fc2.append(tn(next(keys), (hidden, D)).astype(jnp.bfloat16))
        ln_vecs.append(pack_rows([
            jnp.ones((D,), jnp.float32),        # ln1 gamma
            jnp.zeros((D,), jnp.float32),       # ln1 beta
            jnp.ones((D,), jnp.float32),        # ln2 gamma
            jnp.zeros((D,), jnp.float32),       # ln2 beta
            jnp.zeros((3 * D,), jnp.float32),   # qkv bias (q part pre-scaled: zero)
            jnp.zeros((D,), jnp.float32),       # proj bias
            jnp.zeros((hidden,), jnp.float32),  # fc1 bias
            jnp.zeros((D,), jnp.float32),       # fc2 bias
        ]))

    conv_w = jnp.pad(tn(next(keys), (K, D)), ((0, Kpad - K), (0, 0)))
    cls_w = jnp.pad(tn(next(keys), (D, num_classes)), ((0, 0), (0, CP - num_classes)))

    params = {
        'conv_w': conv_w.astype(jnp.bfloat16),                 # (Kpad, D) bf16
        'ln_vecs': jnp.stack(ln_vecs),                         # (L, 8, pad_w) f32
        'w_qkv': jnp.stack(w_qkv),                             # (L, D, 3D) bf16
        'w_proj': jnp.stack(w_proj),                           # (L, H, hd, D) bf16
        'w_fc1': jnp.stack(w_fc1),                             # (L, D, hidden) bf16
        'w_fc2': jnp.stack(w_fc2),                             # (L, hidden, D) bf16
        'head_ln': jnp.concatenate([jnp.ones((1, D), jnp.float32),
                                    jnp.zeros((1, D), jnp.float32)], axis=0),
        # attention_pool params: inert in this forward (softmax over a size-1
        # axis is identically 1); kept only to mirror the module.
        'pool_w': tn(next(keys), (D, 1)),
        'pool_b': jnp.zeros((1, 1), jnp.float32),
        'cls_w': cls_w.astype(jnp.bfloat16),                   # (D, CP) bf16
        'cls_b': jnp.zeros((1, CP), jnp.float32),              # padded, lane-dense
    }
    return params


# ----------------------------------------------------------------------------
if __name__ == "__main__":
    # small shapes: batch=4 (so batch-blocking TB=2 still leaves 2 parallel
    # grid blocks for dual-TC chips), in_channels=3, img=16, embed_dim=32,
    # 4 heads, 3 layers, 10 classes.  Tokenizer: conv(7,2,3)+relu+pool(3,2,1)
    # => 16 -> 8 -> 4, so seq_len = 16 tokens.
    B, CIN, IMG = 4, 3, 16
    EMBED, HEADS, MLP_RATIO, LAYERS, CLASSES = 32, 4, 4, 3, 10

    key = jax.random.PRNGKey(0)
    kx, kp = jax.random.split(key)
    x = jax.random.normal(kx, (B, CIN, IMG, IMG), jnp.float32)  # NCHW input
    params = init_params(kp, cin=CIN, embed_dim=EMBED, num_heads=HEADS,
                         mlp_ratio=MLP_RATIO, num_layers=LAYERS,
                         num_classes=CLASSES)

    fwd = jax.jit(functools.partial(cct_forward, num_heads=HEADS,
                                    num_classes=CLASSES))
    out = fwd(x, params)
    jax.block_until_ready(out)
    assert out.shape == (B, CLASSES), out.shape
    assert bool(jnp.all(jnp.isfinite(out)))
    print("KERNEL_OK")
</pallas_src>

<mosaic_0001>
module attributes {stable_mosaic.version = 11 : i64} {
  func.func @_tokenizer_kernel(%arg0: i32, %arg1: memref<1x64x256xbf16, #tpu.memory_space<vmem>>, %arg2: memref<256x32xbf16, #tpu.memory_space<vmem>>, %arg3: memref<1x4x4x32xf32, #tpu.memory_space<vmem>>, %arg4: memref<10x10x32xf32, #tpu.memory_space<vmem>>) attributes {dimension_semantics = [#tpu.dimension_semantics<parallel>], iteration_bounds = array<i64: 4>, scalar_prefetch = 0 : i64, scratch_operands = 1 : i64, tpu.core_type = #tpu.core_type<tc>, window_params = [{transform_indices = @transform_0, window_bounds = array<i64: 1, 64, 256>}, {pipeline_mode = #tpu.pipeline_mode<synchronous>, transform_indices = @transform_1, window_bounds = array<i64: 256, 32>}, {transform_indices = @transform_2, window_bounds = array<i64: 1, 4, 4, 32>}]} {
    %c0 = arith.constant 0 : index
    %c0_0 = arith.constant 0 : index
    %c0_1 = arith.constant 0 : index
    %0 = vector.load %arg1[%c0, %c0_0, %c0_1] : memref<1x64x256xbf16, #tpu.memory_space<vmem>>, vector<1x64x256xbf16>
    %1 = vector.shape_cast %0 : vector<1x64x256xbf16> to vector<64x256xbf16>
    %c0_2 = arith.constant 0 : index
    %c0_3 = arith.constant 0 : index
    %2 = vector.load %arg2[%c0_2, %c0_3] : memref<256x32xbf16, #tpu.memory_space<vmem>>, vector<256x32xbf16>
    %cst = arith.constant dense<0.000000e+00> : vector<64x32xf32>
    %3 = tpu.matmul %1, %2, %cst {dimension_numbers = #tpu.dot_dimension_numbers<[1], [0], [0], [1], [0, 0, 1, 1], [], []>} : vector<64x256xbf16>, vector<256x32xbf16>, vector<64x32xf32> -> vector<64x32xf32>
    %cst_4 = arith.constant 0.000000e+00 : f32
    %4 = vector.broadcast %cst_4 : f32 to vector<64x32xf32>
    %5 = arith.maximumf %3, %4 : vector<64x32xf32>
    %cst_5 = arith.constant 0.000000e+00 : f32
    %6 = vector.broadcast %cst_5 : f32 to vector<10x10x32xf32>
    %c0_6 = arith.constant 0 : index
    %c0_7 = arith.constant 0 : index
    %c0_8 = arith.constant 0 : index
    %7 = vector.load %arg4[%c0_6, %c0_7, %c0_8] : memref<10x10x32xf32, #tpu.memory_space<vmem>>, vector<10x10x32xf32>
    tpu.vector_store %arg4[%c0_6, %c0_7, %c0_8], %6 {strides = array<i32>} : memref<10x10x32xf32, #tpu.memory_space<vmem>>, vector<10x10x32xf32>,
    %8 = vector.shape_cast %5 : vector<64x32xf32> to vector<8x8x32xf32>
    %c1 = arith.constant 1 : index
    %c1_9 = arith.constant 1 : index
    %c0_10 = arith.constant 0 : index
    %9 = vector.load %arg4[%c1, %c1_9, %c0_10] : memref<10x10x32xf32, #tpu.memory_space<vmem>>, vector<8x8x32xf32>
    tpu.vector_store %arg4[%c1, %c1_9, %c0_10], %8 {strides = array<i32>} : memref<10x10x32xf32, #tpu.memory_space<vmem>>, vector<8x8x32xf32>,
    %c0_11 = arith.constant 0 : index
    %c0_12 = arith.constant 0 : index
    %c0_13 = arith.constant 0 : index
    %10 = tpu.strided_load %arg4[%c0_11, %c0_12, %c0_13] {strides = array<i32: 1, 2, 1>} : memref<10x10x32xf32, #tpu.memory_space<vmem>>, vector<10x4x32xf32>
    %c0_14 = arith.constant 0 : index
    %c1_15 = arith.constant 1 : index
    %c0_16 = arith.constant 0 : index
    %11 = tpu.strided_load %arg4[%c0_14, %c1_15, %c0_16] {strides = array<i32: 1, 2, 1>} : memref<10x10x32xf32, #tpu.memory_space<vmem>>, vector<10x4x32xf32>
    %12 = arith.maximumf %10, %11 : vector<10x4x32xf32>
    %c0_17 = arith.constant 0 : index
    %c2 = arith.constant 2 : index
    %c0_18 = arith.constant 0 : index
    %13 = tpu.strided_load %arg4[%c0_17, %c2, %c0_18] {strides = array<i32: 1, 2, 1>} : memref<10x10x32xf32, #tpu.memory_space<vmem>>, vector<10x4x32xf32>
    %14 = arith.maximumf %12, %13 : vector<10x4x32xf32>
    %15 = vector.extract_strided_slice %14 {offsets = [0, 0, 0], sizes = [1, 4, 32], strides = [1, 1, 1]} : vector<10x4x32xf32> to vector<1x4x32xf32>
    %16 = vector.shape_cast %15 : vector<1x4x32xf32> to vector<4x32xf32>
    %17 = vector.extract_strided_slice %14 {offsets = [1, 0, 0], sizes = [1, 4, 32], strides = [1, 1, 1]} : vector<10x4x32xf32> to vector<1x4x32xf32>
    %18 = vector.shape_cast %17 : vector<1x4x32xf32> to vector<4x32xf32>
    %19 = arith.maximumf %16, %18 : vector<4x32xf32>
    %20 = vector.extract_strided_slice %14 {offsets = [2, 0, 0], sizes = [1, 4, 32], strides = [1, 1, 1]} : vector<10x4x32xf32> to vector<1x4x32xf32>
    %21 = vector.shape_cast %20 : vector<1x4x32xf32> to vector<4x32xf32>
    %22 = arith.maximumf %19, %21 : vector<4x32xf32>
    %c0_19 = arith.constant 0 : index
    %c0_20 = arith.constant 0 : index
    %c0_21 = arith.constant 0 : index
    %c0_22 = arith.constant 0 : index
    %23 = vector.load %arg3[%c0_19, %c0_20, %c0_21, %c0_22] : memref<1x4x4x32xf32, #tpu.memory_space<vmem>>, vector<1x1x4x32xf32>
    %24 = vector.shape_cast %23 : vector<1x1x4x32xf32> to vector<4x32xf32>
    %25 = vector.shape_cast %22 : vector<4x32xf32> to vector<1x1x4x32xf32>
    tpu.vector_store %arg3[%c0_19, %c0_20, %c0_21, %c0_22], %25 {strides = array<i32>} : memref<1x4x4x32xf32, #tpu.memory_space<vmem>>, vector<1x1x4x32xf32>,
    %26 = vector.extract_strided_slice %14 {offsets = [2, 0, 0], sizes = [1, 4, 32], strides = [1, 1, 1]} : vector<10x4x32xf32> to vector<1x4x32xf32>
    %27 = vector.shape_cast %26 : vector<1x4x32xf32> to vector<4x32xf32>
    %28 = vector.extract_strided_slice %14 {offsets = [3, 0, 0], sizes = [1, 4, 32], strides = [1, 1, 1]} : vector<10x4x32xf32> to vector<1x4x32xf32>
    %29 = vector.shape_cast %28 : vector<1x4x32xf32> to vector<4x32xf32>
    %30 = arith.maximumf %27, %29 : vector<4x32xf32>
    %31 = vector.extract_strided_slice %14 {offsets = [4, 0, 0], sizes = [1, 4, 32], strides = [1, 1, 1]} : vector<10x4x32xf32> to vector<1x4x32xf32>
    %32 = vector.shape_cast %31 : vector<1x4x32xf32> to vector<4x32xf32>
    %33 = arith.maximumf %30, %32 : vector<4x32xf32>
    %c0_23 = arith.constant 0 : index
    %c1_24 = arith.constant 1 : index
    %c0_25 = arith.constant 0 : index
    %c0_26 = arith.constant 0 : index
    %34 = vector.load %arg3[%c0_23, %c1_24, %c0_25, %c0_26] : memref<1x4x4x32xf32, #tpu.memory_space<vmem>>, vector<1x1x4x32xf32>
    %35 = vector.shape_cast %34 : vector<1x1x4x32xf32> to vector<4x32xf32>
    %36 = vector.shape_cast %33 : vector<4x32xf32> to vector<1x1x4x32xf32>
    tpu.vector_store %arg3[%c0_23, %c1_24, %c0_25, %c0_26], %36 {strides = array<i32>} : memref<1x4x4x32xf32, #tpu.memory_space<vmem>>, vector<1x1x4x32xf32>,
    %37 = vector.extract_strided_slice %14 {offsets = [4, 0, 0], sizes = [1, 4, 32], strides = [1, 1, 1]} : vector<10x4x32xf32> to vector<1x4x32xf32>
    %38 = vector.shape_cast %37 : vector<1x4x32xf32> to vector<4x32xf32>
    %39 = vector.extract_strided_slice %14 {offsets = [5, 0, 0], sizes = [1, 4, 32], strides = [1, 1, 1]} : vector<10x4x32xf32> to vector<1x4x32xf32>
    %40 = vector.shape_cast %39 : vector<1x4x32xf32> to vector<4x32xf32>
    %41 = arith.maximumf %38, %40 : vector<4x32xf32>
    %42 = vector.extract_strided_slice %14 {offsets = [6, 0, 0], sizes = [1, 4, 32], strides = [1, 1, 1]} : vector<10x4x32xf32> to vector<1x4x32xf32>
    %43 = vector.shape_cast %42 : vector<1x4x32xf32> to vector<4x32xf32>
    %44 = arith.maximumf %41, %43 : vector<4x32xf32>
    %c0_27 = arith.constant 0 : index
    %c2_28 = arith.constant 2 : index
    %c0_29 = arith.constant 0 : index
    %c0_30 = arith.constant 0 : index
    %45 = vector.load %arg3[%c0_27, %c2_28, %c0_29, %c0_30] : memref<1x4x4x32xf32, #tpu.memory_space<vmem>>, vector<1x1x4x32xf32>
    %46 = vector.shape_cast %45 : vector<1x1x4x32xf32> to vector<4x32xf32>
    %47 = vector.shape_cast %44 : vector<4x32xf32> to vector<1x1x4x32xf32>
    tpu.vector_store %arg3[%c0_27, %c2_28, %c0_29, %c0_30], %47 {strides = array<i32>} : memref<1x4x4x32xf32, #tpu.memory_space<vmem>>, vector<1x1x4x32xf32>,
    %48 = vector.extract_strided_slice %14 {offsets = [6, 0, 0], sizes = [1, 4, 32], strides = [1, 1, 1]} : vector<10x4x32xf32> to vector<1x4x32xf32>
    %49 = vector.shape_cast %48 : vector<1x4x32xf32> to vector<4x32xf32>
    %50 = vector.extract_strided_slice %14 {offsets = [7, 0, 0], sizes = [1, 4, 32], strides = [1, 1, 1]} : vector<10x4x32xf32> to vector<1x4x32xf32>
    %51 = vector.shape_cast %50 : vector<1x4x32xf32> to vector<4x32xf32>
    %52 = arith.maximumf %49, %51 : vector<4x32xf32>
    %53 = vector.extract_strided_slice %14 {offsets = [8, 0, 0], sizes = [1, 4, 32], strides = [1, 1, 1]} : vector<10x4x32xf32> to vector<1x4x32xf32>
    %54 = vector.shape_cast %53 : vector<1x4x32xf32> to vector<4x32xf32>
    %55 = arith.maximumf %52, %54 : vector<4x32xf32>
    %c0_31 = arith.constant 0 : index
    %c3 = arith.constant 3 : index
    %c0_32 = arith.constant 0 : index
    %c0_33 = arith.constant 0 : index
    %56 = vector.load %arg3[%c0_31, %c3, %c0_32, %c0_33] : memref<1x4x4x32xf32, #tpu.memory_space<vmem>>, vector<1x1x4x32xf32>
    %57 = vector.shape_cast %56 : vector<1x1x4x32xf32> to vector<4x32xf32>
    %58 = vector.shape_cast %55 : vector<4x32xf32> to vector<1x1x4x32xf32>
    tpu.vector_store %arg3[%c0_31, %c3, %c0_32, %c0_33], %58 {strides = array<i32>} : memref<1x4x4x32xf32, #tpu.memory_space<vmem>>, vector<1x1x4x32xf32>,
    return
  }
  func.func @transform_0(%arg0: i32) -> (i32, i32, i32) {
    %c0_i32 = arith.constant 0 : i32
    %c0_i32_0 = arith.constant 0 : i32
    %c0_i32_1 = arith.constant 0 : i32
    return %arg0, %c0_i32, %c0_i32_0 : i32, i32, i32
  }
  func.func @transform_1(%arg0: i32) -> (i32, i32) {
    %c0_i32 = arith.constant 0 : i32
    %c0_i32_0 = arith.constant 0 : i32
    %c0_i32_1 = arith.constant 0 : i32
    return %c0_i32, %c0_i32_0 : i32, i32
  }
  func.func @transform_2(%arg0: i32) -> (i32, i32, i32, i32) {
    %c0_i32 = arith.constant 0 : i32
    %c0_i32_0 = arith.constant 0 : i32
    %c0_i32_1 = arith.constant 0 : i32
    %c0_i32_2 = arith.constant 0 : i32
    return %arg0, %c0_i32, %c0_i32_0, %c0_i32_1 : i32, i32, i32, i32
  }
}

module attributes {stable_mosaic.version = 11 : i64} {
  func.func @_transformer_kernel(%arg0: i32, %arg1: i32, %arg2: memref<2x16x32xf32, #tpu.memory_space<vmem>>, %arg3: memref<1x16x32xf32, #tpu.memory_space<vmem>>, %arg4: memref<1x8x128xf32, #tpu.memory_space<vmem>>, %arg5: memref<1x32x96xbf16, #tpu.memory_space<vmem>>, %arg6: memref<1x4x8x32xbf16, #tpu.memory_space<vmem>>, %arg7: memref<1x32x128xbf16, #tpu.memory_space<vmem>>, %arg8: memref<1x128x32xbf16, #tpu.memory_space<vmem>>, %arg9: memref<2x32xf32, #tpu.memory_space<vmem>>, %arg10: memref<32x128xbf16, #tpu.memory_space<vmem>>, %arg11: memref<1x128xf32, #tpu.memory_space<vmem>>, %arg12: memref<1x2x128xf32, #tpu.memory_space<vmem>>, %arg13: memref<32x32xf32, #tpu.memory_space<vmem>>) attributes {dimension_semantics = [#tpu.dimension_semantics<parallel>, #tpu.dimension_semantics<arbitrary>], iteration_bounds = array<i64: 2, 3>, scalar_prefetch = 0 : i64, scratch_operands = 1 : i64, tpu.core_type = #tpu.core_type<tc>, window_params = [{transform_indices = @transform_0, window_bounds = array<i64: 2, 16, 32>}, {pipeline_mode = #tpu.pipeline_mode<synchronous>, transform_indices = @transform_1, window_bounds = array<i64: 1, 16, 32>}, {transform_indices = @transform_2, window_bounds = array<i64: 1, 8, 128>}, {transform_indices = @transform_3, window_bounds = array<i64: 1, 32, 96>}, {transform_indices = @transform_4, window_bounds = array<i64: 1, 4, 8, 32>}, {transform_indices = @transform_5, window_bounds = array<i64: 1, 32, 128>}, {transform_indices = @transform_6, window_bounds = array<i64: 1, 128, 32>}, {pipeline_mode = #tpu.pipeline_mode<synchronous>, transform_indices = @transform_7, window_bounds = array<i64: 2, 32>}, {pipeline_mode = #tpu.pipeline_mode<synchronous>, transform_indices = @transform_8, window_bounds = array<i64: 32, 128>}, {pipeline_mode = #tpu.pipeline_mode<synchronous>, transform_indices = @transform_9, window_bounds = array<i64: 1, 128>}, {transform_indices = @transform_10, window_bounds = array<i64: 1, 2, 128>}]} {
    %c0_i32 = arith.constant 0 : i32
    %0 = arith.cmpi eq, %arg1, %c0_i32 : i32
    %1 = arith.extui %0 : i1 to i32
    %c0_i32_0 = arith.constant 0 : i32
    %2 = arith.cmpi ne, %1, %c0_i32_0 : i32
    scf.if %2 {
      %c0_79 = arith.constant 0 : index
      %c0_80 = arith.constant 0 : index
      %c0_81 = arith.constant 0 : index
      %223 = vector.load %arg2[%c0_79, %c0_80, %c0_81] : memref<2x16x32xf32, #tpu.memory_space<vmem>>, vector<2x16x32xf32>
      %c0_82 = arith.constant 0 : index
      %c0_83 = arith.constant 0 : index
      %c0_84 = arith.constant 0 : index
      %224 = vector.load %arg3[%c0_82, %c0_83, %c0_84] : memref<1x16x32xf32, #tpu.memory_space<vmem>>, vector<1x16x32xf32>
      %225 = vector.broadcast %224 : vector<1x16x32xf32> to vector<2x16x32xf32>
      %226 = arith.addf %223, %225 : vector<2x16x32xf32>
      %227 = vector.shape_cast %226 : vector<2x16x32xf32> to vector<32x32xf32>
      %c0_85 = arith.constant 0 : index
      %c0_86 = arith.constant 0 : index
      %228 = vector.load %arg13[%c0_85, %c0_86] : memref<32x32xf32, #tpu.memory_space<vmem>>, vector<32x32xf32>
      tpu.vector_store %arg13[%c0_85, %c0_86], %227 {strides = array<i32>} : memref<32x32xf32, #tpu.memory_space<vmem>>, vector<32x32xf32>,
    } else {
    }
    %c0 = arith.constant 0 : index
    %c0_1 = arith.constant 0 : index
    %3 = vector.load %arg13[%c0, %c0_1] : memref<32x32xf32, #tpu.memory_space<vmem>>, vector<32x32xf32>
    %c0_2 = arith.constant 0 : index
    %c0_3 = arith.constant 0 : index
    %c0_4 = arith.constant 0 : index
    %4 = vector.load %arg4[%c0_2, %c0_3, %c0_4] : memref<1x8x128xf32, #tpu.memory_space<vmem>>, vector<1x8x128xf32>
    %5 = vector.shape_cast %4 : vector<1x8x128xf32> to vector<8x128xf32>
    %6 = vector.extract_strided_slice %5 {offsets = [0, 0], sizes = [1, 32], strides = [1, 1]} : vector<8x128xf32> to vector<1x32xf32>
    %7 = vector.extract_strided_slice %5 {offsets = [1, 0], sizes = [1, 32], strides = [1, 1]} : vector<8x128xf32> to vector<1x32xf32>
    %8 = vector.extract_strided_slice %5 {offsets = [2, 0], sizes = [1, 32], strides = [1, 1]} : vector<8x128xf32> to vector<1x32xf32>
    %9 = vector.extract_strided_slice %5 {offsets = [3, 0], sizes = [1, 32], strides = [1, 1]} : vector<8x128xf32> to vector<1x32xf32>
    %10 = vector.extract_strided_slice %5 {offsets = [4, 0], sizes = [1, 96], strides = [1, 1]} : vector<8x128xf32> to vector<1x96xf32>
    %11 = vector.extract_strided_slice %5 {offsets = [5, 0], sizes = [1, 32], strides = [1, 1]} : vector<8x128xf32> to vector<1x32xf32>
    %12 = vector.extract_strided_slice %5 {offsets = [6, 0], sizes = [1, 128], strides = [1, 1]} : vector<8x128xf32> to vector<1x128xf32>
    %13 = vector.extract_strided_slice %5 {offsets = [7, 0], sizes = [1, 32], strides = [1, 1]} : vector<8x128xf32> to vector<1x32xf32>
    %cst = arith.constant dense<0.000000e+00> : vector<32xf32>
    %14 = vector.multi_reduction <add>, %3, %cst [1] : vector<32x32xf32> to vector<32xf32>
    %15 = vector.shape_cast %14 : vector<32xf32> to vector<32x1xf32>
    %cst_5 = arith.constant 3.200000e+01 : f32
    %16 = vector.broadcast %cst_5 : f32 to vector<32x1xf32>
    %17 = arith.divf %15, %16 : vector<32x1xf32>
    %18 = vector.broadcast %17 : vector<32x1xf32> to vector<32x32xf32>
    %19 = arith.subf %3, %18 : vector<32x32xf32>
    %20 = arith.mulf %19, %19 : vector<32x32xf32>
    %cst_6 = arith.constant dense<0.000000e+00> : vector<32xf32>
    %21 = vector.multi_reduction <add>, %20, %cst_6 [1] : vector<32x32xf32> to vector<32xf32>
    %22 = vector.shape_cast %21 : vector<32xf32> to vector<32x1xf32>
    %cst_7 = arith.constant 3.200000e+01 : f32
    %23 = vector.broadcast %cst_7 : f32 to vector<32x1xf32>
    %24 = arith.divf %22, %23 : vector<32x1xf32>
    %25 = vector.broadcast %17 : vector<32x1xf32> to vector<32x32xf32>
    %26 = arith.subf %3, %25 : vector<32x32xf32>
    %cst_8 = arith.constant 9.99999974E-6 : f32
    %27 = vector.broadcast %cst_8 : f32 to vector<32x1xf32>
    %28 = arith.addf %24, %27 : vector<32x1xf32>
    %29 = math.rsqrt %28 : vector<32x1xf32>
    %30 = vector.broadcast %29 : vector<32x1xf32> to vector<32x32xf32>
    %31 = arith.mulf %26, %30 : vector<32x32xf32>
    %32 = vector.broadcast %6 : vector<1x32xf32> to vector<32x32xf32>
    %33 = arith.mulf %31, %32 : vector<32x32xf32>
    %34 = vector.broadcast %7 : vector<1x32xf32> to vector<32x32xf32>
    %35 = arith.addf %33, %34 : vector<32x32xf32>
    %36 = arith.truncf %35 : vector<32x32xf32> to vector<32x32xbf16>
    %c0_9 = arith.constant 0 : index
    %c0_10 = arith.constant 0 : index
    %c0_11 = arith.constant 0 : index
    %37 = vector.load %arg5[%c0_9, %c0_10, %c0_11] : memref<1x32x96xbf16, #tpu.memory_space<vmem>>, vector<1x32x96xbf16>
    %38 = vector.shape_cast %37 : vector<1x32x96xbf16> to vector<32x96xbf16>
    %cst_12 = arith.constant dense<0.000000e+00> : vector<32x96xf32>
    %39 = tpu.matmul %36, %38, %cst_12 {dimension_numbers = #tpu.dot_dimension_numbers<[1], [0], [0], [1], [0, 0, 1, 1], [], []>} : vector<32x32xbf16>, vector<32x96xbf16>, vector<32x96xf32> -> vector<32x96xf32>
    %40 = vector.broadcast %10 : vector<1x96xf32> to vector<32x96xf32>
    %41 = arith.addf %39, %40 : vector<32x96xf32>
    %42 = vector.shape_cast %41 : vector<32x96xf32> to vector<2x16x96xf32>
    %cst_13 = arith.constant 0.000000e+00 : f32
    %43 = vector.broadcast %cst_13 : f32 to vector<32x32xf32>
    %44 = vector.extract_strided_slice %42 {offsets = [0, 0, 0], sizes = [2, 16, 8], strides = [1, 1, 1]} : vector<2x16x96xf32> to vector<2x16x8xf32>
    %45 = arith.truncf %44 : vector<2x16x8xf32> to vector<2x16x8xbf16>
    %46 = vector.extract_strided_slice %42 {offsets = [0, 0, 32], sizes = [2, 16, 8], strides = [1, 1, 1]} : vector<2x16x96xf32> to vector<2x16x8xf32>
    %47 = arith.truncf %46 : vector<2x16x8xf32> to vector<2x16x8xbf16>
    %48 = vector.extract_strided_slice %42 {offsets = [0, 0, 64], sizes = [2, 16, 8], strides = [1, 1, 1]} : vector<2x16x96xf32> to vector<2x16x8xf32>
    %49 = arith.truncf %48 : vector<2x16x8xf32> to vector<2x16x8xbf16>
    "tpu.trace_start"() <{level = 10 : i32, message = "bqd,bkd->bqk"}> : () -> ()
    %cst_14 = arith.constant dense<0.000000e+00> : vector<2x16x16xf32>
    %50 = tpu.matmul %45, %47, %cst_14 {dimension_numbers = #tpu.dot_dimension_numbers<[2], [2], [1], [1], [0, 0, 0, 1, 1, 1], [0], [0]>} : vector<2x16x8xbf16>, vector<2x16x8xbf16>, vector<2x16x16xf32> -> vector<2x16x16xf32>
    "tpu.trace_stop"() : () -> ()
    %cst_15 = arith.constant dense<0xFF800000> : vector<2x16xf32>
    %51 = vector.multi_reduction <maximumf>, %50, %cst_15 [2] : vector<2x16x16xf32> to vector<2x16xf32>
    %52 = vector.shape_cast %51 : vector<2x16xf32> to vector<2x16x1xf32>
    %53 = vector.broadcast %52 : vector<2x16x1xf32> to vector<2x16x16xf32>
    %54 = arith.subf %50, %53 : vector<2x16x16xf32>
    %55 = math.exp %54 : vector<2x16x16xf32>
    %cst_16 = arith.constant dense<0.000000e+00> : vector<2x16xf32>
    %56 = vector.multi_reduction <add>, %55, %cst_16 [2] : vector<2x16x16xf32> to vector<2x16xf32>
    %57 = vector.shape_cast %56 : vector<2x16xf32> to vector<2x16x1xf32>
    %58 = vector.broadcast %57 : vector<2x16x1xf32> to vector<2x16x16xf32>
    %59 = arith.divf %55, %58 : vector<2x16x16xf32>
    %60 = arith.truncf %59 : vector<2x16x16xf32> to vector<2x16x16xbf16>
    "tpu.trace_start"() <{level = 10 : i32, message = "bqk,bkd->bqd"}> : () -> ()
    %cst_17 = arith.constant dense<0.000000e+00> : vector<2x16x8xf32>
    %61 = tpu.matmul %60, %49, %cst_17 {dimension_numbers = #tpu.dot_dimension_numbers<[2], [1], [1], [2], [0, 0, 0, 1, 1, 2], [0], [0]>} : vector<2x16x16xbf16>, vector<2x16x8xbf16>, vector<2x16x8xf32> -> vector<2x16x8xf32>
    "tpu.trace_stop"() : () -> ()
    %62 = vector.shape_cast %61 : vector<2x16x8xf32> to vector<32x8xf32>
    %63 = arith.truncf %62 : vector<32x8xf32> to vector<32x8xbf16>
    %c0_18 = arith.constant 0 : index
    %c0_19 = arith.constant 0 : index
    %c0_20 = arith.constant 0 : index
    %c0_21 = arith.constant 0 : index
    %64 = vector.load %arg6[%c0_18, %c0_19, %c0_20, %c0_21] : memref<1x4x8x32xbf16, #tpu.memory_space<vmem>>, vector<1x1x8x32xbf16>
    %65 = vector.shape_cast %64 : vector<1x1x8x32xbf16> to vector<8x32xbf16>
    %cst_22 = arith.constant dense<0.000000e+00> : vector<32x32xf32>
    %66 = tpu.matmul %63, %65, %cst_22 {dimension_numbers = #tpu.dot_dimension_numbers<[1], [0], [0], [1], [0, 0, 1, 1], [], []>} : vector<32x8xbf16>, vector<8x32xbf16>, vector<32x32xf32> -> vector<32x32xf32>
    %67 = arith.addf %43, %66 : vector<32x32xf32>
    %68 = vector.extract_strided_slice %42 {offsets = [0, 0, 8], sizes = [2, 16, 8], strides = [1, 1, 1]} : vector<2x16x96xf32> to vector<2x16x8xf32>
    %69 = arith.truncf %68 : vector<2x16x8xf32> to vector<2x16x8xbf16>
    %70 = vector.extract_strided_slice %42 {offsets = [0, 0, 40], sizes = [2, 16, 8], strides = [1, 1, 1]} : vector<2x16x96xf32> to vector<2x16x8xf32>
    %71 = arith.truncf %70 : vector<2x16x8xf32> to vector<2x16x8xbf16>
    %72 = vector.extract_strided_slice %42 {offsets = [0, 0, 72], sizes = [2, 16, 8], strides = [1, 1, 1]} : vector<2x16x96xf32> to vector<2x16x8xf32>
    %73 = arith.truncf %72 : vector<2x16x8xf32> to vector<2x16x8xbf16>
    "tpu.trace_start"() <{level = 10 : i32, message = "bqd,bkd->bqk"}> : () -> ()
    %cst_23 = arith.constant dense<0.000000e+00> : vector<2x16x16xf32>
    %74 = tpu.matmul %69, %71, %cst_23 {dimension_numbers = #tpu.dot_dimension_numbers<[2], [2], [1], [1], [0, 0, 0, 1, 1, 1], [0], [0]>} : vector<2x16x8xbf16>, vector<2x16x8xbf16>, vector<2x16x16xf32> -> vector<2x16x16xf32>
    "tpu.trace_stop"() : () -> ()
    %cst_24 = arith.constant dense<0xFF800000> : vector<2x16xf32>
    %75 = vector.multi_reduction <maximumf>, %74, %cst_24 [2] : vector<2x16x16xf32> to vector<2x16xf32>
    %76 = vector.shape_cast %75 : vector<2x16xf32> to vector<2x16x1xf32>
    %77 = vector.broadcast %76 : vector<2x16x1xf32> to vector<2x16x16xf32>
    %78 = arith.subf %74, %77 : vector<2x16x16xf32>
    %79 = math.exp %78 : vector<2x16x16xf32>
    %cst_25 = arith.constant dense<0.000000e+00> : vector<2x16xf32>
    %80 = vector.multi_reduction <add>, %79, %cst_25 [2] : vector<2x16x16xf32> to vector<2x16xf32>
    %81 = vector.shape_cast %80 : vector<2x16xf32> to vector<2x16x1xf32>
    %82 = vector.broadcast %81 : vector<2x16x1xf32> to vector<2x16x16xf32>
    %83 = arith.divf %79, %82 : vector<2x16x16xf32>
    %84 = arith.truncf %83 : vector<2x16x16xf32> to vector<2x16x16xbf16>
    "tpu.trace_start"() <{level = 10 : i32, message = "bqk,bkd->bqd"}> : () -> ()
    %cst_26 = arith.constant dense<0.000000e+00> : vector<2x16x8xf32>
    %85 = tpu.matmul %84, %73, %cst_26 {dimension_numbers = #tpu.dot_dimension_numbers<[2], [1], [1], [2], [0, 0, 0, 1, 1, 2], [0], [0]>} : vector<2x16x16xbf16>, vector<2x16x8xbf16>, vector<2x16x8xf32> -> vector<2x16x8xf32>
    "tpu.trace_stop"() : () -> ()
    %86 = vector.shape_cast %85 : vector<2x16x8xf32> to vector<32x8xf32>
    %87 = arith.truncf %86 : vector<32x8xf32> to vector<32x8xbf16>
    %c0_27 = arith.constant 0 : index
    %c1 = arith.constant 1 : index
    %c0_28 = arith.constant 0 : index
    %c0_29 = arith.constant 0 : index
    %88 = vector.load %arg6[%c0_27, %c1, %c0_28, %c0_29] : memref<1x4x8x32xbf16, #tpu.memory_space<vmem>>, vector<1x1x8x32xbf16>
    %89 = vector.shape_cast %88 : vector<1x1x8x32xbf16> to vector<8x32xbf16>
    %cst_30 = arith.constant dense<0.000000e+00> : vector<32x32xf32>
    %90 = tpu.matmul %87, %89, %cst_30 {dimension_numbers = #tpu.dot_dimension_numbers<[1], [0], [0], [1], [0, 0, 1, 1], [], []>} : vector<32x8xbf16>, vector<8x32xbf16>, vector<32x32xf32> -> vector<32x32xf32>
    %91 = arith.addf %67, %90 : vector<32x32xf32>
    %92 = vector.extract_strided_slice %42 {offsets = [0, 0, 16], sizes = [2, 16, 8], strides = [1, 1, 1]} : vector<2x16x96xf32> to vector<2x16x8xf32>
    %93 = arith.truncf %92 : vector<2x16x8xf32> to vector<2x16x8xbf16>
    %94 = vector.extract_strided_slice %42 {offsets = [0, 0, 48], sizes = [2, 16, 8], strides = [1, 1, 1]} : vector<2x16x96xf32> to vector<2x16x8xf32>
    %95 = arith.truncf %94 : vector<2x16x8xf32> to vector<2x16x8xbf16>
    %96 = vector.extract_strided_slice %42 {offsets = [0, 0, 80], sizes = [2, 16, 8], strides = [1, 1, 1]} : vector<2x16x96xf32> to vector<2x16x8xf32>
    %97 = arith.truncf %96 : vector<2x16x8xf32> to vector<2x16x8xbf16>
    "tpu.trace_start"() <{level = 10 : i32, message = "bqd,bkd->bqk"}> : () -> ()
    %cst_31 = arith.constant dense<0.000000e+00> : vector<2x16x16xf32>
    %98 = tpu.matmul %93, %95, %cst_31 {dimension_numbers = #tpu.dot_dimension_numbers<[2], [2], [1], [1], [0, 0, 0, 1, 1, 1], [0], [0]>} : vector<2x16x8xbf16>, vector<2x16x8xbf16>, vector<2x16x16xf32> -> vector<2x16x16xf32>
    "tpu.trace_stop"() : () -> ()
    %cst_32 = arith.constant dense<0xFF800000> : vector<2x16xf32>
    %99 = vector.multi_reduction <maximumf>, %98, %cst_32 [2] : vector<2x16x16xf32> to vector<2x16xf32>
    %100 = vector.shape_cast %99 : vector<2x16xf32> to vector<2x16x1xf32>
    %101 = vector.broadcast %100 : vector<2x16x1xf32> to vector<2x16x16xf32>
    %102 = arith.subf %98, %101 : vector<2x16x16xf32>
    %103 = math.exp %102 : vector<2x16x16xf32>
    %cst_33 = arith.constant dense<0.000000e+00> : vector<2x16xf32>
    %104 = vector.multi_reduction <add>, %103, %cst_33 [2] : vector<2x16x16xf32> to vector<2x16xf32>
    %105 = vector.shape_cast %104 : vector<2x16xf32> to vector<2x16x1xf32>
    %106 = vector.broadcast %105 : vector<2x16x1xf32> to vector<2x16x16xf32>
    %107 = arith.divf %103, %106 : vector<2x16x16xf32>
    %108 = arith.truncf %107 : vector<2x16x16xf32> to vector<2x16x16xbf16>
    "tpu.trace_start"() <{level = 10 : i32, message = "bqk,bkd->bqd"}> : () -> ()
    %cst_34 = arith.constant dense<0.000000e+00> : vector<2x16x8xf32>
    %109 = tpu.matmul %108, %97, %cst_34 {dimension_numbers = #tpu.dot_dimension_numbers<[2], [1], [1], [2], [0, 0, 0, 1, 1, 2], [0], [0]>} : vector<2x16x16xbf16>, vector<2x16x8xbf16>, vector<2x16x8xf32> -> vector<2x16x8xf32>
    "tpu.trace_stop"() : () -> ()
    %110 = vector.shape_cast %109 : vector<2x16x8xf32> to vector<32x8xf32>
    %111 = arith.truncf %110 : vector<32x8xf32> to vector<32x8xbf16>
    %c0_35 = arith.constant 0 : index
    %c2 = arith.constant 2 : index
    %c0_36 = arith.constant 0 : index
    %c0_37 = arith.constant 0 : index
    %112 = vector.load %arg6[%c0_35, %c2, %c0_36, %c0_37] : memref<1x4x8x32xbf16, #tpu.memory_space<vmem>>, vector<1x1x8x32xbf16>
    %113 = vector.shape_cast %112 : vector<1x1x8x32xbf16> to vector<8x32xbf16>
    %cst_38 = arith.constant dense<0.000000e+00> : vector<32x32xf32>
    %114 = tpu.matmul %111, %113, %cst_38 {dimension_numbers = #tpu.dot_dimension_numbers<[1], [0], [0], [1], [0, 0, 1, 1], [], []>} : vector<32x8xbf16>, vector<8x32xbf16>, vector<32x32xf32> -> vector<32x32xf32>
    %115 = arith.addf %91, %114 : vector<32x32xf32>
    %116 = vector.extract_strided_slice %42 {offsets = [0, 0, 24], sizes = [2, 16, 8], strides = [1, 1, 1]} : vector<2x16x96xf32> to vector<2x16x8xf32>
    %117 = arith.truncf %116 : vector<2x16x8xf32> to vector<2x16x8xbf16>
    %118 = vector.extract_strided_slice %42 {offsets = [0, 0, 56], sizes = [2, 16, 8], strides = [1, 1, 1]} : vector<2x16x96xf32> to vector<2x16x8xf32>
    %119 = arith.truncf %118 : vector<2x16x8xf32> to vector<2x16x8xbf16>
    %120 = vector.extract_strided_slice %42 {offsets = [0, 0, 88], sizes = [2, 16, 8], strides = [1, 1, 1]} : vector<2x16x96xf32> to vector<2x16x8xf32>
    %121 = arith.truncf %120 : vector<2x16x8xf32> to vector<2x16x8xbf16>
    "tpu.trace_start"() <{level = 10 : i32, message = "bqd,bkd->bqk"}> : () -> ()
    %cst_39 = arith.constant dense<0.000000e+00> : vector<2x16x16xf32>
    %122 = tpu.matmul %117, %119, %cst_39 {dimension_numbers = #tpu.dot_dimension_numbers<[2], [2], [1], [1], [0, 0, 0, 1, 1, 1], [0], [0]>} : vector<2x16x8xbf16>, vector<2x16x8xbf16>, vector<2x16x16xf32> -> vector<2x16x16xf32>
    "tpu.trace_stop"() : () -> ()
    %cst_40 = arith.constant dense<0xFF800000> : vector<2x16xf32>
    %123 = vector.multi_reduction <maximumf>, %122, %cst_40 [2] : vector<2x16x16xf32> to vector<2x16xf32>
    %124 = vector.shape_cast %123 : vector<2x16xf32> to vector<2x16x1xf32>
    %125 = vector.broadcast %124 : vector<2x16x1xf32> to vector<2x16x16xf32>
    %126 = arith.subf %122, %125 : vector<2x16x16xf32>
    %127 = math.exp %126 : vector<2x16x16xf32>
    %cst_41 = arith.constant dense<0.000000e+00> : vector<2x16xf32>
    %128 = vector.multi_reduction <add>, %127, %cst_41 [2] : vector<2x16x16xf32> to vector<2x16xf32>
    %129 = vector.shape_cast %128 : vector<2x16xf32> to vector<2x16x1xf32>
    %130 = vector.broadcast %129 : vector<2x16x1xf32> to vector<2x16x16xf32>
    %131 = arith.divf %127, %130 : vector<2x16x16xf32>
    %132 = arith.truncf %131 : vector<2x16x16xf32> to vector<2x16x16xbf16>
    "tpu.trace_start"() <{level = 10 : i32, message = "bqk,bkd->bqd"}> : () -> ()
    %cst_42 = arith.constant dense<0.000000e+00> : vector<2x16x8xf32>
    %133 = tpu.matmul %132, %121, %cst_42 {dimension_numbers = #tpu.dot_dimension_numbers<[2], [1], [1], [2], [0, 0, 0, 1, 1, 2], [0], [0]>} : vector<2x16x16xbf16>, vector<2x16x8xbf16>, vector<2x16x8xf32> -> vector<2x16x8xf32>
    "tpu.trace_stop"() : () -> ()
    %134 = vector.shape_cast %133 : vector<2x16x8xf32> to vector<32x8xf32>
    %135 = arith.truncf %134 : vector<32x8xf32> to vector<32x8xbf16>
    %c0_43 = arith.constant 0 : index
    %c3 = arith.constant 3 : index
    %c0_44 = arith.constant 0 : index
    %c0_45 = arith.constant 0 : index
    %136 = vector.load %arg6[%c0_43, %c3, %c0_44, %c0_45] : memref<1x4x8x32xbf16, #tpu.memory_space<vmem>>, vector<1x1x8x32xbf16>
    %137 = vector.shape_cast %136 : vector<1x1x8x32xbf16> to vector<8x32xbf16>
    %cst_46 = arith.constant dense<0.000000e+00> : vector<32x32xf32>
    %138 = tpu.matmul %135, %137, %cst_46 {dimension_numbers = #tpu.dot_dimension_numbers<[1], [0], [0], [1], [0, 0, 1, 1], [], []>} : vector<32x8xbf16>, vector<8x32xbf16>, vector<32x32xf32> -> vector<32x32xf32>
    %139 = arith.addf %115, %138 : vector<32x32xf32>
    %140 = arith.addf %3, %139 : vector<32x32xf32>
    %141 = vector.broadcast %11 : vector<1x32xf32> to vector<32x32xf32>
    %142 = arith.addf %140, %141 : vector<32x32xf32>
    %cst_47 = arith.constant dense<0.000000e+00> : vector<32xf32>
    %143 = vector.multi_reduction <add>, %142, %cst_47 [1] : vector<32x32xf32> to vector<32xf32>
    %144 = vector.shape_cast %143 : vector<32xf32> to vector<32x1xf32>
    %cst_48 = arith.constant 3.200000e+01 : f32
    %145 = vector.broadcast %cst_48 : f32 to vector<32x1xf32>
    %146 = arith.divf %144, %145 : vector<32x1xf32>
    %147 = vector.broadcast %146 : vector<32x1xf32> to vector<32x32xf32>
    %148 = arith.subf %142, %147 : vector<32x32xf32>
    %149 = arith.mulf %148, %148 : vector<32x32xf32>
    %cst_49 = arith.constant dense<0.000000e+00> : vector<32xf32>
    %150 = vector.multi_reduction <add>, %149, %cst_49 [1] : vector<32x32xf32> to vector<32xf32>
    %151 = vector.shape_cast %150 : vector<32xf32> to vector<32x1xf32>
    %cst_50 = arith.constant 3.200000e+01 : f32
    %152 = vector.broadcast %cst_50 : f32 to vector<32x1xf32>
    %153 = arith.divf %151, %152 : vector<32x1xf32>
    %154 = vector.broadcast %146 : vector<32x1xf32> to vector<32x32xf32>
    %155 = arith.subf %142, %154 : vector<32x32xf32>
    %cst_51 = arith.constant 9.99999974E-6 : f32
    %156 = vector.broadcast %cst_51 : f32 to vector<32x1xf32>
    %157 = arith.addf %153, %156 : vector<32x1xf32>
    %158 = math.rsqrt %157 : vector<32x1xf32>
    %159 = vector.broadcast %158 : vector<32x1xf32> to vector<32x32xf32>
    %160 = arith.mulf %155, %159 : vector<32x32xf32>
    %161 = vector.broadcast %8 : vector<1x32xf32> to vector<32x32xf32>
    %162 = arith.mulf %160, %161 : vector<32x32xf32>
    %163 = vector.broadcast %9 : vector<1x32xf32> to vector<32x32xf32>
    %164 = arith.addf %162, %163 : vector<32x32xf32>
    %165 = arith.truncf %164 : vector<32x32xf32> to vector<32x32xbf16>
    %c0_52 = arith.constant 0 : index
    %c0_53 = arith.constant 0 : index
    %c0_54 = arith.constant 0 : index
    %166 = vector.load %arg7[%c0_52, %c0_53, %c0_54] : memref<1x32x128xbf16, #tpu.memory_space<vmem>>, vector<1x32x128xbf16>
    %167 = vector.shape_cast %166 : vector<1x32x128xbf16> to vector<32x128xbf16>
    %cst_55 = arith.constant dense<0.000000e+00> : vector<32x128xf32>
    %168 = tpu.matmul %165, %167, %cst_55 {dimension_numbers = #tpu.dot_dimension_numbers<[1], [0], [0], [1], [0, 0, 1, 1], [], []>} : vector<32x32xbf16>, vector<32x128xbf16>, vector<32x128xf32> -> vector<32x128xf32>
    %169 = vector.broadcast %12 : vector<1x128xf32> to vector<32x128xf32>
    %170 = arith.addf %168, %169 : vector<32x128xf32>
    %cst_56 = arith.constant 5.000000e-01 : f32
    %171 = vector.broadcast %cst_56 : f32 to vector<32x128xf32>
    %172 = arith.mulf %171, %170 : vector<32x128xf32>
    %cst_57 = arith.constant 0.707106769 : f32
    %173 = vector.broadcast %cst_57 : f32 to vector<32x128xf32>
    %174 = arith.mulf %170, %173 : vector<32x128xf32>
    %cst_58 = arith.constant 0.000000e+00 : f32
    %175 = vector.broadcast %cst_58 : f32 to vector<32x128xf32>
    %176 = arith.cmpf oge, %174, %175 : vector<32x128xf32>
    %cst_59 = arith.constant 1.000000e+00 : f32
    %cst_60 = arith.constant -1.000000e+00 : f32
    %177 = vector.broadcast %cst_59 : f32 to vector<32x128xf32>
    %178 = vector.broadcast %cst_60 : f32 to vector<32x128xf32>
    %179 = arith.select %176, %177, %178 : vector<32x128xi1>, vector<32x128xf32>
    %180 = math.absf %174 : vector<32x128xf32>
    %cst_61 = arith.constant 0.327591091 : f32
    %181 = vector.broadcast %cst_61 : f32 to vector<32x128xf32>
    %182 = arith.mulf %181, %180 : vector<32x128xf32>
    %cst_62 = arith.constant 1.000000e+00 : f32
    %183 = vector.broadcast %cst_62 : f32 to vector<32x128xf32>
    %184 = arith.addf %183, %182 : vector<32x128xf32>
    %cst_63 = arith.constant 1.000000e+00 : f32
    %185 = vector.broadcast %cst_63 : f32 to vector<32x128xf32>
    %186 = arith.divf %185, %184 : vector<32x128xf32>
    %cst_64 = arith.constant 1.06140542 : f32
    %187 = vector.broadcast %cst_64 : f32 to vector<32x128xf32>
    %188 = arith.mulf %186, %187 : vector<32x128xf32>
    %cst_65 = arith.constant -1.45315206 : f32
    %189 = vector.broadcast %cst_65 : f32 to vector<32x128xf32>
    %190 = arith.addf %189, %188 : vector<32x128xf32>
    %191 = arith.mulf %186, %190 : vector<32x128xf32>
    %cst_66 = arith.constant 1.42141378 : f32
    %192 = vector.broadcast %cst_66 : f32 to vector<32x128xf32>
    %193 = arith.addf %192, %191 : vector<32x128xf32>
    %194 = arith.mulf %186, %193 : vector<32x128xf32>
    %cst_67 = arith.constant -0.284496725 : f32
    %195 = vector.broadcast %cst_67 : f32 to vector<32x128xf32>
    %196 = arith.addf %195, %194 : vector<32x128xf32>
    %197 = arith.mulf %186, %196 : vector<32x128xf32>
    %cst_68 = arith.constant 0.254829586 : f32
    %198 = vector.broadcast %cst_68 : f32 to vector<32x128xf32>
    %199 = arith.addf %198, %197 : vector<32x128xf32>
    %200 = arith.mulf %186, %199 : vector<32x128xf32>
    %cst_69 = arith.constant 0.000000e+00 : f32
    %201 = vector.broadcast %cst_69 : f32 to vector<32x128xf32>
    %202 = arith.subf %201, %180 : vector<32x128xf32>
    %203 = arith.mulf %202, %180 : vector<32x128xf32>
    %204 = math.exp %203 : vector<32x128xf32>
    %205 = arith.mulf %200, %204 : vector<32x128xf32>
    %cst_70 = arith.constant 1.000000e+00 : f32
    %206 = vector.broadcast %cst_70 : f32 to vector<32x128xf32>
    %207 = arith.subf %206, %205 : vector<32x128xf32>
    %208 = arith.mulf %179, %207 : vector<32x128xf32>
    %cst_71 = arith.constant 1.000000e+00 : f32
    %209 = vector.broadcast %cst_71 : f32 to vector<32x128xf32>
    %210 = arith.addf %209, %208 : vector<32x128xf32>
    %211 = arith.mulf %172, %210 : vector<32x128xf32>
    %212 = arith.truncf %211 : vector<32x128xf32> to vector<32x128xbf16>
    %c0_72 = arith.constant 0 : index
    %c0_73 = arith.constant 0 : index
    %c0_74 = arith.constant 0 : index
    %213 = vector.load %arg8[%c0_72, %c0_73, %c0_74] : memref<1x128x32xbf16, #tpu.memory_space<vmem>>, vector<1x128x32xbf16>
    %214 = vector.shape_cast %213 : vector<1x128x32xbf16> to vector<128x32xbf16>
    %cst_75 = arith.constant dense<0.000000e+00> : vector<32x32xf32>
    %215 = tpu.matmul %212, %214, %cst_75 {dimension_numbers = #tpu.dot_dimension_numbers<[1], [0], [0], [1], [0, 0, 1, 1], [], []>} : vector<32x128xbf16>, vector<128x32xbf16>, vector<32x32xf32> -> vector<32x32xf32>
    %216 = vector.broadcast %13 : vector<1x32xf32> to vector<32x32xf32>
    %217 = arith.addf %215, %216 : vector<32x32xf32>
    %218 = arith.addf %142, %217 : vector<32x32xf32>
    %c0_76 = arith.constant 0 : index
    %c0_77 = arith.constant 0 : index
    %219 = vector.load %arg13[%c0_76, %c0_77] : memref<32x32xf32, #tpu.memory_space<vmem>>, vector<32x32xf32>
    tpu.vector_store %arg13[%c0_76, %c0_77], %218 {strides = array<i32>} : memref<32x32xf32, #tpu.memory_space<vmem>>, vector<32x32xf32>,
    %c2_i32 = arith.constant 2 : i32
    %220 = arith.cmpi eq, %arg1, %c2_i32 : i32
    %221 = arith.extui %220 : i1 to i32
    %c0_i32_78 = arith.constant 0 : i32
    %222 = arith.cmpi ne, %221, %c0_i32_78 : i32
    scf.if %222 {
      %c0_79 = arith.constant 0 : index
      %c0_80 = arith.constant 0 : index
      %223 = vector.load %arg9[%c0_79, %c0_80] : memref<2x32xf32, #tpu.memory_space<vmem>>, vector<1x32xf32>
      %c1_81 = arith.constant 1 : index
      %c0_82 = arith.constant 0 : index
      %224 = vector.load %arg9[%c1_81, %c0_82] : memref<2x32xf32, #tpu.memory_space<vmem>>, vector<1x32xf32>
      %cst_83 = arith.constant dense<0.000000e+00> : vector<32xf32>
      %225 = vector.multi_reduction <add>, %218, %cst_83 [1] : vector<32x32xf32> to vector<32xf32>
      %226 = vector.shape_cast %225 : vector<32xf32> to vector<32x1xf32>
      %cst_84 = arith.constant 3.200000e+01 : f32
      %227 = vector.broadcast %cst_84 : f32 to vector<32x1xf32>
      %228 = arith.divf %226, %227 : vector<32x1xf32>
      %229 = vector.broadcast %228 : vector<32x1xf32> to vector<32x32xf32>
      %230 = arith.subf %218, %229 : vector<32x32xf32>
      %231 = arith.mulf %230, %230 : vector<32x32xf32>
      %cst_85 = arith.constant dense<0.000000e+00> : vector<32xf32>
      %232 = vector.multi_reduction <add>, %231, %cst_85 [1] : vector<32x32xf32> to vector<32xf32>
      %233 = vector.shape_cast %232 : vector<32xf32> to vector<32x1xf32>
      %cst_86 = arith.constant 3.200000e+01 : f32
      %234 = vector.broadcast %cst_86 : f32 to vector<32x1xf32>
      %235 = arith.divf %233, %234 : vector<32x1xf32>
      %236 = vector.broadcast %228 : vector<32x1xf32> to vector<32x32xf32>
      %237 = arith.subf %218, %236 : vector<32x32xf32>
      %cst_87 = arith.constant 9.99999974E-6 : f32
      %238 = vector.broadcast %cst_87 : f32 to vector<32x1xf32>
      %239 = arith.addf %235, %238 : vector<32x1xf32>
      %240 = math.rsqrt %239 : vector<32x1xf32>
      %241 = vector.broadcast %240 : vector<32x1xf32> to vector<32x32xf32>
      %242 = arith.mulf %237, %241 : vector<32x32xf32>
      %243 = vector.broadcast %223 : vector<1x32xf32> to vector<32x32xf32>
      %244 = arith.mulf %242, %243 : vector<32x32xf32>
      %245 = vector.broadcast %224 : vector<1x32xf32> to vector<32x32xf32>
      %246 = arith.addf %244, %245 : vector<32x32xf32>
      %247 = vector.shape_cast %246 : vector<32x32xf32> to vector<2x16x32xf32>
      %cst_88 = arith.constant dense<0.000000e+00> : vector<2x32xf32>
      %248 = vector.multi_reduction <add>, %247, %cst_88 [1] : vector<2x16x32xf32> to vector<2x32xf32>
      %249 = arith.truncf %248 : vector<2x32xf32> to vector<2x32xbf16>
      %c0_89 = arith.constant 0 : index
      %c0_90 = arith.constant 0 : index
      %250 = vector.load %arg10[%c0_89, %c0_90] : memref<32x128xbf16, #tpu.memory_space<vmem>>, vector<32x128xbf16>
      %cst_91 = arith.constant dense<0.000000e+00> : vector<2x128xf32>
      %251 = tpu.matmul %249, %250, %cst_91 {dimension_numbers = #tpu.dot_dimension_numbers<[1], [0], [0], [1], [0, 0, 1, 1], [], []>} : vector<2x32xbf16>, vector<32x128xbf16>, vector<2x128xf32> -> vector<2x128xf32>
      %c0_92 = arith.constant 0 : index
      %c0_93 = arith.constant 0 : index
      %252 = vector.load %arg11[%c0_92, %c0_93] : memref<1x128xf32, #tpu.memory_space<vmem>>, vector<1x128xf32>
      %253 = vector.broadcast %252 : vector<1x128xf32> to vector<2x128xf32>
      %254 = arith.addf %251, %253 : vector<2x128xf32>
      %c0_94 = arith.constant 0 : index
      %c0_95 = arith.constant 0 : index
      %c0_96 = arith.constant 0 : index
      %255 = vector.load %arg12[%c0_94, %c0_95, %c0_96] : memref<1x2x128xf32, #tpu.memory_space<vmem>>, vector<1x2x128xf32>
      %256 = vector.shape_cast %255 : vector<1x2x128xf32> to vector<2x128xf32>
      %257 = vector.shape_cast %254 : vector<2x128xf32> to vector<1x2x128xf32>
      tpu.vector_store %arg12[%c0_94, %c0_95, %c0_96], %257 {strides = array<i32>} : memref<1x2x128xf32, #tpu.memory_space<vmem>>, vector<1x2x128xf32>,
    } else {
    }
    return
  }
  func.func @transform_0(%arg0: i32, %arg1: i32) -> (i32, i32, i32) {
    %c0_i32 = arith.constant 0 : i32
    %c0_i32_0 = arith.constant 0 : i32
    %c0_i32_1 = arith.constant 0 : i32
    return %arg0, %c0_i32, %c0_i32_0 : i32, i32, i32
  }
  func.func @transform_1(%arg0: i32, %arg1: i32) -> (i32, i32, i32) {
    %c0_i32 = arith.constant 0 : i32
    %c0_i32_0 = arith.constant 0 : i32
    %c0_i32_1 = arith.constant 0 : i32
    %c0_i32_2 = arith.constant 0 : i32
    return %c0_i32, %c0_i32_0, %c0_i32_1 : i32, i32, i32
  }
  func.func @transform_2(%arg0: i32, %arg1: i32) -> (i32, i32, i32) {
    %c0_i32 = arith.constant 0 : i32
    %c0_i32_0 = arith.constant 0 : i32
    %c0_i32_1 = arith.constant 0 : i32
    return %arg1, %c0_i32, %c0_i32_0 : i32, i32, i32
  }
  func.func @transform_3(%arg0: i32, %arg1: i32) -> (i32, i32, i32) {
    %c0_i32 = arith.constant 0 : i32
    %c0_i32_0 = arith.constant 0 : i32
    %c0_i32_1 = arith.constant 0 : i32
    return %arg1, %c0_i32, %c0_i32_0 : i32, i32, i32
  }
  func.func @transform_4(%arg0: i32, %arg1: i32) -> (i32, i32, i32, i32) {
    %c0_i32 = arith.constant 0 : i32
    %c0_i32_0 = arith.constant 0 : i32
    %c0_i32_1 = arith.constant 0 : i32
    %c0_i32_2 = arith.constant 0 : i32
    return %arg1, %c0_i32, %c0_i32_0, %c0_i32_1 : i32, i32, i32, i32
  }
  func.func @transform_5(%arg0: i32, %arg1: i32) -> (i32, i32, i32) {
    %c0_i32 = arith.constant 0 : i32
    %c0_i32_0 = arith.constant 0 : i32
    %c0_i32_1 = arith.constant 0 : i32
    return %arg1, %c0_i32, %c0_i32_0 : i32, i32, i32
  }
  func.func @transform_6(%arg0: i32, %arg1: i32) -> (i32, i32, i32) {
    %c0_i32 = arith.constant 0 : i32
    %c0_i32_0 = arith.constant 0 : i32
    %c0_i32_1 = arith.constant 0 : i32
    return %arg1, %c0_i32, %c0_i32_0 : i32, i32, i32
  }
  func.func @transform_7(%arg0: i32, %arg1: i32) -> (i32, i32) {
    %c0_i32 = arith.constant 0 : i32
    %c0_i32_0 = arith.constant 0 : i32
    %c0_i32_1 = arith.constant 0 : i32
    return %c0_i32, %c0_i32_0 : i32, i32
  }
  func.func @transform_8(%arg0: i32, %arg1: i32) -> (i32, i32) {
    %c0_i32 = arith.constant 0 : i32
    %c0_i32_0 = arith.constant 0 : i32
    %c0_i32_1 = arith.constant 0 : i32
    return %c0_i32, %c0_i32_0 : i32, i32
  }
  func.func @transform_9(%arg0: i32, %arg1: i32) -> (i32, i32) {
    %c0_i32 = arith.constant 0 : i32
    %c0_i32_0 = arith.constant 0 : i32
    %c0_i32_1 = arith.constant 0 : i32
    return %c0_i32, %c0_i32_0 : i32, i32
  }
  func.func @transform_10(%arg0: i32, %arg1: i32) -> (i32, i32, i32) {
    %c0_i32 = arith.constant 0 : i32
    %c0_i32_0 = arith.constant 0 : i32
    %c0_i32_1 = arith.constant 0 : i32
    return %arg0, %c0_i32, %c0_i32_0 : i32, i32, i32
  }
}

</mosaic_0001>

<llo_original>
// kernel: cct_forward.2
$region0: #{cct_forward.2}
  #allocation0 [shape = 'u32[]', space=smem, size = 0x4, offset = 0x4, fixed_abs, tag = 'smem constant byte address 0x4 - core index']
  #allocation1 [shape = 'u32[144,128]{1,0:T(1,128)}', space=vmem, size = 0x12000, scoped, tag = 'internal scratch']
  #allocation2 [shape = 'f32[10,10,32]{2,1,0:T(8,128)}', space=vmem, size = 0x14000, scoped, tag = 'scratch operand']
  %s0 = inlined_call_operand.vmem [shape: bf16[4,64,256], index: 0, kind: input, shape index: {}]
  %s1 = inlined_call_operand.vmem [shape: bf16[256,32], index: 1, kind: input, shape index: {}]
  %s2 = inlined_call_operand.vmem [shape: f32[4,4,4,32], index: 2, kind: output, shape index: {}]
  %s3 = sld [smem:[#allocation0]]
  $region41: #{cct_forward.2} parent=0
    _
  %s5 = ssub.s32 1, %s3
  %s6 = scalar_select 0, %s5, %s3
  loop: start=0, step=1, limit=6
  $region2: #{cct_forward.2} parent=0 // loop_pre_header
    _
  $region3: #{cct_forward.2} parent=0 // loop_header
    %s8 = sphi 0, %s12
    %p9 = scmp.ge.s32.totalorder %s8, 6
    %s18 = sphi 0, %s20
    %s21 = sphi 0, %s18
    %s22 = sphi 0, %s21
    %s38 = sphi 0, %s22
    %s42 = sphi 0, %s42
    %s44 = sphi 0, %s42
    %s45 = sphi 0, %s44
    %s59 = sphi 0, %s45
    %s65 = sphi 0, %s67
    %s68 = sphi 0, %s65
    %s69 = sphi 0, %s68
    %s85 = sphi 0, %s69
  $region4: #{cct_forward.2} parent=0 // loop_header_branch
    %11 = sbr.rel (%p9) target = $region8
  $region5: #{cct_forward.2} parent=0 // loop_body
    %s13 = ssub.s32 %s8, 1
    %s14 = ssub.s32 %s8, 2
    %s15 = sadd.s32 %s8, 1
    %s16 = ssub.s32 %s8, %s15
    %p17 = scmp.eq.s32.totalorder %s16, 0
    %s19 = sadd.s32 %s18, 1
    %s20 = scalar_select %p17, %s18, %s19
    %p23 = pneg %p17
    %p24 = scmp.eq.s32.totalorder %s8, 3
    %p25 = por %p23, %p24
    %p26 = scmp.ne.s32.totalorder %s18, %s21
    %p27 = scmp.eq.s32.totalorder %s8, 0
    %p28 = por %p26, %p27
    %p29 = scmp.ne.s32.totalorder %s18, %s21
    %p30 = scmp.eq.s32.totalorder %s13, 3
    %p31 = por %p29, %p30
    %p32 = scmp.ne.s32.totalorder %s21, %s22
    %p33 = scmp.eq.s32.totalorder %s13, 0
    %p34 = por %p32, %p33
    %p35 = scmp.ne.s32.totalorder %s21, %s22
    %p36 = scmp.eq.s32.totalorder %s14, 3
    %p37 = por %p35, %p36
    %p39 = scmp.ne.s32.totalorder %s22, %s38
    %p40 = scmp.eq.s32.totalorder %s14, 0
    %p41 = por %p39, %p40
    %s43 = sadd.s32 %s42, 1
    %p46 = scmp.eq.s32.totalorder %s8, 3
    %p47 = scmp.ne.s32.totalorder %s42, %s44
    %p48 = scmp.eq.s32.totalorder %s8, 0
    %p49 = por %p47, %p48
    %p50 = scmp.ne.s32.totalorder %s42, %s44
    %p51 = scmp.eq.s32.totalorder %s13, 3
    %p52 = por %p50, %p51
    %p53 = scmp.ne.s32.totalorder %s44, %s45
    %p54 = scmp.eq.s32.totalorder %s13, 0
    %p55 = por %p53, %p54
    %p56 = scmp.ne.s32.totalorder %s44, %s45
    %p57 = scmp.eq.s32.totalorder %s14, 3
    %p58 = por %p56, %p57
    %p60 = scmp.ne.s32.totalorder %s45, %s59
    %p61 = scmp.eq.s32.totalorder %s14, 0
    %p62 = por %p60, %p61
    %s63 = ssub.s32 %s8, %s15
    %p64 = scmp.eq.s32.totalorder %s63, 0
    %s66 = sadd.s32 %s65, 1
    %s67 = scalar_select %p64, %s65, %s66
    %p70 = pneg %p64
    %p71 = scmp.eq.s32.totalorder %s8, 3
    %p72 = por %p70, %p71
    %p73 = scmp.ne.s32.totalorder %s65, %s68
    %p74 = scmp.eq.s32.totalorder %s8, 0
    %p75 = por %p73, %p74
    %p76 = scmp.ne.s32.totalorder %s65, %s68
    %p77 = scmp.eq.s32.totalorder %s13, 3
    %p78 = por %p76, %p77
    %p79 = scmp.ne.s32.totalorder %s68, %s69
    %p80 = scmp.eq.s32.totalorder %s13, 0
    %p81 = por %p79, %p80
    %p82 = scmp.ne.s32.totalorder %s68, %s69
    %p83 = scmp.eq.s32.totalorder %s14, 3
    %p84 = por %p82, %p83
    %p86 = scmp.ne.s32.totalorder %s69, %s85
    %p87 = scmp.eq.s32.totalorder %s14, 0
    %p88 = por %p86, %p87
    %p89 = scmp.le.s32.totalorder 1, %s8
    %p90 = scmp.lt.s32.totalorder %s8, 5
    %p91 = pnand %p89, %p90
    %p92 = pneg %p91
    // Predicated region
    $region9: #{cct_forward.2} parent=5 // pred_check
      _
    $region10: #{cct_forward.2} parent=5 // pred_check_branch
      %94 = sbr.rel (%p91) target = $region12
    $region11: #{cct_forward.2} parent=5 // pred_region
      %s95 = ssub.s32 %s8, 1
      // Predicated region
      $region13: #{cct_forward.2} parent=11 // pred_check
        %p96 = pneg %p55
      $region14: #{cct_forward.2} parent=11 // pred_check_branch
        %98 = sbr.rel (%p96) target = $region16
      $region15: #{cct_forward.2} parent=11 // pred_region
        _
      $region16: #{cct_forward.2} parent=11 // pred_fallthru
        _
    $region12: #{cct_forward.2} parent=5 // pred_fallthru
      _
    %p99 = scmp.lt.s32.totalorder %s8, 4
    // Predicated region
    $region17: #{cct_forward.2} parent=5 // pred_check
      %p100 = pneg %p99
    $region18: #{cct_forward.2} parent=5 // pred_check_branch
      %102 = sbr.rel (%p100) target = $region20
    $region19: #{cct_forward.2} parent=5 // pred_region
      // Predicated region
      $region21: #{cct_forward.2} parent=19 // pred_check
        %p103 = pneg %p28
      $region22: #{cct_forward.2} parent=19 // pred_check_branch
        %105 = sbr.rel (%p103) target = $region24
      $region23: #{cct_forward.2} parent=19 // pred_region
        %p106 = scmp.lt.s32.totalorder %s8, 3
        %s107 = scalar_select %p106, %s8, 3
        %s108 = smul.addr %s107, 16
        %s109 = smul.addr %s108, 4
        %s110 = scalar_lea.vmem %s0, %s109
      $region24: #{cct_forward.2} parent=19 // pred_fallthru
        _
    $region20: #{cct_forward.2} parent=5 // pred_fallthru
      _
    %p111 = scmp.le.s32.totalorder 1, %s8
    %p112 = scmp.lt.s32.totalorder %s8, 5
    %p113 = pnand %p111, %p112
    %p114 = pneg %p113
    // Predicated region
    $region25: #{cct_forward.2} parent=5 // pred_check
      _
    $region26: #{cct_forward.2} parent=5 // pred_check_branch
      %116 = sbr.rel (%p113) target = $region28
    $region27: #{cct_forward.2} parent=5 // pred_region
      %s117 = ssub.s32 %s8, 1
      %p118 = scmp.lt.s32.totalorder %s13, 3
      %s119 = scalar_select %p118, %s13, 3
      %s120 = smul.addr %s119, 16
      %s121 = smul.addr %s120, 4
      %s122 = scalar_lea.vmem %s0, %s121
      %p123 = pneg %p34
      %p124 = pneg %p31
      %p125 = pneg %p55
      %p126 = pneg %p52
      %p127 = pneg %p81
      %p128 = pneg %p78
      %p129 = scmp.lt.s32.totalorder %s13, 3
      %s130 = scalar_select %p129, %s13, 3
      %s131 = smul.addr %s130, 4
      %s132 = smul.addr %s131, 4
      %s133 = scalar_lea.vmem %s2, %s132
      %p134 = scmp.lt.s32.totalorder %s13, 3
      %s135 = scalar_select %p134, %s13, 3
      %s136 = smul.addr %s135, 16
      %s137 = smul.addr %s136, 4
      %s138 = scalar_lea.vmem %s0, %s137
      %p139 = scmp.lt.s32.totalorder %s13, 3
      %s140 = scalar_select %p139, %s13, 3
      %s141 = smul.addr %s140, 4
      %s142 = smul.addr %s141, 4
      %s143 = scalar_lea.vmem %s2, %s142
      %v145 = vld [vmem:[%s138] sm:$0xff]
      %v146 = vld [vmem:[%s138 + $0x8] sm:$0xff]
      %v147 = vld [vmem:[%s138 + $0x10] sm:$0xff]
      %v148 = vld [vmem:[%s138 + $0x18] sm:$0xff]
      %v149 = vld [vmem:[%s138 + $0x20] sm:$0xff]
      %v150 = vld [vmem:[%s138 + $0x28] sm:$0xff]
      %v151 = vld [vmem:[%s138 + $0x30] sm:$0xff]
      %v152 = vld [vmem:[%s138 + $0x38] sm:$0xff]
      %v153 = vld [vmem:[%s1] sm:$0xf]
      %v154 = vld [vmem:[%s1 + $0x4] sm:$0xf]
      %v155 = vld [vmem:[%s1 + $0x8] sm:$0xf]
      %v156 = vld [vmem:[%s1 + $0xc] sm:$0xf]
      %v157 = vld [vmem:[%s1 + $0x10] sm:$0xf]
      %v158 = vld [vmem:[%s1 + $0x14] sm:$0xf]
      %v159 = vld [vmem:[%s1 + $0x18] sm:$0xf]
      %v160 = vld [vmem:[%s1 + $0x1c] sm:$0xf]
      %v161 = vld [vmem:[%s1 + $0x20] sm:$0xf]
      %v162 = vld [vmem:[%s1 + $0x24] sm:$0xf]
      %v163 = vld [vmem:[%s1 + $0x28] sm:$0xf]
      %v164 = vld [vmem:[%s1 + $0x2c] sm:$0xf]
      %v165 = vld [vmem:[%s1 + $0x30] sm:$0xf]
      %v166 = vld [vmem:[%s1 + $0x34] sm:$0xf]
      %v167 = vld [vmem:[%s1 + $0x38] sm:$0xf]
      %v168 = vld [vmem:[%s1 + $0x3c] sm:$0xf]
      %v169 = vld [vmem:[%s1 + $0x40] sm:$0xf]
      %v170 = vld [vmem:[%s1 + $0x44] sm:$0xf]
      %v171 = vld [vmem:[%s1 + $0x48] sm:$0xf]
      %v172 = vld [vmem:[%s1 + $0x4c] sm:$0xf]
      %v173 = vld [vmem:[%s1 + $0x50] sm:$0xf]
      %v174 = vld [vmem:[%s1 + $0x54] sm:$0xf]
      %v175 = vld [vmem:[%s1 + $0x58] sm:$0xf]
      %v176 = vld [vmem:[%s1 + $0x5c] sm:$0xf]
      %v177 = vld [vmem:[%s1 + $0x60] sm:$0xf]
      %v178 = vld [vmem:[%s1 + $0x64] sm:$0xf]
      %v179 = vld [vmem:[%s1 + $0x68] sm:$0xf]
      %v180 = vld [vmem:[%s1 + $0x6c] sm:$0xf]
      %v181 = vld [vmem:[%s1 + $0x70] sm:$0xf]
      %v182 = vld [vmem:[%s1 + $0x74] sm:$0xf]
      %v183 = vld [vmem:[%s1 + $0x78] sm:$0xf]
      %v184 = vld [vmem:[%s1 + $0x7c] sm:$0xf]
      %v193 = vunpack.c.l.b16 %v145
      %v194 = vunpack.c.h.b16 %v145
      %v195 = vunpack.c.l.b16 %v146
      %v196 = vunpack.c.h.b16 %v146
      %v197 = vunpack.c.l.b16 %v147
      %v198 = vunpack.c.h.b16 %v147
      %v199 = vunpack.c.l.b16 %v148
      %v200 = vunpack.c.h.b16 %v148
      %v201 = vunpack.c.l.b16 %v149
      %v202 = vunpack.c.h.b16 %v149
      %v203 = vunpack.c.l.b16 %v150
      %v204 = vunpack.c.h.b16 %v150
      %v205 = vunpack.c.l.b16 %v151
      %v206 = vunpack.c.h.b16 %v151
      %v207 = vunpack.c.l.b16 %v152
      %v208 = vunpack.c.h.b16 %v152
      %v209 = vpack.c.b16 %v195, %v193
      %v210 = vpack.c.b16 %v196, %v194
      %v211 = vpack.c.b16 %v199, %v197
      %v212 = vpack.c.b16 %v200, %v198
      %v213 = vpack.c.b16 %v203, %v201
      %v214 = vpack.c.b16 %v204, %v202
      %v215 = vpack.c.b16 %v207, %v205
      %v216 = vpack.c.b16 %v208, %v206
      %v257 = vunpack.c.l.b16 %v153
      %v258 = vunpack.c.l.b16 %v154
      %v259 = vunpack.c.l.b16 %v155
      %v260 = vunpack.c.l.b16 %v156
      %v261 = vunpack.c.l.b16 %v157
      %v262 = vunpack.c.l.b16 %v158
      %v263 = vunpack.c.l.b16 %v159
      %v264 = vunpack.c.l.b16 %v160
      %v265 = vunpack.c.l.b16 %v161
      %v266 = vunpack.c.l.b16 %v162
      %v267 = vunpack.c.l.b16 %v163
      %v268 = vunpack.c.l.b16 %v164
      %v269 = vunpack.c.l.b16 %v165
      %v270 = vunpack.c.l.b16 %v166
      %v271 = vunpack.c.l.b16 %v167
      %v272 = vunpack.c.l.b16 %v168
      %v273 = vunpack.c.l.b16 %v169
      %v274 = vunpack.c.l.b16 %v170
      %v275 = vunpack.c.l.b16 %v171
      %v276 = vunpack.c.l.b16 %v172
      %v277 = vunpack.c.l.b16 %v173
      %v278 = vunpack.c.l.b16 %v174
      %v279 = vunpack.c.l.b16 %v175
      %v280 = vunpack.c.l.b16 %v176
      %v281 = vunpack.c.l.b16 %v177
      %v282 = vunpack.c.l.b16 %v178
      %v283 = vunpack.c.l.b16 %v179
      %v284 = vunpack.c.l.b16 %v180
      %v285 = vunpack.c.l.b16 %v181
      %v286 = vunpack.c.l.b16 %v182
      %v287 = vunpack.c.l.b16 %v183
      %v288 = vunpack.c.l.b16 %v184
      %v289 = vpack.c.b16 %v258, %v257
      %v290 = vpack.c.b16 %v260, %v259
      %v291 = vpack.c.b16 %v262, %v261
      %v292 = vpack.c.b16 %v264, %v263
      %v293 = vpack.c.b16 %v266, %v265
      %v294 = vpack.c.b16 %v268, %v267
      %v295 = vpack.c.b16 %v270, %v269
      %v296 = vpack.c.b16 %v272, %v271
      %v297 = vpack.c.b16 %v274, %v273
      %v298 = vpack.c.b16 %v276, %v275
      %v299 = vpack.c.b16 %v278, %v277
      %v300 = vpack.c.b16 %v280, %v279
      %v301 = vpack.c.b16 %v282, %v281
      %v302 = vpack.c.b16 %v284, %v283
      %v303 = vpack.c.b16 %v286, %v285
      %v304 = vpack.c.b16 %v288, %v287
      %321 = vmatprep.subr.bf16.mxu0 0
      %322 = vmatpush1.bf16.msra.mxu0 %v296
      %323 = vmatprep.subr.bf16.mxu0 0
      %324 = vmatpush1.bf16.msra.mxu0 %v295
      %325 = vmatprep.subr.bf16.mxu0 0
      %326 = vmatpush1.bf16.msra.mxu0 %v294
      %327 = vmatprep.subr.bf16.mxu0 0
      %328 = vmatpush1.bf16.msra.mxu0 %v293
      %329 = vmatprep.subr.bf16.mxu0 0
      %330 = vmatpush1.bf16.msra.mxu0 %v292
      %331 = vmatprep.subr.bf16.mxu0 0
      %332 = vmatpush1.bf16.msra.mxu0 %v291
      %333 = vmatprep.subr.bf16.mxu0 0
      %334 = vmatpush1.bf16.msra.mxu0 %v290
      %335 = vmatprep.subr.bf16.mxu0 0
      %336 = vmatpush1.bf16.msra.mxu0 %v289
      %337 = vmatprep.subr.bf16.mxu0 0
      %338 = vmatpush2.bf16.msra.mxu0 %v304
      %339 = vmatprep.subr.bf16.mxu0 0
      %340 = vmatpush2.bf16.msra.mxu0 %v303
      %341 = vmatprep.subr.bf16.mxu0 0
      %342 = vmatpush2.bf16.msra.mxu0 %v302
      %343 = vmatprep.subr.bf16.mxu0 0
      %344 = vmatpush2.bf16.msra.mxu0 %v301
      %345 = vmatprep.subr.bf16.mxu0 0
      %346 = vmatpush2.bf16.msra.mxu0 %v300
      %347 = vmatprep.subr.bf16.mxu0 0
      %348 = vmatpush2.bf16.msra.mxu0 %v299
      %349 = vmatprep.subr.bf16.mxu0 0
      %350 = vmatpush2.bf16.msra.mxu0 %v298
      %351 = vmatprep.subr.bf16.mxu0 0
      %352 = vmatpush2.bf16.msra.mxu0 %v297
      %353 = vmatprep.mubr.bf16.mxu0 %v210
      %354 = vmatmul.mubr.bf16.gmra.mxu0 %v209
      %v355 = vpop.f32.mrf.mxu0
      %v356 = vadd.f32 0.0, %v355
      %v357 = vpop.f32.mrf.mxu0
      %v358 = vpop.f32.mrf.mxu0
      %v359 = vadd.f32 0.0, %v358
      %v360 = vpop.f32.mrf.mxu0
      %361 = vmatprep.mubr.bf16.mxu0 %v212
      %362 = vmatmul.mubr.bf16.gmra.mxu0 %v211
      %v363 = vpop.f32.mrf.mxu0
      %v364 = vadd.f32 0.0, %v363
      %v365 = vpop.f32.mrf.mxu0
      %v366 = vpop.f32.mrf.mxu0
      %v367 = vadd.f32 0.0, %v366
      %v368 = vpop.f32.mrf.mxu0
      %369 = vmatprep.mubr.bf16.mxu0 %v214
      %370 = vmatmul.mubr.bf16.gmra.mxu0 %v213
      %v371 = vpop.f32.mrf.mxu0
      %v372 = vadd.f32 0.0, %v371
      %v373 = vpop.f32.mrf.mxu0
      %v374 = vpop.f32.mrf.mxu0
      %v375 = vadd.f32 0.0, %v374
      %v376 = vpop.f32.mrf.mxu0
      %377 = vmatprep.mubr.bf16.mxu0 %v216
      %378 = vmatmul.mubr.bf16.gmra.mxu0 %v215
      %v379 = vpop.f32.mrf.mxu0
      %v380 = vadd.f32 0.0, %v379
      %v381 = vpop.f32.mrf.mxu0
      %v382 = vpop.f32.mrf.mxu0
      %v383 = vadd.f32 0.0, %v382
      %v384 = vpop.f32.mrf.mxu0
      %385 = vdwg.mxu0
      %v386 = vmax.f32 %v356, 0.0
      %v387 = vmax.f32 %v359, 0.0
      %v388 = vmax.f32 %v364, 0.0
      %v389 = vmax.f32 %v367, 0.0
      %v390 = vmax.f32 %v372, 0.0
      %v391 = vmax.f32 %v375, 0.0
      %v392 = vmax.f32 %v380, 0.0
      %v393 = vmax.f32 %v383, 0.0
      %vm394 = vcmask 261120
      %395 = vst.msk [vmem:[#allocation2] sm:$0xff] %vm394, 0.0
      %vm396 = vcmask 254976
      %397 = vst.msk [vmem:[#allocation2 + $0x8] sm:$0x3] %vm396, 0.0
      %398 = vst.msk [vmem:[#allocation2 + $0x10] sm:$0xff] %vm394, 0.0
      %399 = vst.msk [vmem:[#allocation2 + $0x18] sm:$0x3] %vm396, 0.0
      %400 = vst.msk [vmem:[#allocation2 + $0x20] sm:$0xff] %vm394, 0.0
      %401 = vst.msk [vmem:[#allocation2 + $0x28] sm:$0x3] %vm396, 0.0
      %402 = vst.msk [vmem:[#allocation2 + $0x30] sm:$0xff] %vm394, 0.0
      %403 = vst.msk [vmem:[#allocation2 + $0x38] sm:$0x3] %vm396, 0.0
      %404 = vst.msk [vmem:[#allocation2 + $0x40] sm:$0xff] %vm394, 0.0
      %405 = vst.msk [vmem:[#allocation2 + $0x48] sm:$0x3] %vm396, 0.0
      %406 = vst.msk [vmem:[#allocation2 + $0x50] sm:$0xff] %vm394, 0.0
      %407 = vst.msk [vmem:[#allocation2 + $0x58] sm:$0x3] %vm396, 0.0
      %408 = vst.msk [vmem:[#allocation2 + $0x60] sm:$0xff] %vm394, 0.0
      %409 = vst.msk [vmem:[#allocation2 + $0x68] sm:$0x3] %vm396, 0.0
      %410 = vst.msk [vmem:[#allocation2 + $0x70] sm:$0xff] %vm394, 0.0
      %411 = vst.msk [vmem:[#allocation2 + $0x78] sm:$0x3] %vm396, 0.0
      %412 = vst.msk [vmem:[#allocation2 + $0x80] sm:$0xff] %vm394, 0.0
      %413 = vst.msk [vmem:[#allocation2 + $0x88] sm:$0x3] %vm396, 0.0
      %414 = vst.msk [vmem:[#allocation2 + $0x90] sm:$0xff] %vm394, 0.0
      %415 = vst.msk [vmem:[#allocation2 + $0x98] sm:$0x3] %vm396, 0.0
      %s416 = scalar_lea.vmem [#allocation2], 16
      %417 = vst.msk [vmem:[%s416 + $0x1] sm:$0xff] %vm394, %v386
      %418 = vst.msk [vmem:[%s416 + $0x11] sm:$0xff] %vm394, %v387
      %419 = vst.msk [vmem:[%s416 + $0x21] sm:$0xff] %vm394, %v388
      %420 = vst.msk [vmem:[%s416 + $0x31] sm:$0xff] %vm394, %v389
      %421 = vst.msk [vmem:[%s416 + $0x41] sm:$0xff] %vm394, %v390
      %422 = vst.msk [vmem:[%s416 + $0x51] sm:$0xff] %vm394, %v391
      %423 = vst.msk [vmem:[%s416 + $0x61] sm:$0xff] %vm394, %v392
      %424 = vst.msk [vmem:[%s416 + $0x71] sm:$0xff] %vm394, %v393
      %v425 = vld [vmem:[#allocation2] ss:$2 sm:$0xf]
      %s426 = scalar_lea.vmem [#allocation2], 16
      %v427 = vld [vmem:[%s426] ss:$2 sm:$0xf]
      %s428 = scalar_lea.vmem [#allocation2], 32
      %v429 = vld [vmem:[%s428] ss:$2 sm:$0xf]
      %s430 = scalar_lea.vmem [#allocation2], 48
      %v431 = vld [vmem:[%s430] ss:$2 sm:$0xf]
      %s432 = scalar_lea.vmem [#allocation2], 64
      %v433 = vld [vmem:[%s432] ss:$2 sm:$0xf]
      %s434 = scalar_lea.vmem [#allocation2], 80
      %v435 = vld [vmem:[%s434] ss:$2 sm:$0xf]
      %s436 = scalar_lea.vmem [#allocation2], 96
      %v437 = vld [vmem:[%s436] ss:$2 sm:$0xf]
      %s438 = scalar_lea.vmem [#allocation2], 112
      %v439 = vld [vmem:[%s438] ss:$2 sm:$0xf]
      %s440 = scalar_lea.vmem [#allocation2], 128
      %v441 = vld [vmem:[%s440] ss:$2 sm:$0xf]
      %s442 = scalar_lea.vmem [#allocation2], 1
      %v443 = vld [vmem:[%s442] ss:$2 sm:$0xf]
      %s444 = scalar_lea.vmem [#allocation2], 17
      %v445 = vld [vmem:[%s444] ss:$2 sm:$0xf]
      %s446 = scalar_lea.vmem [#allocation2], 33
      %v447 = vld [vmem:[%s446] ss:$2 sm:$0xf]
      %s448 = scalar_lea.vmem [#allocation2], 49
      %v449 = vld [vmem:[%s448] ss:$2 sm:$0xf]
      %s450 = scalar_lea.vmem [#allocation2], 65
      %v451 = vld [vmem:[%s450] ss:$2 sm:$0xf]
      %s452 = scalar_lea.vmem [#allocation2], 81
      %v453 = vld [vmem:[%s452] ss:$2 sm:$0xf]
      %s454 = scalar_lea.vmem [#allocation2], 97
      %v455 = vld [vmem:[%s454] ss:$2 sm:$0xf]
      %s456 = scalar_lea.vmem [#allocation2], 113
      %v457 = vld [vmem:[%s456] ss:$2 sm:$0xf]
      %s458 = scalar_lea.vmem [#allocation2], 129
      %v459 = vld [vmem:[%s458] ss:$2 sm:$0xf]
      %v460 = vmax.f32 %v425, %v443
      %v461 = vmax.f32 %v427, %v445
      %v462 = vmax.f32 %v429, %v447
      %v463 = vmax.f32 %v431, %v449
      %v464 = vmax.f32 %v433, %v451
      %v465 = vmax.f32 %v435, %v453
      %v466 = vmax.f32 %v437, %v455
      %v467 = vmax.f32 %v439, %v457
      %v468 = vmax.f32 %v441, %v459
      %s469 = scalar_lea.vmem [#allocation2], 2
      %v470 = vld [vmem:[%s469] ss:$2 sm:$0xf]
      %s471 = scalar_lea.vmem [#allocation2], 18
      %v472 = vld [vmem:[%s471] ss:$2 sm:$0xf]
      %s473 = scalar_lea.vmem [#allocation2], 34
      %v474 = vld [vmem:[%s473] ss:$2 sm:$0xf]
      %s475 = scalar_lea.vmem [#allocation2], 50
      %v476 = vld [vmem:[%s475] ss:$2 sm:$0xf]
      %s477 = scalar_lea.vmem [#allocation2], 66
      %v478 = vld [vmem:[%s477] ss:$2 sm:$0xf]
      %s479 = scalar_lea.vmem [#allocation2], 82
      %v480 = vld [vmem:[%s479] ss:$2 sm:$0xf]
      %s481 = scalar_lea.vmem [#allocation2], 98
      %v482 = vld [vmem:[%s481] ss:$2 sm:$0xf]
      %s483 = scalar_lea.vmem [#allocation2], 114
      %v484 = vld [vmem:[%s483] ss:$2 sm:$0xf]
      %s485 = scalar_lea.vmem [#allocation2], 130
      %v486 = vld [vmem:[%s485] ss:$2 sm:$0xf]
      %v487 = vmax.f32 %v460, %v470
      %v488 = vmax.f32 %v461, %v472
      %v489 = vmax.f32 %v462, %v474
      %v490 = vmax.f32 %v463, %v476
      %v491 = vmax.f32 %v464, %v478
      %v492 = vmax.f32 %v465, %v480
      %v493 = vmax.f32 %v466, %v482
      %v494 = vmax.f32 %v467, %v484
      %v495 = vmax.f32 %v468, %v486
      %v496 = vmax.f32 %v487, %v488
      %v497 = vmax.f32 %v496, %v489
      %vm498 = vcmask 257024
      %499 = vst.msk [vmem:[%s143] sm:$0xf] %vm498, %v497
      %v500 = vmax.f32 %v489, %v490
      %v501 = vmax.f32 %v500, %v491
      %s502 = scalar_lea.vmem %s143, 4
      %503 = vst.msk [vmem:[%s502] sm:$0xf] %vm498, %v501
      %v504 = vmax.f32 %v491, %v492
      %v505 = vmax.f32 %v504, %v493
      %s506 = scalar_lea.vmem %s143, 8
      %507 = vst.msk [vmem:[%s506] sm:$0xf] %vm498, %v505
      %v508 = vmax.f32 %v493, %v494
      %v509 = vmax.f32 %v508, %v495
      %s510 = scalar_lea.vmem %s143, 12
      %511 = vst.msk [vmem:[%s510] sm:$0xf] %vm498, %v509
      %p512 = scmp.lt.s32.totalorder %s13, 3
      %s513 = scalar_select %p512, %s13, 3
      %s514 = smul.addr %s513, 4
      %s515 = smul.addr %s514, 4
      %s516 = scalar_lea.vmem %s2, %s515
      // Predicated region
      $region29: #{cct_forward.2} parent=27 // pred_check
        %p517 = pneg %p78
      $region30: #{cct_forward.2} parent=27 // pred_check_branch
        %519 = sbr.rel (%p517) target = $region32
      $region31: #{cct_forward.2} parent=27 // pred_region
        _
      $region32: #{cct_forward.2} parent=27 // pred_fallthru
        _
    $region28: #{cct_forward.2} parent=5 // pred_fallthru
      _
    %p520 = scmp.le.s32.totalorder 2, %s8
    // Predicated region
    $region33: #{cct_forward.2} parent=5 // pred_check
      %p521 = pneg %p520
    $region34: #{cct_forward.2} parent=5 // pred_check_branch
      %523 = sbr.rel (%p521) target = $region36
    $region35: #{cct_forward.2} parent=5 // pred_region
      %s524 = ssub.s32 %s8, 2
      // Predicated region
      $region37: #{cct_forward.2} parent=35 // pred_check
        %p525 = pneg %p84
      $region38: #{cct_forward.2} parent=35 // pred_check_branch
        %527 = sbr.rel (%p525) target = $region40
      $region39: #{cct_forward.2} parent=35 // pred_region
        %p528 = scmp.lt.s32.totalorder %s14, 3
        %s529 = scalar_select %p528, %s14, 3
        %s530 = smul.addr %s529, 4
        %s531 = smul.addr %s530, 4
        %s532 = scalar_lea.vmem %s2, %s531
      $region40: #{cct_forward.2} parent=35 // pred_fallthru
        _
    $region36: #{cct_forward.2} parent=5 // pred_fallthru
      _
  $region6: #{cct_forward.2} parent=0 // loop_footer
    %s12 = sadd.s32 1, %s8
  $region7: #{cct_forward.2} parent=0 // loop_footer_branch
    %7 = sbr.rel target = $region3
  $region8: #{cct_forward.2} parent=0 // loop_exit
    _

// kernel: cct_forward.3
$region0: #{cct_forward.3}
  #allocation0 [shape = 'u32[]', space=smem, size = 0x4, offset = 0x4, fixed_abs, tag = 'smem constant byte address 0x4 - core index']
  #allocation1 [shape = 'u32[144,128]{1,0:T(1,128)}', space=vmem, size = 0x12000, scoped, tag = 'internal scratch']
  #allocation2 [shape = 'f32[32,32]{1,0:T(8,128)}', space=vmem, size = 0x4000, scoped, tag = 'scratch operand']
  %s0 = inlined_call_operand.vmem [shape: f32[4,16,32], index: 0, kind: input, shape index: {}]
  %s1 = inlined_call_operand.vmem [shape: f32[1,16,32], index: 1, kind: input, shape index: {}]
  %s2 = inlined_call_operand.vmem [shape: f32[3,8,128], index: 2, kind: input, shape index: {}]
  %s3 = inlined_call_operand.vmem [shape: bf16[3,32,96], index: 3, kind: input, shape index: {}]
  %s4 = inlined_call_operand.vmem [shape: bf16[3,4,8,32], index: 4, kind: input, shape index: {}]
  %s5 = inlined_call_operand.vmem [shape: bf16[3,32,128], index: 5, kind: input, shape index: {}]
  %s6 = inlined_call_operand.vmem [shape: bf16[3,128,32], index: 6, kind: input, shape index: {}]
  %s7 = inlined_call_operand.vmem [shape: f32[2,32], index: 7, kind: input, shape index: {}]
  %s8 = inlined_call_operand.vmem [shape: bf16[32,128], index: 8, kind: input, shape index: {}]
  %s9 = inlined_call_operand.vmem [shape: f32[1,128], index: 9, kind: input, shape index: {}]
  %s10 = inlined_call_operand.hbm [shape: f32[2,2,128], index: 10, kind: output, shape index: {}]
  %s11 = sld [smem:[#allocation0]]
  $region81: #{cct_forward.3} parent=0
    _
  %s13 = ssub.s32 1, %s11
  %s14 = scalar_select 0, %s13, %s11
  $region1: #{cct_forward.3} parent=0
    #allocation3 [shape = 'u8[2048]{0}', space=vmem, size = 0x800, scoped, tag = 'output window, operand 0']
    #allocation4 [shape = 's32[2]{0}', space=sflag, size = 0x8, scoped, tag = 'scoped memory for cct_forward.3']
    %15 = vsyncpa [#allocation4], 0
    %s16 = scalar_lea.sflag [#allocation4], 1
    %17 = vsyncpa %s16, 0
    loop: start=0, step=1, limit=8
    $region2: #{cct_forward.3} parent=1 // loop_pre_header
      _
    $region3: #{cct_forward.3} parent=1 // loop_header
      %s19 = sphi 0, %s23
      %p20 = scmp.ge.s32.totalorder %s19, 8
      %s26 = sphi 0, %s38
      %s27 = sphi 0, %s34
      %s28 = sphi 0, %s26
      %s29 = sphi 0, %s27
      %s30 = sphi 0, %s28
      %s31 = sphi 0, %s29
      %s41 = sphi 0, %s43
      %s44 = sphi 0, %s41
      %s45 = sphi 0, %s44
      %s61 = sphi 0, %s45
      %s65 = sphi 0, %s65
      %s67 = sphi 0, %s65
      %s68 = sphi 0, %s67
      %s82 = sphi 0, %s68
      %s88 = sphi 0, %s90
      %s91 = sphi 0, %s88
      %s92 = sphi 0, %s91
      %s108 = sphi 0, %s92
      %s114 = sphi 0, %s116
      %s117 = sphi 0, %s114
      %s118 = sphi 0, %s117
      %s134 = sphi 0, %s118
      %s140 = sphi 0, %s142
      %s143 = sphi 0, %s140
      %s144 = sphi 0, %s143
      %s160 = sphi 0, %s144
      %s166 = sphi 0, %s168
      %s169 = sphi 0, %s166
      %s170 = sphi 0, %s169
      %s186 = sphi 0, %s170
      %s192 = sphi 0, %s194
      %s195 = sphi 0, %s192
      %s196 = sphi 0, %s195
      %s212 = sphi 0, %s196
      %s216 = sphi 0, %s216
      %s218 = sphi 0, %s216
      %s219 = sphi 0, %s218
      %s233 = sphi 0, %s219
      %s237 = sphi 0, %s237
      %s239 = sphi 0, %s237
      %s240 = sphi 0, %s239
      %s254 = sphi 0, %s240
      %s258 = sphi 0, %s258
      %s260 = sphi 0, %s258
      %s261 = sphi 0, %s260
      %s275 = sphi 0, %s261
      %s281 = sphi 0, %s283
      %s284 = sphi 0, %s281
      %s285 = sphi 0, %s284
      %s301 = sphi 0, %s285
    $region4: #{cct_forward.3} parent=1 // loop_header_branch
      %22 = sbr.rel (%p20) target = $region8
    $region5: #{cct_forward.3} parent=1 // loop_body
      %s24 = ssub.s32 %s19, 1
      %s25 = ssub.s32 %s19, 2
      %s32 = sadd.s32 1, %s27
      %p33 = scmp.ge.s32.totalorder %s32, 3
      %s34 = scalar_select %p33, 0, %s32
      %s35 = sadd.s32 1, %s26
      %s36 = scalar_select %p33, %s35, %s26
      %p37 = scmp.ge.s32.totalorder %s36, 2
      %s38 = scalar_select %p37, 0, %s36
      %s39 = ssub.s32 %s26, %s38
      %p40 = scmp.eq.s32.totalorder %s39, 0
      %s42 = sadd.s32 %s41, 1
      %s43 = scalar_select %p40, %s41, %s42
      %p46 = pneg %p40
      %p47 = scmp.eq.s32.totalorder %s19, 5
      %p48 = por %p46, %p47
      %p49 = scmp.ne.s32.totalorder %s41, %s44
      %p50 = scmp.eq.s32.totalorder %s19, 0
      %p51 = por %p49, %p50
      %p52 = scmp.ne.s32.totalorder %s41, %s44
      %p53 = scmp.eq.s32.totalorder %s24, 5
      %p54 = por %p52, %p53
      %p55 = scmp.ne.s32.totalorder %s44, %s45
      %p56 = scmp.eq.s32.totalorder %s24, 0
      %p57 = por %p55, %p56
      %p58 = scmp.ne.s32.totalorder %s44, %s45
      %p59 = scmp.eq.s32.totalorder %s25, 5
      %p60 = por %p58, %p59
      %p62 = scmp.ne.s32.totalorder %s45, %s61
      %p63 = scmp.eq.s32.totalorder %s25, 0
      %p64 = por %p62, %p63
      %s66 = sadd.s32 %s65, 1
      %p69 = scmp.eq.s32.totalorder %s19, 5
      %p70 = scmp.ne.s32.totalorder %s65, %s67
      %p71 = scmp.eq.s32.totalorder %s19, 0
      %p72 = por %p70, %p71
      %p73 = scmp.ne.s32.totalorder %s65, %s67
      %p74 = scmp.eq.s32.totalorder %s24, 5
      %p75 = por %p73, %p74
      %p76 = scmp.ne.s32.totalorder %s67, %s68
      %p77 = scmp.eq.s32.totalorder %s24, 0
      %p78 = por %p76, %p77
      %p79 = scmp.ne.s32.totalorder %s67, %s68
      %p80 = scmp.eq.s32.totalorder %s25, 5
      %p81 = por %p79, %p80
      %p83 = scmp.ne.s32.totalorder %s68, %s82
      %p84 = scmp.eq.s32.totalorder %s25, 0
      %p85 = por %p83, %p84
      %s86 = ssub.s32 %s27, %s34
      %p87 = scmp.eq.s32.totalorder %s86, 0
      %s89 = sadd.s32 %s88, 1
      %s90 = scalar_select %p87, %s88, %s89
      %p93 = pneg %p87
      %p94 = scmp.eq.s32.totalorder %s19, 5
      %p95 = por %p93, %p94
      %p96 = scmp.ne.s32.totalorder %s88, %s91
      %p97 = scmp.eq.s32.totalorder %s19, 0
      %p98 = por %p96, %p97
      %p99 = scmp.ne.s32.totalorder %s88, %s91
      %p100 = scmp.eq.s32.totalorder %s24, 5
      %p101 = por %p99, %p100
      %p102 = scmp.ne.s32.totalorder %s91, %s92
      %p103 = scmp.eq.s32.totalorder %s24, 0
      %p104 = por %p102, %p103
      %p105 = scmp.ne.s32.totalorder %s91, %s92
      %p106 = scmp.eq.s32.totalorder %s25, 5
      %p107 = por %p105, %p106
      %p109 = scmp.ne.s32.totalorder %s92, %s108
      %p110 = scmp.eq.s32.totalorder %s25, 0
      %p111 = por %p109, %p110
      %s112 = ssub.s32 %s27, %s34
      %p113 = scmp.eq.s32.totalorder %s112, 0
      %s115 = sadd.s32 %s114, 1
      %s116 = scalar_select %p113, %s114, %s115
      %p119 = pneg %p113
      %p120 = scmp.eq.s32.totalorder %s19, 5
      %p121 = por %p119, %p120
      %p122 = scmp.ne.s32.totalorder %s114, %s117
      %p123 = scmp.eq.s32.totalorder %s19, 0
      %p124 = por %p122, %p123
      %p125 = scmp.ne.s32.totalorder %s114, %s117
      %p126 = scmp.eq.s32.totalorder %s24, 5
      %p127 = por %p125, %p126
      %p128 = scmp.ne.s32.totalorder %s117, %s118
      %p129 = scmp.eq.s32.totalorder %s24, 0
      %p130 = por %p128, %p129
      %p131 = scmp.ne.s32.totalorder %s117, %s118
      %p132 = scmp.eq.s32.totalorder %s25, 5
      %p133 = por %p131, %p132
      %p135 = scmp.ne.s32.totalorder %s118, %s134
      %p136 = scmp.eq.s32.totalorder %s25, 0
      %p137 = por %p135, %p136
      %s138 = ssub.s32 %s27, %s34
      %p139 = scmp.eq.s32.totalorder %s138, 0
      %s141 = sadd.s32 %s140, 1
      %s142 = scalar_select %p139, %s140, %s141
      %p145 = pneg %p139
      %p146 = scmp.eq.s32.totalorder %s19, 5
      %p147 = por %p145, %p146
      %p148 = scmp.ne.s32.totalorder %s140, %s143
      %p149 = scmp.eq.s32.totalorder %s19, 0
      %p150 = por %p148, %p149
      %p151 = scmp.ne.s32.totalorder %s140, %s143
      %p152 = scmp.eq.s32.totalorder %s24, 5
      %p153 = por %p151, %p152
      %p154 = scmp.ne.s32.totalorder %s143, %s144
      %p155 = scmp.eq.s32.totalorder %s24, 0
      %p156 = por %p154, %p155
      %p157 = scmp.ne.s32.totalorder %s143, %s144
      %p158 = scmp.eq.s32.totalorder %s25, 5
      %p159 = por %p157, %p158
      %p161 = scmp.ne.s32.totalorder %s144, %s160
      %p162 = scmp.eq.s32.totalorder %s25, 0
      %p163 = por %p161, %p162
      %s164 = ssub.s32 %s27, %s34
      %p165 = scmp.eq.s32.totalorder %s164, 0
      %s167 = sadd.s32 %s166, 1
      %s168 = scalar_select %p165, %s166, %s167
      %p171 = pneg %p165
      %p172 = scmp.eq.s32.totalorder %s19, 5
      %p173 = por %p171, %p172
      %p174 = scmp.ne.s32.totalorder %s166, %s169
      %p175 = scmp.eq.s32.totalorder %s19, 0
      %p176 = por %p174, %p175
      %p177 = scmp.ne.s32.totalorder %s166, %s169
      %p178 = scmp.eq.s32.totalorder %s24, 5
      %p179 = por %p177, %p178
      %p180 = scmp.ne.s32.totalorder %s169, %s170
      %p181 = scmp.eq.s32.totalorder %s24, 0
      %p182 = por %p180, %p181
      %p183 = scmp.ne.s32.totalorder %s169, %s170
      %p184 = scmp.eq.s32.totalorder %s25, 5
      %p185 = por %p183, %p184
      %p187 = scmp.ne.s32.totalorder %s170, %s186
      %p188 = scmp.eq.s32.totalorder %s25, 0
      %p189 = por %p187, %p188
      %s190 = ssub.s32 %s27, %s34
      %p191 = scmp.eq.s32.totalorder %s190, 0
      %s193 = sadd.s32 %s192, 1
      %s194 = scalar_select %p191, %s192, %s193
      %p197 = pneg %p191
      %p198 = scmp.eq.s32.totalorder %s19, 5
      %p199 = por %p197, %p198
      %p200 = scmp.ne.s32.totalorder %s192, %s195
      %p201 = scmp.eq.s32.totalorder %s19, 0
      %p202 = por %p200, %p201
      %p203 = scmp.ne.s32.totalorder %s192, %s195
      %p204 = scmp.eq.s32.totalorder %s24, 5
      %p205 = por %p203, %p204
      %p206 = scmp.ne.s32.totalorder %s195, %s196
      %p207 = scmp.eq.s32.totalorder %s24, 0
      %p208 = por %p206, %p207
      %p209 = scmp.ne.s32.totalorder %s195, %s196
      %p210 = scmp.eq.s32.totalorder %s25, 5
      %p211 = por %p209, %p210
      %p213 = scmp.ne.s32.totalorder %s196, %s212
      %p214 = scmp.eq.s32.totalorder %s25, 0
      %p215 = por %p213, %p214
      %s217 = sadd.s32 %s216, 1
      %p220 = scmp.eq.s32.totalorder %s19, 5
      %p221 = scmp.ne.s32.totalorder %s216, %s218
      %p222 = scmp.eq.s32.totalorder %s19, 0
      %p223 = por %p221, %p222
      %p224 = scmp.ne.s32.totalorder %s216, %s218
      %p225 = scmp.eq.s32.totalorder %s24, 5
      %p226 = por %p224, %p225
      %p227 = scmp.ne.s32.totalorder %s218, %s219
      %p228 = scmp.eq.s32.totalorder %s24, 0
      %p229 = por %p227, %p228
      %p230 = scmp.ne.s32.totalorder %s218, %s219
      %p231 = scmp.eq.s32.totalorder %s25, 5
      %p232 = por %p230, %p231
      %p234 = scmp.ne.s32.totalorder %s219, %s233
      %p235 = scmp.eq.s32.totalorder %s25, 0
      %p236 = por %p234, %p235
      %s238 = sadd.s32 %s237, 1
      %p241 = scmp.eq.s32.totalorder %s19, 5
      %p242 = scmp.ne.s32.totalorder %s237, %s239
      %p243 = scmp.eq.s32.totalorder %s19, 0
      %p244 = por %p242, %p243
      %p245 = scmp.ne.s32.totalorder %s237, %s239
      %p246 = scmp.eq.s32.totalorder %s24, 5
      %p247 = por %p245, %p246
      %p248 = scmp.ne.s32.totalorder %s239, %s240
      %p249 = scmp.eq.s32.totalorder %s24, 0
      %p250 = por %p248, %p249
      %p251 = scmp.ne.s32.totalorder %s239, %s240
      %p252 = scmp.eq.s32.totalorder %s25, 5
      %p253 = por %p251, %p252
      %p255 = scmp.ne.s32.totalorder %s240, %s254
      %p256 = scmp.eq.s32.totalorder %s25, 0
      %p257 = por %p255, %p256
      %s259 = sadd.s32 %s258, 1
      %p262 = scmp.eq.s32.totalorder %s19, 5
      %p263 = scmp.ne.s32.totalorder %s258, %s260
      %p264 = scmp.eq.s32.totalorder %s19, 0
      %p265 = por %p263, %p264
      %p266 = scmp.ne.s32.totalorder %s258, %s260
      %p267 = scmp.eq.s32.totalorder %s24, 5
      %p268 = por %p266, %p267
      %p269 = scmp.ne.s32.totalorder %s260, %s261
      %p270 = scmp.eq.s32.totalorder %s24, 0
      %p271 = por %p269, %p270
      %p272 = scmp.ne.s32.totalorder %s260, %s261
      %p273 = scmp.eq.s32.totalorder %s25, 5
      %p274 = por %p272, %p273
      %p276 = scmp.ne.s32.totalorder %s261, %s275
      %p277 = scmp.eq.s32.totalorder %s25, 0
      %p278 = por %p276, %p277
      %s279 = ssub.s32 %s26, %s38
      %p280 = scmp.eq.s32.totalorder %s279, 0
      %s282 = sadd.s32 %s281, 1
      %s283 = scalar_select %p280, %s281, %s282
      %p286 = pneg %p280
      %p287 = scmp.eq.s32.totalorder %s19, 5
      %p288 = por %p286, %p287
      %p289 = scmp.ne.s32.totalorder %s281, %s284
      %p290 = scmp.eq.s32.totalorder %s19, 0
      %p291 = por %p289, %p290
      %p292 = scmp.ne.s32.totalorder %s281, %s284
      %p293 = scmp.eq.s32.totalorder %s24, 5
      %p294 = por %p292, %p293
      %p295 = scmp.ne.s32.totalorder %s284, %s285
      %p296 = scmp.eq.s32.totalorder %s24, 0
      %p297 = por %p295, %p296
      %p298 = scmp.ne.s32.totalorder %s284, %s285
      %p299 = scmp.eq.s32.totalorder %s25, 5
      %p300 = por %p298, %p299
      %p302 = scmp.ne.s32.totalorder %s285, %s301
      %p303 = scmp.eq.s32.totalorder %s25, 0
      %p304 = por %p302, %p303
      %p305 = scmp.le.s32.totalorder 1, %s19
      %p306 = scmp.lt.s32.totalorder %s19, 7
      %p307 = pnand %p305, %p306
      %p308 = pneg %p307
      // Predicated region
      $region9: #{cct_forward.3} parent=5 // pred_check
        _
      $region10: #{cct_forward.3} parent=5 // pred_check_branch
        %310 = sbr.rel (%p307) target = $region12
      $region11: #{cct_forward.3} parent=5 // pred_region
        %s311 = ssub.s32 %s19, 1
        // Predicated region
        $region13: #{cct_forward.3} parent=11 // pred_check
          %p312 = pneg %p78
        $region14: #{cct_forward.3} parent=11 // pred_check_branch
          %314 = sbr.rel (%p312) target = $region16
        $region15: #{cct_forward.3} parent=11 // pred_region
          _
        $region16: #{cct_forward.3} parent=11 // pred_fallthru
          _
        // Predicated region
        $region17: #{cct_forward.3} parent=11 // pred_check
          %p315 = pneg %p229
        $region18: #{cct_forward.3} parent=11 // pred_check_branch
          %317 = sbr.rel (%p315) target = $region20
        $region19: #{cct_forward.3} parent=11 // pred_region
          _
        $region20: #{cct_forward.3} parent=11 // pred_fallthru
          _
        // Predicated region
        $region21: #{cct_forward.3} parent=11 // pred_check
          %p318 = pneg %p250
        $region22: #{cct_forward.3} parent=11 // pred_check_branch
          %320 = sbr.rel (%p318) target = $region24
        $region23: #{cct_forward.3} parent=11 // pred_region
          _
        $region24: #{cct_forward.3} parent=11 // pred_fallthru
          _
        // Predicated region
        $region25: #{cct_forward.3} parent=11 // pred_check
          %p321 = pneg %p271
        $region26: #{cct_forward.3} parent=11 // pred_check_branch
          %323 = sbr.rel (%p321) target = $region28
        $region27: #{cct_forward.3} parent=11 // pred_region
          _
        $region28: #{cct_forward.3} parent=11 // pred_fallthru
          _
      $region12: #{cct_forward.3} parent=5 // pred_fallthru
        _
      %p324 = scmp.lt.s32.totalorder %s19, 6
      // Predicated region
      $region29: #{cct_forward.3} parent=5 // pred_check
        %p325 = pneg %p324
      $region30: #{cct_forward.3} parent=5 // pred_check_branch
        %327 = sbr.rel (%p325) target = $region32
      $region31: #{cct_forward.3} parent=5 // pred_region
        // Predicated region
        $region33: #{cct_forward.3} parent=31 // pred_check
          %p328 = pneg %p51
        $region34: #{cct_forward.3} parent=31 // pred_check_branch
          %330 = sbr.rel (%p328) target = $region36
        $region35: #{cct_forward.3} parent=31 // pred_region
          %s331 = smul.u32 2, %s26
          %p332 = scmp.lt.s32.totalorder %s331, 3
          %s333 = scalar_select %p332, %s331, 3
          %s334 = smul.addr %s333, 2
          %s335 = smul.addr %s334, 8
          %s336 = scalar_lea.vmem %s0, %s335
          %s337 = smul.u32 2, %s26
        $region36: #{cct_forward.3} parent=31 // pred_fallthru
          _
        // Predicated region
        $region37: #{cct_forward.3} parent=31 // pred_check
          %p338 = pneg %p98
        $region38: #{cct_forward.3} parent=31 // pred_check_branch
          %340 = sbr.rel (%p338) target = $region40
        $region39: #{cct_forward.3} parent=31 // pred_region
          %p341 = scmp.lt.s32.totalorder %s27, 2
          %s342 = scalar_select %p341, %s27, 2
          %s343 = smul.addr %s342, 8
          %s344 = scalar_lea.vmem %s2, %s343
        $region40: #{cct_forward.3} parent=31 // pred_fallthru
          _
        // Predicated region
        $region41: #{cct_forward.3} parent=31 // pred_check
          %p345 = pneg %p124
        $region42: #{cct_forward.3} parent=31 // pred_check_branch
          %347 = sbr.rel (%p345) target = $region44
        $region43: #{cct_forward.3} parent=31 // pred_region
          %p348 = scmp.lt.s32.totalorder %s27, 2
          %s349 = scalar_select %p348, %s27, 2
          %s350 = smul.addr %s349, 4
          %s351 = smul.addr %s350, 4
          %s352 = scalar_lea.vmem %s3, %s351
        $region44: #{cct_forward.3} parent=31 // pred_fallthru
          _
        // Predicated region
        $region45: #{cct_forward.3} parent=31 // pred_check
          %p353 = pneg %p150
        $region46: #{cct_forward.3} parent=31 // pred_check_branch
          %355 = sbr.rel (%p353) target = $region48
        $region47: #{cct_forward.3} parent=31 // pred_region
          %p356 = scmp.lt.s32.totalorder %s27, 2
          %s357 = scalar_select %p356, %s27, 2
          %s358 = smul.addr %s357, 4
          %s359 = smul.addr %s358, 4
          %s360 = scalar_lea.vmem %s4, %s359
        $region48: #{cct_forward.3} parent=31 // pred_fallthru
          _
        // Predicated region
        $region49: #{cct_forward.3} parent=31 // pred_check
          %p361 = pneg %p176
        $region50: #{cct_forward.3} parent=31 // pred_check_branch
          %363 = sbr.rel (%p361) target = $region52
        $region51: #{cct_forward.3} parent=31 // pred_region
          %p364 = scmp.lt.s32.totalorder %s27, 2
          %s365 = scalar_select %p364, %s27, 2
          %s366 = smul.addr %s365, 4
          %s367 = smul.addr %s366, 4
          %s368 = scalar_lea.vmem %s5, %s367
        $region52: #{cct_forward.3} parent=31 // pred_fallthru
          _
        // Predicated region
        $region53: #{cct_forward.3} parent=31 // pred_check
          %p369 = pneg %p202
        $region54: #{cct_forward.3} parent=31 // pred_check_branch
          %371 = sbr.rel (%p369) target = $region56
        $region55: #{cct_forward.3} parent=31 // pred_region
          %p372 = scmp.lt.s32.totalorder %s27, 2
          %s373 = scalar_select %p372, %s27, 2
          %s374 = smul.addr %s373, 16
          %s375 = smul.addr %s374, 4
          %s376 = scalar_lea.vmem %s6, %s375
        $region56: #{cct_forward.3} parent=31 // pred_fallthru
          _
      $region32: #{cct_forward.3} parent=5 // pred_fallthru
        _
      %p377 = scmp.le.s32.totalorder 1, %s19
      %p378 = scmp.lt.s32.totalorder %s19, 7
      %p379 = pnand %p377, %p378
      %p380 = pneg %p379
      // Predicated region
      $region57: #{cct_forward.3} parent=5 // pred_check
        _
      $region58: #{cct_forward.3} parent=5 // pred_check_branch
        %382 = sbr.rel (%p379) target = $region60
      $region59: #{cct_forward.3} parent=5 // pred_region
        %s383 = ssub.s32 %s19, 1
        %s384 = smul.u32 2, %s28
        %p385 = scmp.lt.s32.totalorder %s384, 3
        %s386 = scalar_select %p385, %s384, 3
        %s387 = smul.addr %s386, 2
        %s388 = smul.addr %s387, 8
        %s389 = scalar_lea.vmem %s0, %s388
        %p390 = pneg %p57
        %p391 = pneg %p54
        %p392 = pneg %p78
        %p393 = pneg %p75
        %p394 = scmp.lt.s32.totalorder %s29, 2
        %s395 = scalar_select %p394, %s29, 2
        %s396 = smul.addr %s395, 8
        %s397 = scalar_lea.vmem %s2, %s396
        %p398 = pneg %p104
        %p399 = pneg %p101
        %p400 = scmp.lt.s32.totalorder %s29, 2
        %s401 = scalar_select %p400, %s29, 2
        %s402 = smul.addr %s401, 4
        %s403 = smul.addr %s402, 4
        %s404 = scalar_lea.vmem %s3, %s403
        %p405 = pneg %p130
        %p406 = pneg %p127
        %p407 = scmp.lt.s32.totalorder %s29, 2
        %s408 = scalar_select %p407, %s29, 2
        %s409 = smul.addr %s408, 4
        %s410 = smul.addr %s409, 4
        %s411 = scalar_lea.vmem %s4, %s410
        %p412 = pneg %p156
        %p413 = pneg %p153
        %p414 = scmp.lt.s32.totalorder %s29, 2
        %s415 = scalar_select %p414, %s29, 2
        %s416 = smul.addr %s415, 4
        %s417 = smul.addr %s416, 4
        %s418 = scalar_lea.vmem %s5, %s417
        %p419 = pneg %p182
        %p420 = pneg %p179
        %p421 = scmp.lt.s32.totalorder %s29, 2
        %s422 = scalar_select %p421, %s29, 2
        %s423 = smul.addr %s422, 16
        %s424 = smul.addr %s423, 4
        %s425 = scalar_lea.vmem %s6, %s424
        %p426 = pneg %p208
        %p427 = pneg %p205
        %p428 = pneg %p229
        %p429 = pneg %p226
        %p430 = pneg %p250
        %p431 = pneg %p247
        %p432 = pneg %p271
        %p433 = pneg %p268
        %p434 = pneg %p297
        %p435 = pneg %p294
        %s436 = sand.u32 %s284, 1
        %s437 = scalar_lea.sflag [#allocation4], %s436
        %s438 = sand.u32 %s284, 1
        %s439 = smul.addr %s438, 2
        %s440 = scalar_lea.vmem [#allocation3], %s439
        %s441 = smul.u32 2, %s28
        %p442 = scmp.lt.s32.totalorder %s441, 3
        %s443 = scalar_select %p442, %s441, 3
        %s444 = smul.addr %s443, 2
        %s445 = smul.addr %s444, 8
        %s446 = scalar_lea.vmem %s0, %s445
        %s447 = smul.u32 2, %s28
        %p448 = scmp.lt.s32.totalorder %s29, 2
        %s449 = scalar_select %p448, %s29, 2
        %s450 = smul.addr %s449, 8
        %s451 = scalar_lea.vmem %s2, %s450
        %p452 = scmp.lt.s32.totalorder %s29, 2
        %s453 = scalar_select %p452, %s29, 2
        %s454 = smul.addr %s453, 4
        %s455 = smul.addr %s454, 4
        %s456 = scalar_lea.vmem %s3, %s455
        %p457 = scmp.lt.s32.totalorder %s29, 2
        %s458 = scalar_select %p457, %s29, 2
        %s459 = smul.addr %s458, 4
        %s460 = smul.addr %s459, 4
        %s461 = scalar_lea.vmem %s4, %s460
        %p462 = scmp.lt.s32.totalorder %s29, 2
        %s463 = scalar_select %p462, %s29, 2
        %s464 = smul.addr %s463, 4
        %s465 = smul.addr %s464, 4
        %s466 = scalar_lea.vmem %s5, %s465
        %p467 = scmp.lt.s32.totalorder %s29, 2
        %s468 = scalar_select %p467, %s29, 2
        %s469 = smul.addr %s468, 16
        %s470 = smul.addr %s469, 4
        %s471 = scalar_lea.vmem %s6, %s470
        %p473 = scmp.eq.s32.totalorder %s29, 0
        // Predicated region
        $region61: #{cct_forward.3} parent=59 // pred_check
          %p474 = pneg %p473
        $region62: #{cct_forward.3} parent=59 // pred_check_branch
          %476 = sbr.rel (%p474) target = $region64
        $region63: #{cct_forward.3} parent=59 // pred_region
          %v477 = vld [vmem:[%s446] sm:$0xff]
          %v478 = vld [vmem:[%s446 + $0x8] sm:$0xff]
          %v479 = vld [vmem:[%s446 + $0x10] sm:$0xff]
          %v480 = vld [vmem:[%s446 + $0x18] sm:$0xff]
          %v481 = vld [vmem:[%s1] sm:$0xff]
          %v482 = vld [vmem:[%s1 + $0x8] sm:$0xff]
          %v483 = vadd.f32 %v477, %v481
          %v484 = vadd.f32 %v478, %v482
          %v485 = vadd.f32 %v479, %v481
          %v486 = vadd.f32 %v480, %v482
          %vm487 = vcmask 261120
          %488 = vst.msk [vmem:[#allocation2] sm:$0xff] %vm487, %v483
          %489 = vst.msk [vmem:[#allocation2 + $0x8] sm:$0xff] %vm487, %v484
          %490 = vst.msk [vmem:[#allocation2 + $0x10] sm:$0xff] %vm487, %v485
          %491 = vst.msk [vmem:[#allocation2 + $0x18] sm:$0xff] %vm487, %v486
        $region64: #{cct_forward.3} parent=59 // pred_fallthru
          _
        %v492 = vld [vmem:[#allocation2] sm:$0xff]
        %v493 = vld [vmem:[#allocation2 + $0x8] sm:$0xff]
        %v494 = vld [vmem:[#allocation2 + $0x10] sm:$0xff]
        %v495 = vld [vmem:[#allocation2 + $0x18] sm:$0xff]
        %v496 = vld [vmem:[%s451] sm:$0xff]
        %vm497 = vcmask 261120
        %v498 = vsel %vm497, %v492, 0.0
        %499 = vadd.xlane.f32.xlu0 %v498
        %v500 = vpop.xlane.xlu0 %499
        %v501 = vsel %vm497, %v493, 0.0
        %502 = vadd.xlane.f32.xlu0 %v501
        %v503 = vpop.xlane.xlu0 %502
        %v504 = vsel %vm497, %v494, 0.0
        %505 = vadd.xlane.f32.xlu0 %v504
        %v506 = vpop.xlane.xlu0 %505
        %v507 = vsel %vm497, %v495, 0.0
        %508 = vadd.xlane.f32.xlu0 %v507
        %v509 = vpop.xlane.xlu0 %508
        %v510 = vrcp.pop 32.0
        %v511 = vmul.f32 %v500, %v510
        %v512 = vmul.f32 %v503, %v510
        %v513 = vmul.f32 %v506, %v510
        %v514 = vmul.f32 %v509, %v510
        %v515 = vsub.f32 %v492, %v511
        %v516 = vsub.f32 %v493, %v512
        %v517 = vsub.f32 %v494, %v513
        %v518 = vsub.f32 %v495, %v514
        %v519 = vmul.f32 %v515, %v515
        %v520 = vmul.f32 %v516, %v516
        %v521 = vmul.f32 %v517, %v517
        %v522 = vmul.f32 %v518, %v518
        %v523 = vsel %vm497, %v519, 0.0
        %524 = vadd.xlane.f32.xlu0 %v523
        %v525 = vpop.xlane.xlu0 %524
        %v526 = vsel %vm497, %v520, 0.0
        %527 = vadd.xlane.f32.xlu0 %v526
        %v528 = vpop.xlane.xlu0 %527
        %v529 = vsel %vm497, %v521, 0.0
        %530 = vadd.xlane.f32.xlu0 %v529
        %v531 = vpop.xlane.xlu0 %530
        %v532 = vsel %vm497, %v522, 0.0
        %533 = vadd.xlane.f32.xlu0 %v532
        %v534 = vpop.xlane.xlu0 %533
        %v535 = vmul.f32 %v525, %v510
        %v536 = vmul.f32 %v528, %v510
        %v537 = vmul.f32 %v531, %v510
        %v538 = vmul.f32 %v534, %v510
        %v539 = vadd.f32 %v535, 1e-05
        %v540 = vadd.f32 %v536, 1e-05
        %v541 = vadd.f32 %v537, 1e-05
        %v542 = vadd.f32 %v538, 1e-05
        %v543 = vrsqrt.pop %v539
        %v544 = vrsqrt.pop %v540
        %v545 = vrsqrt.pop %v541
        %v546 = vrsqrt.pop %v542
        %v547 = vmul.f32 %v515, %v543
        %v548 = vmul.f32 %v516, %v544
        %v549 = vmul.f32 %v517, %v545
        %v550 = vmul.f32 %v518, %v546
        %v551 = vlaneseq
        %v552 = vshrl.u32 %v551, 7
        %v553 = vsub.s32 0, %v552
        %v554 = vrot.slane %v496, %v553
        %v555 = vmul.f32 %v547, %v554
        %v556 = vmul.f32 %v548, %v554
        %v557 = vmul.f32 %v549, %v554
        %v558 = vmul.f32 %v550, %v554
        %v559 = vlaneseq
        %v560 = vshrl.u32 %v559, 7
        %v561 = vsub.s32 1, %v560
        %v562 = vrot.slane %v496, %v561
        %v563 = vadd.f32 %v555, %v562
        %v564 = vadd.f32 %v556, %v562
        %v565 = vadd.f32 %v557, %v562
        %v566 = vadd.f32 %v558, %v562
        %v567 = vpack.c.bf16 %v564, %v563
        %v568 = vpack.c.bf16 %v566, %v565
        %v569 = vld [vmem:[%s456] sm:$0xf]
        %v570 = vld [vmem:[%s456 + $0x4] sm:$0xf]
        %v571 = vld [vmem:[%s456 + $0x8] sm:$0xf]
        %v572 = vld [vmem:[%s456 + $0xc] sm:$0xf]
        %v573 = vlaneseq
        %v574 = vshrl.u32 %v573, 7
        %v575 = vsub.s32 4, %v574
        %v576 = vrot.slane %v496, %v575
        %v581 = vunpack.c.l.b16 %v569
        %v582 = vunpack.c.l.b16 %v570
        %v583 = vunpack.c.l.b16 %v571
        %v584 = vunpack.c.l.b16 %v572
        %v585 = vpack.c.b16 %v582, %v581
        %v586 = vpack.c.b16 %v584, %v583
        %v590 = vsel %vm497, %v567, 0
        %v593 = vsel %vm497, %v568, 0
        %595 = vmatprep.subr.bf16.mxu0 0
        %596 = vmatpush1.bf16.msra.mxu0 0
        %597 = vmatprep.subr.bf16.mxu0 0
        %598 = vmatpush1.bf16.msra.mxu0 0
        %599 = vmatprep.subr.bf16.mxu0 0
        %600 = vmatpush1.bf16.msra.mxu0 0
        %601 = vmatprep.subr.bf16.mxu0 0
        %602 = vmatpush1.bf16.msra.mxu0 0
        %603 = vmatprep.subr.bf16.mxu0 0
        %604 = vmatpush1.bf16.msra.mxu0 0
        %605 = vmatprep.subr.bf16.mxu0 0
        %606 = vmatpush1.bf16.msra.mxu0 0
        %607 = vmatprep.subr.bf16.mxu0 0
        %608 = vmatpush1.bf16.msra.mxu0 %v586
        %609 = vmatprep.subr.bf16.mxu0 0
        %610 = vmatpush1.bf16.msra.mxu0 %v585
        %611 = vmatprep.subr.bf16.mxu0 0
        %612 = vmatpush2.bf16.msra.mxu0 0
        %613 = vmatprep.subr.bf16.mxu0 0
        %614 = vmatpush2.bf16.msra.mxu0 0
        %615 = vmatprep.subr.bf16.mxu0 0
        %616 = vmatpush2.bf16.msra.mxu0 0
        %617 = vmatprep.subr.bf16.mxu0 0
        %618 = vmatpush2.bf16.msra.mxu0 0
        %619 = vmatprep.subr.bf16.mxu0 0
        %620 = vmatpush2.bf16.msra.mxu0 0
        %621 = vmatprep.subr.bf16.mxu0 0
        %622 = vmatpush2.bf16.msra.mxu0 0
        %623 = vmatprep.subr.bf16.mxu0 0
        %624 = vmatpush2.bf16.msra.mxu0 0
        %625 = vmatprep.subr.bf16.mxu0 0
        %626 = vmatpush2.bf16.msra.mxu0 0
        %627 = vmatprep.mubr.bf16.mxu0 0
        %628 = vmatmul.mubr.bf16.gmra.mxu0 %v590
        %v629 = vpop.f32.mrf.mxu0
        %v630 = vadd.f32 %v576, %v629
        %v631 = vpop.f32.mrf.mxu0
        %v632 = vpop.f32.mrf.mxu0
        %v633 = vadd.f32 %v576, %v632
        %v634 = vpop.f32.mrf.mxu0
        %635 = vmatprep.mubr.bf16.mxu0 0
        %636 = vmatmul.mubr.bf16.gmra.mxu0 %v593
        %v637 = vpop.f32.mrf.mxu0
        %v638 = vadd.f32 %v576, %v637
        %v639 = vpop.f32.mrf.mxu0
        %v640 = vpop.f32.mrf.mxu0
        %v641 = vadd.f32 %v576, %v640
        %v642 = vpop.f32.mrf.mxu0
        %643 = vdwg.mxu0
        %v644 = vpack.c.bf16 %v633, %v630
        %v645 = vpack.c.bf16 %v641, %v638
        %647 = vrot.lane.b32.xlu0 %v644, 96
        %v648 = vpop.permute.xlu0 %647
        %vm649 = vcmask 64512
        %v651 = vsel %vm649, %v644, 0
        %v654 = vsel %vm649, %v648, 0
        %656 = vmatprep.subr.bf16.mxu0 0
        %657 = vmatpush1.bf16.xpose.msra.mxu0 0
        %658 = vmatprep.subr.bf16.mxu0 0
        %659 = vmatpush1.bf16.xpose.msra.mxu0 0
        %660 = vmatprep.subr.bf16.mxu0 0
        %661 = vmatpush1.bf16.xpose.msra.mxu0 0
        %662 = vmatprep.subr.bf16.mxu0 0
        %663 = vmatpush1.bf16.xpose.msra.mxu0 0
        %664 = vmatprep.subr.bf16.mxu0 0
        %665 = vmatpush1.bf16.xpose.msra.mxu0 0
        %666 = vmatprep.subr.bf16.mxu0 0
        %667 = vmatpush1.bf16.xpose.msra.mxu0 0
        %668 = vmatprep.subr.bf16.mxu0 0
        %669 = vmatpush1.bf16.xpose.msra.mxu0 0
        %670 = vmatprep.subr.bf16.mxu0 0
        %671 = vmatpush1.bf16.xpose.msra.mxu0 %v654
        %672 = vmatprep.subr.bf16.mxu0 0
        %673 = vmatpush2.bf16.xpose.msra.mxu0 0
        %674 = vmatprep.subr.bf16.mxu0 0
        %675 = vmatpush2.bf16.xpose.msra.mxu0 0
        %676 = vmatprep.subr.bf16.mxu0 0
        %677 = vmatpush2.bf16.xpose.msra.mxu0 0
        %678 = vmatprep.subr.bf16.mxu0 0
        %679 = vmatpush2.bf16.xpose.msra.mxu0 0
        %680 = vmatprep.subr.bf16.mxu0 0
        %681 = vmatpush2.bf16.xpose.msra.mxu0 0
        %682 = vmatprep.subr.bf16.mxu0 0
        %683 = vmatpush2.bf16.xpose.msra.mxu0 0
        %684 = vmatprep.subr.bf16.mxu0 0
        %685 = vmatpush2.bf16.xpose.msra.mxu0 0
        %686 = vmatprep.subr.bf16.mxu0 0
        %687 = vmatpush2.bf16.xpose.msra.mxu0 0
        %688 = vmatprep.mubr.bf16.mxu0 0
        %689 = vmatmul.mubr.bf16.gmra.mxu0 %v651
        %v690 = vpop.f32.mrf.mxu0
        %v691 = vadd.f32 0.0, %v690
        %v692 = vpop.f32.mrf.mxu0
        %v693 = vpop.f32.mrf.mxu0
        %v694 = vadd.f32 0.0, %v693
        %v695 = vpop.f32.mrf.mxu0
        %696 = vdwg.mxu0
        %698 = vrot.lane.b32.xlu0 %v645, 96
        %v699 = vpop.permute.xlu0 %698
        %v701 = vsel %vm649, %v645, 0
        %v704 = vsel %vm649, %v699, 0
        %706 = vmatprep.subr.bf16.mxu0 0
        %707 = vmatpush1.bf16.xpose.msra.mxu0 0
        %708 = vmatprep.subr.bf16.mxu0 0
        %709 = vmatpush1.bf16.xpose.msra.mxu0 0
        %710 = vmatprep.subr.bf16.mxu0 0
        %711 = vmatpush1.bf16.xpose.msra.mxu0 0
        %712 = vmatprep.subr.bf16.mxu0 0
        %713 = vmatpush1.bf16.xpose.msra.mxu0 0
        %714 = vmatprep.subr.bf16.mxu0 0
        %715 = vmatpush1.bf16.xpose.msra.mxu0 0
        %716 = vmatprep.subr.bf16.mxu0 0
        %717 = vmatpush1.bf16.xpose.msra.mxu0 0
        %718 = vmatprep.subr.bf16.mxu0 0
        %719 = vmatpush1.bf16.xpose.msra.mxu0 0
        %720 = vmatprep.subr.bf16.mxu0 0
        %721 = vmatpush1.bf16.xpose.msra.mxu0 %v704
        %722 = vmatprep.subr.bf16.mxu0 0
        %723 = vmatpush2.bf16.xpose.msra.mxu0 0
        %724 = vmatprep.subr.bf16.mxu0 0
        %725 = vmatpush2.bf16.xpose.msra.mxu0 0
        %726 = vmatprep.subr.bf16.mxu0 0
        %727 = vmatpush2.bf16.xpose.msra.mxu0 0
        %728 = vmatprep.subr.bf16.mxu0 0
        %729 = vmatpush2.bf16.xpose.msra.mxu0 0
        %730 = vmatprep.subr.bf16.mxu0 0
        %731 = vmatpush2.bf16.xpose.msra.mxu0 0
        %732 = vmatprep.subr.bf16.mxu0 0
        %733 = vmatpush2.bf16.xpose.msra.mxu0 0
        %734 = vmatprep.subr.bf16.mxu0 0
        %735 = vmatpush2.bf16.xpose.msra.mxu0 0
        %736 = vmatprep.subr.bf16.mxu0 0
        %737 = vmatpush2.bf16.xpose.msra.mxu0 0
        %738 = vmatprep.mubr.bf16.mxu0 0
        %739 = vmatmul.mubr.bf16.gmra.mxu0 %v701
        %v740 = vpop.f32.mrf.mxu0
        %v741 = vadd.f32 0.0, %v740
        %v742 = vpop.f32.mrf.mxu0
        %v743 = vpop.f32.mrf.mxu0
        %v744 = vadd.f32 0.0, %v743
        %v745 = vpop.f32.mrf.mxu0
        %746 = vdwg.mxu0
        %vm747 = vcmask 130048
        %v748 = vsel %vm747, %v691, -inf
        %749 = vmax.xlane.f32.xlu0 %v748
        %v750 = vpop.xlane.xlu0 %749
        %v751 = vsel %vm747, %v694, -inf
        %752 = vmax.xlane.f32.xlu0 %v751
        %v753 = vpop.xlane.xlu0 %752
        %v754 = vsel %vm747, %v741, -inf
        %755 = vmax.xlane.f32.xlu0 %v754
        %v756 = vpop.xlane.xlu0 %755
        %v757 = vsel %vm747, %v744, -inf
        %758 = vmax.xlane.f32.xlu0 %v757
        %v759 = vpop.xlane.xlu0 %758
        %v760 = vsub.f32 %v691, %v750
        %v761 = vsub.f32 %v694, %v753
        %v762 = vsub.f32 %v741, %v756
        %v763 = vsub.f32 %v744, %v759
        %v764 = vmul.f32 %v760, 1.442695
        %v765 = vpow.pop %v764
        %v766 = vmul.f32 %v761, 1.442695
        %v767 = vpow.pop %v766
        %v768 = vmul.f32 %v762, 1.442695
        %v769 = vpow.pop %v768
        %v770 = vmul.f32 %v763, 1.442695
        %v771 = vpow.pop %v770
        %v772 = vsel %vm747, %v765, 0.0
        %773 = vadd.xlane.f32.xlu0 %v772
        %v774 = vpop.xlane.xlu0 %773
        %v775 = vsel %vm747, %v767, 0.0
        %776 = vadd.xlane.f32.xlu0 %v775
        %v777 = vpop.xlane.xlu0 %776
        %v778 = vsel %vm747, %v769, 0.0
        %779 = vadd.xlane.f32.xlu0 %v778
        %v780 = vpop.xlane.xlu0 %779
        %v781 = vsel %vm747, %v771, 0.0
        %782 = vadd.xlane.f32.xlu0 %v781
        %v783 = vpop.xlane.xlu0 %782
        %v784 = vrcp.pop %v774
        %v785 = vmul.f32 %v765, %v784
        %v786 = vrcp.pop %v777
        %v787 = vmul.f32 %v767, %v786
        %v788 = vrcp.pop %v780
        %v789 = vmul.f32 %v769, %v788
        %v790 = vrcp.pop %v783
        %v791 = vmul.f32 %v771, %v790
        %v792 = vpack.c.bf16 %v787, %v785
        %v793 = vpack.c.bf16 %v791, %v789
        %794 = vrot.lane.b32.xlu0 %v644, 64
        %v795 = vpop.permute.xlu0 %794
        %v798 = vsel %vm747, %v792, 0
        %800 = vmatprep.subr.bf16.mxu0 0
        %801 = vmatpush1.bf16.msra.mxu0 0
        %802 = vmatprep.subr.bf16.mxu0 0
        %803 = vmatpush1.bf16.msra.mxu0 0
        %804 = vmatprep.subr.bf16.mxu0 0
        %805 = vmatpush1.bf16.msra.mxu0 0
        %806 = vmatprep.subr.bf16.mxu0 0
        %807 = vmatpush1.bf16.msra.mxu0 0
        %808 = vmatprep.subr.bf16.mxu0 0
        %809 = vmatpush1.bf16.msra.mxu0 0
        %810 = vmatprep.subr.bf16.mxu0 0
        %811 = vmatpush1.bf16.msra.mxu0 0
        %812 = vmatprep.subr.bf16.mxu0 0
        %813 = vmatpush1.bf16.msra.mxu0 0
        %814 = vmatprep.subr.bf16.mxu0 0
        %815 = vmatpush1.bf16.msra.mxu0 %v795
        %816 = vmatprep.subr.bf16.mxu0 0
        %817 = vmatpush2.bf16.msra.mxu0 0
        %818 = vmatprep.subr.bf16.mxu0 0
        %819 = vmatpush2.bf16.msra.mxu0 0
        %820 = vmatprep.subr.bf16.mxu0 0
        %821 = vmatpush2.bf16.msra.mxu0 0
        %822 = vmatprep.subr.bf16.mxu0 0
        %823 = vmatpush2.bf16.msra.mxu0 0
        %824 = vmatprep.subr.bf16.mxu0 0
        %825 = vmatpush2.bf16.msra.mxu0 0
        %826 = vmatprep.subr.bf16.mxu0 0
        %827 = vmatpush2.bf16.msra.mxu0 0
        %828 = vmatprep.subr.bf16.mxu0 0
        %829 = vmatpush2.bf16.msra.mxu0 0
        %830 = vmatprep.subr.bf16.mxu0 0
        %831 = vmatpush2.bf16.msra.mxu0 0
        %832 = vmatprep.mubr.bf16.mxu0 0
        %833 = vmatmul.mubr.bf16.gmra.mxu0 %v798
        %v834 = vpop.f32.mrf.mxu0
        %v835 = vadd.f32 0.0, %v834
        %v836 = vpop.f32.mrf.mxu0
        %v837 = vpop.f32.mrf.mxu0
        %v838 = vadd.f32 0.0, %v837
        %v839 = vpop.f32.mrf.mxu0
        %840 = vdwg.mxu0
        %841 = vrot.lane.b32.xlu0 %v645, 64
        %v842 = vpop.permute.xlu0 %841
        %v845 = vsel %vm747, %v793, 0
        %847 = vmatprep.subr.bf16.mxu0 0
        %848 = vmatpush1.bf16.msra.mxu0 0
        %849 = vmatprep.subr.bf16.mxu0 0
        %850 = vmatpush1.bf16.msra.mxu0 0
        %851 = vmatprep.subr.bf16.mxu0 0
        %852 = vmatpush1.bf16.msra.mxu0 0
        %853 = vmatprep.subr.bf16.mxu0 0
        %854 = vmatpush1.bf16.msra.mxu0 0
        %855 = vmatprep.subr.bf16.mxu0 0
        %856 = vmatpush1.bf16.msra.mxu0 0
        %857 = vmatprep.subr.bf16.mxu0 0
        %858 = vmatpush1.bf16.msra.mxu0 0
        %859 = vmatprep.subr.bf16.mxu0 0
        %860 = vmatpush1.bf16.msra.mxu0 0
        %861 = vmatprep.subr.bf16.mxu0 0
        %862 = vmatpush1.bf16.msra.mxu0 %v842
        %863 = vmatprep.subr.bf16.mxu0 0
        %864 = vmatpush2.bf16.msra.mxu0 0
        %865 = vmatprep.subr.bf16.mxu0 0
        %866 = vmatpush2.bf16.msra.mxu0 0
        %867 = vmatprep.subr.bf16.mxu0 0
        %868 = vmatpush2.bf16.msra.mxu0 0
        %869 = vmatprep.subr.bf16.mxu0 0
        %870 = vmatpush2.bf16.msra.mxu0 0
        %871 = vmatprep.subr.bf16.mxu0 0
        %872 = vmatpush2.bf16.msra.mxu0 0
        %873 = vmatprep.subr.bf16.mxu0 0
        %874 = vmatpush2.bf16.msra.mxu0 0
        %875 = vmatprep.subr.bf16.mxu0 0
        %876 = vmatpush2.bf16.msra.mxu0 0
        %877 = vmatprep.subr.bf16.mxu0 0
        %878 = vmatpush2.bf16.msra.mxu0 0
        %879 = vmatprep.mubr.bf16.mxu0 0
        %880 = vmatmul.mubr.bf16.gmra.mxu0 %v845
        %v881 = vpop.f32.mrf.mxu0
        %v882 = vadd.f32 0.0, %v881
        %v883 = vpop.f32.mrf.mxu0
        %v884 = vpop.f32.mrf.mxu0
        %v885 = vadd.f32 0.0, %v884
        %v886 = vpop.f32.mrf.mxu0
        %887 = vdwg.mxu0
        %v888 = vpack.c.bf16 %v838, %v835
        %v889 = vpack.c.bf16 %v885, %v882
        %v890 = vld [vmem:[%s461] sm:$0xf]
        %891 = vrot.lane.b32.xlu0 %v644, 120
        %v892 = vpop.permute.xlu0 %891
        %893 = vrot.lane.b32.xlu0 %v644, 88
        %v894 = vpop.permute.xlu0 %893
        %v896 = vsel %vm649, %v892, 0
        %v899 = vsel %vm649, %v894, 0
        %901 = vmatprep.subr.bf16.mxu0 0
        %902 = vmatpush1.bf16.xpose.msra.mxu0 0
        %903 = vmatprep.subr.bf16.mxu0 0
        %904 = vmatpush1.bf16.xpose.msra.mxu0 0
        %905 = vmatprep.subr.bf16.mxu0 0
        %906 = vmatpush1.bf16.xpose.msra.mxu0 0
        %907 = vmatprep.subr.bf16.mxu0 0
        %908 = vmatpush1.bf16.xpose.msra.mxu0 0
        %909 = vmatprep.subr.bf16.mxu0 0
        %910 = vmatpush1.bf16.xpose.msra.mxu0 0
        %911 = vmatprep.subr.bf16.mxu0 0
        %912 = vmatpush1.bf16.xpose.msra.mxu0 0
        %913 = vmatprep.subr.bf16.mxu0 0
        %914 = vmatpush1.bf16.xpose.msra.mxu0 0
        %915 = vmatprep.subr.bf16.mxu0 0
        %916 = vmatpush1.bf16.xpose.msra.mxu0 %v899
        %917 = vmatprep.subr.bf16.mxu0 0
        %918 = vmatpush2.bf16.xpose.msra.mxu0 0
        %919 = vmatprep.subr.bf16.mxu0 0
        %920 = vmatpush2.bf16.xpose.msra.mxu0 0
        %921 = vmatprep.subr.bf16.mxu0 0
        %922 = vmatpush2.bf16.xpose.msra.mxu0 0
        %923 = vmatprep.subr.bf16.mxu0 0
        %924 = vmatpush2.bf16.xpose.msra.mxu0 0
        %925 = vmatprep.subr.bf16.mxu0 0
        %926 = vmatpush2.bf16.xpose.msra.mxu0 0
        %927 = vmatprep.subr.bf16.mxu0 0
        %928 = vmatpush2.bf16.xpose.msra.mxu0 0
        %929 = vmatprep.subr.bf16.mxu0 0
        %930 = vmatpush2.bf16.xpose.msra.mxu0 0
        %931 = vmatprep.subr.bf16.mxu0 0
        %932 = vmatpush2.bf16.xpose.msra.mxu0 0
        %933 = vmatprep.mubr.bf16.mxu0 0
        %934 = vmatmul.mubr.bf16.gmra.mxu0 %v896
        %v935 = vpop.f32.mrf.mxu0
        %v936 = vadd.f32 0.0, %v935
        %v937 = vpop.f32.mrf.mxu0
        %v938 = vpop.f32.mrf.mxu0
        %v939 = vadd.f32 0.0, %v938
        %v940 = vpop.f32.mrf.mxu0
        %941 = vdwg.mxu0
        %942 = vrot.lane.b32.xlu0 %v645, 120
        %v943 = vpop.permute.xlu0 %942
        %944 = vrot.lane.b32.xlu0 %v645, 88
        %v945 = vpop.permute.xlu0 %944
        %v947 = vsel %vm649, %v943, 0
        %v950 = vsel %vm649, %v945, 0
        %952 = vmatprep.subr.bf16.mxu0 0
        %953 = vmatpush1.bf16.xpose.msra.mxu0 0
        %954 = vmatprep.subr.bf16.mxu0 0
        %955 = vmatpush1.bf16.xpose.msra.mxu0 0
        %956 = vmatprep.subr.bf16.mxu0 0
        %957 = vmatpush1.bf16.xpose.msra.mxu0 0
        %958 = vmatprep.subr.bf16.mxu0 0
        %959 = vmatpush1.bf16.xpose.msra.mxu0 0
        %960 = vmatprep.subr.bf16.mxu0 0
        %961 = vmatpush1.bf16.xpose.msra.mxu0 0
        %962 = vmatprep.subr.bf16.mxu0 0
        %963 = vmatpush1.bf16.xpose.msra.mxu0 0
        %964 = vmatprep.subr.bf16.mxu0 0
        %965 = vmatpush1.bf16.xpose.msra.mxu0 0
        %966 = vmatprep.subr.bf16.mxu0 0
        %967 = vmatpush1.bf16.xpose.msra.mxu0 %v950
        %968 = vmatprep.subr.bf16.mxu0 0
        %969 = vmatpush2.bf16.xpose.msra.mxu0 0
        %970 = vmatprep.subr.bf16.mxu0 0
        %971 = vmatpush2.bf16.xpose.msra.mxu0 0
        %972 = vmatprep.subr.bf16.mxu0 0
        %973 = vmatpush2.bf16.xpose.msra.mxu0 0
        %974 = vmatprep.subr.bf16.mxu0 0
        %975 = vmatpush2.bf16.xpose.msra.mxu0 0
        %976 = vmatprep.subr.bf16.mxu0 0
        %977 = vmatpush2.bf16.xpose.msra.mxu0 0
        %978 = vmatprep.subr.bf16.mxu0 0
        %979 = vmatpush2.bf16.xpose.msra.mxu0 0
        %980 = vmatprep.subr.bf16.mxu0 0
        %981 = vmatpush2.bf16.xpose.msra.mxu0 0
        %982 = vmatprep.subr.bf16.mxu0 0
        %983 = vmatpush2.bf16.xpose.msra.mxu0 0
        %984 = vmatprep.mubr.bf16.mxu0 0
        %985 = vmatmul.mubr.bf16.gmra.mxu0 %v947
        %v986 = vpop.f32.mrf.mxu0
        %v987 = vadd.f32 0.0, %v986
        %v988 = vpop.f32.mrf.mxu0
        %v989 = vpop.f32.mrf.mxu0
        %v990 = vadd.f32 0.0, %v989
        %v991 = vpop.f32.mrf.mxu0
        %992 = vdwg.mxu0
        %v993 = vsel %vm747, %v936, -inf
        %994 = vmax.xlane.f32.xlu0 %v993
        %v995 = vpop.xlane.xlu0 %994
        %v996 = vsel %vm747, %v939, -inf
        %997 = vmax.xlane.f32.xlu0 %v996
        %v998 = vpop.xlane.xlu0 %997
        %v999 = vsel %vm747, %v987, -inf
        %1000 = vmax.xlane.f32.xlu0 %v999
        %v1001 = vpop.xlane.xlu0 %1000
        %v1002 = vsel %vm747, %v990, -inf
        %1003 = vmax.xlane.f32.xlu0 %v1002
        %v1004 = vpop.xlane.xlu0 %1003
        %v1005 = vsub.f32 %v936, %v995
        %v1006 = vsub.f32 %v939, %v998
        %v1007 = vsub.f32 %v987, %v1001
        %v1008 = vsub.f32 %v990, %v1004
        %v1009 = vmul.f32 %v1005, 1.442695
        %v1010 = vpow.pop %v1009
        %v1011 = vmul.f32 %v1006, 1.442695
        %v1012 = vpow.pop %v1011
        %v1013 = vmul.f32 %v1007, 1.442695
        %v1014 = vpow.pop %v1013
        %v1015 = vmul.f32 %v1008, 1.442695
        %v1016 = vpow.pop %v1015
        %v1017 = vsel %vm747, %v1010, 0.0
        %1018 = vadd.xlane.f32.xlu0 %v1017
        %v1019 = vpop.xlane.xlu0 %1018
        %v1020 = vsel %vm747, %v1012, 0.0
        %1021 = vadd.xlane.f32.xlu0 %v1020
        %v1022 = vpop.xlane.xlu0 %1021
        %v1023 = vsel %vm747, %v1014, 0.0
        %1024 = vadd.xlane.f32.xlu0 %v1023
        %v1025 = vpop.xlane.xlu0 %1024
        %v1026 = vsel %vm747, %v1016, 0.0
        %1027 = vadd.xlane.f32.xlu0 %v1026
        %v1028 = vpop.xlane.xlu0 %1027
        %v1029 = vrcp.pop %v1019
        %v1030 = vmul.f32 %v1010, %v1029
        %v1031 = vrcp.pop %v1022
        %v1032 = vmul.f32 %v1012, %v1031
        %v1033 = vrcp.pop %v1025
        %v1034 = vmul.f32 %v1014, %v1033
        %v1035 = vrcp.pop %v1028
        %v1036 = vmul.f32 %v1016, %v1035
        %v1037 = vpack.c.bf16 %v1032, %v1030
        %v1038 = vpack.c.bf16 %v1036, %v1034
        %1039 = vrot.lane.b32.xlu0 %v644, 56
        %v1040 = vpop.permute.xlu0 %1039
        %v1043 = vsel %vm747, %v1037, 0
        %1045 = vmatprep.subr.bf16.mxu0 0
        %1046 = vmatpush1.bf16.msra.mxu0 0
        %1047 = vmatprep.subr.bf16.mxu0 0
        %1048 = vmatpush1.bf16.msra.mxu0 0
        %1049 = vmatprep.subr.bf16.mxu0 0
        %1050 = vmatpush1.bf16.msra.mxu0 0
        %1051 = vmatprep.subr.bf16.mxu0 0
        %1052 = vmatpush1.bf16.msra.mxu0 0
        %1053 = vmatprep.subr.bf16.mxu0 0
        %1054 = vmatpush1.bf16.msra.mxu0 0
        %1055 = vmatprep.subr.bf16.mxu0 0
        %1056 = vmatpush1.bf16.msra.mxu0 0
        %1057 = vmatprep.subr.bf16.mxu0 0
        %1058 = vmatpush1.bf16.msra.mxu0 0
        %1059 = vmatprep.subr.bf16.mxu0 0
        %1060 = vmatpush1.bf16.msra.mxu0 %v1040
        %1061 = vmatprep.subr.bf16.mxu0 0
        %1062 = vmatpush2.bf16.msra.mxu0 0
        %1063 = vmatprep.subr.bf16.mxu0 0
        %1064 = vmatpush2.bf16.msra.mxu0 0
        %1065 = vmatprep.subr.bf16.mxu0 0
        %1066 = vmatpush2.bf16.msra.mxu0 0
        %1067 = vmatprep.subr.bf16.mxu0 0
        %1068 = vmatpush2.bf16.msra.mxu0 0
        %1069 = vmatprep.subr.bf16.mxu0 0
        %1070 = vmatpush2.bf16.msra.mxu0 0
        %1071 = vmatprep.subr.bf16.mxu0 0
        %1072 = vmatpush2.bf16.msra.mxu0 0
        %1073 = vmatprep.subr.bf16.mxu0 0
        %1074 = vmatpush2.bf16.msra.mxu0 0
        %1075 = vmatprep.subr.bf16.mxu0 0
        %1076 = vmatpush2.bf16.msra.mxu0 0
        %1077 = vmatprep.mubr.bf16.mxu0 0
        %1078 = vmatmul.mubr.bf16.gmra.mxu0 %v1043
        %v1079 = vpop.f32.mrf.mxu0
        %v1080 = vadd.f32 0.0, %v1079
        %v1081 = vpop.f32.mrf.mxu0
        %v1082 = vpop.f32.mrf.mxu0
        %v1083 = vadd.f32 0.0, %v1082
        %v1084 = vpop.f32.mrf.mxu0
        %1085 = vdwg.mxu0
        %1086 = vrot.lane.b32.xlu0 %v645, 56
        %v1087 = vpop.permute.xlu0 %1086
        %v1090 = vsel %vm747, %v1038, 0
        %1092 = vmatprep.subr.bf16.mxu0 0
        %1093 = vmatpush1.bf16.msra.mxu0 0
        %1094 = vmatprep.subr.bf16.mxu0 0
        %1095 = vmatpush1.bf16.msra.mxu0 0
        %1096 = vmatprep.subr.bf16.mxu0 0
        %1097 = vmatpush1.bf16.msra.mxu0 0
        %1098 = vmatprep.subr.bf16.mxu0 0
        %1099 = vmatpush1.bf16.msra.mxu0 0
        %1100 = vmatprep.subr.bf16.mxu0 0
        %1101 = vmatpush1.bf16.msra.mxu0 0
        %1102 = vmatprep.subr.bf16.mxu0 0
        %1103 = vmatpush1.bf16.msra.mxu0 0
        %1104 = vmatprep.subr.bf16.mxu0 0
        %1105 = vmatpush1.bf16.msra.mxu0 0
        %1106 = vmatprep.subr.bf16.mxu0 0
        %1107 = vmatpush1.bf16.msra.mxu0 %v1087
        %1108 = vmatprep.subr.bf16.mxu0 0
        %1109 = vmatpush2.bf16.msra.mxu0 0
        %1110 = vmatprep.subr.bf16.mxu0 0
        %1111 = vmatpush2.bf16.msra.mxu0 0
        %1112 = vmatprep.subr.bf16.mxu0 0
        %1113 = vmatpush2.bf16.msra.mxu0 0
        %1114 = vmatprep.subr.bf16.mxu0 0
        %1115 = vmatpush2.bf16.msra.mxu0 0
        %1116 = vmatprep.subr.bf16.mxu0 0
        %1117 = vmatpush2.bf16.msra.mxu0 0
        %1118 = vmatprep.subr.bf16.mxu0 0
        %1119 = vmatpush2.bf16.msra.mxu0 0
        %1120 = vmatprep.subr.bf16.mxu0 0
        %1121 = vmatpush2.bf16.msra.mxu0 0
        %1122 = vmatprep.subr.bf16.mxu0 0
        %1123 = vmatpush2.bf16.msra.mxu0 0
        %1124 = vmatprep.mubr.bf16.mxu0 0
        %1125 = vmatmul.mubr.bf16.gmra.mxu0 %v1090
        %v1126 = vpop.f32.mrf.mxu0
        %v1127 = vadd.f32 0.0, %v1126
        %v1128 = vpop.f32.mrf.mxu0
        %v1129 = vpop.f32.mrf.mxu0
        %v1130 = vadd.f32 0.0, %v1129
        %v1131 = vpop.f32.mrf.mxu0
        %1132 = vdwg.mxu0
        %v1133 = vpack.c.bf16 %v1083, %v1080
        %v1134 = vpack.c.bf16 %v1130, %v1127
        %s1135 = scalar_lea.vmem %s461, 4
        %v1136 = vld [vmem:[%s1135] sm:$0xf]
        %v1138 = vsel %vm649, %v1133, 0
        %v1141 = vsel %vm649, %v1134, 0
        %vm1143 = vcmask 1043456
        %v1145 = vsel %vm1143, %v1136, 0
        %1147 = vmatprep.subr.bf16.mxu0 0
        %1148 = vmatpush1.bf16.msra.mxu0 0
        %1149 = vmatprep.subr.bf16.mxu0 0
        %1150 = vmatpush1.bf16.msra.mxu0 0
        %1151 = vmatprep.subr.bf16.mxu0 0
        %1152 = vmatpush1.bf16.msra.mxu0 0
        %1153 = vmatprep.subr.bf16.mxu0 0
        %1154 = vmatpush1.bf16.msra.mxu0 0
        %1155 = vmatprep.subr.bf16.mxu0 0
        %1156 = vmatpush1.bf16.msra.mxu0 0
        %1157 = vmatprep.subr.bf16.mxu0 0
        %1158 = vmatpush1.bf16.msra.mxu0 0
        %1159 = vmatprep.subr.bf16.mxu0 0
        %1160 = vmatpush1.bf16.msra.mxu0 0
        %1161 = vmatprep.subr.bf16.mxu0 0
        %1162 = vmatpush1.bf16.msra.mxu0 %v1145
        %1163 = vmatprep.subr.bf16.mxu0 0
        %1164 = vmatpush2.bf16.msra.mxu0 0
        %1165 = vmatprep.subr.bf16.mxu0 0
        %1166 = vmatpush2.bf16.msra.mxu0 0
        %1167 = vmatprep.subr.bf16.mxu0 0
        %1168 = vmatpush2.bf16.msra.mxu0 0
        %1169 = vmatprep.subr.bf16.mxu0 0
        %1170 = vmatpush2.bf16.msra.mxu0 0
        %1171 = vmatprep.subr.bf16.mxu0 0
        %1172 = vmatpush2.bf16.msra.mxu0 0
        %1173 = vmatprep.subr.bf16.mxu0 0
        %1174 = vmatpush2.bf16.msra.mxu0 0
        %1175 = vmatprep.subr.bf16.mxu0 0
        %1176 = vmatpush2.bf16.msra.mxu0 0
        %1177 = vmatprep.subr.bf16.mxu0 0
        %1178 = vmatpush2.bf16.msra.mxu0 0
        %1179 = vmatprep.mubr.bf16.mxu0 0
        %1180 = vmatmul.mubr.bf16.gmra.mxu0 %v1138
        %v1181 = vpop.f32.mrf.mxu0
        %v1182 = vadd.f32 0.0, %v1181
        %v1183 = vpop.f32.mrf.mxu0
        %v1184 = vpop.f32.mrf.mxu0
        %v1185 = vadd.f32 0.0, %v1184
        %v1186 = vpop.f32.mrf.mxu0
        %1187 = vmatprep.mubr.bf16.mxu0 0
        %1188 = vmatmul.mubr.bf16.gmra.mxu0 %v1141
        %v1189 = vpop.f32.mrf.mxu0
        %v1190 = vadd.f32 0.0, %v1189
        %v1191 = vpop.f32.mrf.mxu0
        %v1192 = vpop.f32.mrf.mxu0
        %v1193 = vadd.f32 0.0, %v1192
        %v1194 = vpop.f32.mrf.mxu0
        %1195 = vdwg.mxu0
        %v1197 = vsel %vm649, %v888, 0
        %v1200 = vsel %vm649, %v889, 0
        %v1203 = vsel %vm1143, %v890, 0
        %1205 = vmatprep.subr.bf16.mxu0 0
        %1206 = vmatpush1.bf16.msra.mxu0 0
        %1207 = vmatprep.subr.bf16.mxu0 0
        %1208 = vmatpush1.bf16.msra.mxu0 0
        %1209 = vmatprep.subr.bf16.mxu0 0
        %1210 = vmatpush1.bf16.msra.mxu0 0
        %1211 = vmatprep.subr.bf16.mxu0 0
        %1212 = vmatpush1.bf16.msra.mxu0 0
        %1213 = vmatprep.subr.bf16.mxu0 0
        %1214 = vmatpush1.bf16.msra.mxu0 0
        %1215 = vmatprep.subr.bf16.mxu0 0
        %1216 = vmatpush1.bf16.msra.mxu0 0
        %1217 = vmatprep.subr.bf16.mxu0 0
        %1218 = vmatpush1.bf16.msra.mxu0 0
        %1219 = vmatprep.subr.bf16.mxu0 0
        %1220 = vmatpush1.bf16.msra.mxu0 %v1203
        %1221 = vmatprep.subr.bf16.mxu0 0
        %1222 = vmatpush2.bf16.msra.mxu0 0
        %1223 = vmatprep.subr.bf16.mxu0 0
        %1224 = vmatpush2.bf16.msra.mxu0 0
        %1225 = vmatprep.subr.bf16.mxu0 0
        %1226 = vmatpush2.bf16.msra.mxu0 0
        %1227 = vmatprep.subr.bf16.mxu0 0
        %1228 = vmatpush2.bf16.msra.mxu0 0
        %1229 = vmatprep.subr.bf16.mxu0 0
        %1230 = vmatpush2.bf16.msra.mxu0 0
        %1231 = vmatprep.subr.bf16.mxu0 0
        %1232 = vmatpush2.bf16.msra.mxu0 0
        %1233 = vmatprep.subr.bf16.mxu0 0
        %1234 = vmatpush2.bf16.msra.mxu0 0
        %1235 = vmatprep.subr.bf16.mxu0 0
        %1236 = vmatpush2.bf16.msra.mxu0 0
        %1237 = vmatprep.mubr.bf16.mxu0 0
        %1238 = vmatmul.mubr.bf16.gmra.mxu0 %v1197
        %v1239 = vpop.f32.mrf.mxu0
        %v1240 = vadd.f32 %v1182, %v1239
        %v1241 = vpop.f32.mrf.mxu0
        %v1242 = vpop.f32.mrf.mxu0
        %v1243 = vadd.f32 %v1185, %v1242
        %v1244 = vpop.f32.mrf.mxu0
        %1245 = vmatprep.mubr.bf16.mxu0 0
        %1246 = vmatmul.mubr.bf16.gmra.mxu0 %v1200
        %v1247 = vpop.f32.mrf.mxu0
        %v1248 = vadd.f32 %v1190, %v1247
        %v1249 = vpop.f32.mrf.mxu0
        %v1250 = vpop.f32.mrf.mxu0
        %v1251 = vadd.f32 %v1193, %v1250
        %v1252 = vpop.f32.mrf.mxu0
        %1253 = vdwg.mxu0
        %1254 = vrot.lane.b32.xlu0 %v644, 112
        %v1255 = vpop.permute.xlu0 %1254
        %1256 = vrot.lane.b32.xlu0 %v644, 80
        %v1257 = vpop.permute.xlu0 %1256
        %v1259 = vsel %vm649, %v1255, 0
        %v1262 = vsel %vm649, %v1257, 0
        %1264 = vmatprep.subr.bf16.mxu0 0
        %1265 = vmatpush1.bf16.xpose.msra.mxu0 0
        %1266 = vmatprep.subr.bf16.mxu0 0
        %1267 = vmatpush1.bf16.xpose.msra.mxu0 0
        %1268 = vmatprep.subr.bf16.mxu0 0
        %1269 = vmatpush1.bf16.xpose.msra.mxu0 0
        %1270 = vmatprep.subr.bf16.mxu0 0
        %1271 = vmatpush1.bf16.xpose.msra.mxu0 0
        %1272 = vmatprep.subr.bf16.mxu0 0
        %1273 = vmatpush1.bf16.xpose.msra.mxu0 0
        %1274 = vmatprep.subr.bf16.mxu0 0
        %1275 = vmatpush1.bf16.xpose.msra.mxu0 0
        %1276 = vmatprep.subr.bf16.mxu0 0
        %1277 = vmatpush1.bf16.xpose.msra.mxu0 0
        %1278 = vmatprep.subr.bf16.mxu0 0
        %1279 = vmatpush1.bf16.xpose.msra.mxu0 %v1262
        %1280 = vmatprep.subr.bf16.mxu0 0
        %1281 = vmatpush2.bf16.xpose.msra.mxu0 0
        %1282 = vmatprep.subr.bf16.mxu0 0
        %1283 = vmatpush2.bf16.xpose.msra.mxu0 0
        %1284 = vmatprep.subr.bf16.mxu0 0
        %1285 = vmatpush2.bf16.xpose.msra.mxu0 0
        %1286 = vmatprep.subr.bf16.mxu0 0
        %1287 = vmatpush2.bf16.xpose.msra.mxu0 0
        %1288 = vmatprep.subr.bf16.mxu0 0
        %1289 = vmatpush2.bf16.xpose.msra.mxu0 0
        %1290 = vmatprep.subr.bf16.mxu0 0
        %1291 = vmatpush2.bf16.xpose.msra.mxu0 0
        %1292 = vmatprep.subr.bf16.mxu0 0
        %1293 = vmatpush2.bf16.xpose.msra.mxu0 0
        %1294 = vmatprep.subr.bf16.mxu0 0
        %1295 = vmatpush2.bf16.xpose.msra.mxu0 0
        %1296 = vmatprep.mubr.bf16.mxu0 0
        %1297 = vmatmul.mubr.bf16.gmra.mxu0 %v1259
        %v1298 = vpop.f32.mrf.mxu0
        %v1299 = vadd.f32 0.0, %v1298
        %v1300 = vpop.f32.mrf.mxu0
        %v1301 = vpop.f32.mrf.mxu0
        %v1302 = vadd.f32 0.0, %v1301
        %v1303 = vpop.f32.mrf.mxu0
        %1304 = vdwg.mxu0
        %1305 = vrot.lane.b32.xlu0 %v645, 112
        %v1306 = vpop.permute.xlu0 %1305
        %1307 = vrot.lane.b32.xlu0 %v645, 80
        %v1308 = vpop.permute.xlu0 %1307
        %v1310 = vsel %vm649, %v1306, 0
        %v1313 = vsel %vm649, %v1308, 0
        %1315 = vmatprep.subr.bf16.mxu0 0
        %1316 = vmatpush1.bf16.xpose.msra.mxu0 0
        %1317 = vmatprep.subr.bf16.mxu0 0
        %1318 = vmatpush1.bf16.xpose.msra.mxu0 0
        %1319 = vmatprep.subr.bf16.mxu0 0
        %1320 = vmatpush1.bf16.xpose.msra.mxu0 0
        %1321 = vmatprep.subr.bf16.mxu0 0
        %1322 = vmatpush1.bf16.xpose.msra.mxu0 0
        %1323 = vmatprep.subr.bf16.mxu0 0
        %1324 = vmatpush1.bf16.xpose.msra.mxu0 0
        %1325 = vmatprep.subr.bf16.mxu0 0
        %1326 = vmatpush1.bf16.xpose.msra.mxu0 0
        %1327 = vmatprep.subr.bf16.mxu0 0
        %1328 = vmatpush1.bf16.xpose.msra.mxu0 0
        %1329 = vmatprep.subr.bf16.mxu0 0
        %1330 = vmatpush1.bf16.xpose.msra.mxu0 %v1313
        %1331 = vmatprep.subr.bf16.mxu0 0
        %1332 = vmatpush2.bf16.xpose.msra.mxu0 0
        %1333 = vmatprep.subr.bf16.mxu0 0
        %1334 = vmatpush2.bf16.xpose.msra.mxu0 0
        %1335 = vmatprep.subr.bf16.mxu0 0
        %1336 = vmatpush2.bf16.xpose.msra.mxu0 0
        %1337 = vmatprep.subr.bf16.mxu0 0
        %1338 = vmatpush2.bf16.xpose.msra.mxu0 0
        %1339 = vmatprep.subr.bf16.mxu0 0
        %1340 = vmatpush2.bf16.xpose.msra.mxu0 0
        %1341 = vmatprep.subr.bf16.mxu0 0
        %1342 = vmatpush2.bf16.xpose.msra.mxu0 0
        %1343 = vmatprep.subr.bf16.mxu0 0
        %1344 = vmatpush2.bf16.xpose.msra.mxu0 0
        %1345 = vmatprep.subr.bf16.mxu0 0
        %1346 = vmatpush2.bf16.xpose.msra.mxu0 0
        %1347 = vmatprep.mubr.bf16.mxu0 0
        %1348 = vmatmul.mubr.bf16.gmra.mxu0 %v1310
        %v1349 = vpop.f32.mrf.mxu0
        %v1350 = vadd.f32 0.0, %v1349
        %v1351 = vpop.f32.mrf.mxu0
        %v1352 = vpop.f32.mrf.mxu0
        %v1353 = vadd.f32 0.0, %v1352
        %v1354 = vpop.f32.mrf.mxu0
        %1355 = vdwg.mxu0
        %v1356 = vsel %vm747, %v1299, -inf
        %1357 = vmax.xlane.f32.xlu0 %v1356
        %v1358 = vpop.xlane.xlu0 %1357
        %v1359 = vsel %vm747, %v1302, -inf
        %1360 = vmax.xlane.f32.xlu0 %v1359
        %v1361 = vpop.xlane.xlu0 %1360
        %v1362 = vsel %vm747, %v1350, -inf
        %1363 = vmax.xlane.f32.xlu0 %v1362
        %v1364 = vpop.xlane.xlu0 %1363
        %v1365 = vsel %vm747, %v1353, -inf
        %1366 = vmax.xlane.f32.xlu0 %v1365
        %v1367 = vpop.xlane.xlu0 %1366
        %v1368 = vsub.f32 %v1299, %v1358
        %v1369 = vsub.f32 %v1302, %v1361
        %v1370 = vsub.f32 %v1350, %v1364
        %v1371 = vsub.f32 %v1353, %v1367
        %v1372 = vmul.f32 %v1368, 1.442695
        %v1373 = vpow.pop %v1372
        %v1374 = vmul.f32 %v1369, 1.442695
        %v1375 = vpow.pop %v1374
        %v1376 = vmul.f32 %v1370, 1.442695
        %v1377 = vpow.pop %v1376
        %v1378 = vmul.f32 %v1371, 1.442695
        %v1379 = vpow.pop %v1378
        %v1380 = vsel %vm747, %v1373, 0.0
        %1381 = vadd.xlane.f32.xlu0 %v1380
        %v1382 = vpop.xlane.xlu0 %1381
        %v1383 = vsel %vm747, %v1375, 0.0
        %1384 = vadd.xlane.f32.xlu0 %v1383
        %v1385 = vpop.xlane.xlu0 %1384
        %v1386 = vsel %vm747, %v1377, 0.0
        %1387 = vadd.xlane.f32.xlu0 %v1386
        %v1388 = vpop.xlane.xlu0 %1387
        %v1389 = vsel %vm747, %v1379, 0.0
        %1390 = vadd.xlane.f32.xlu0 %v1389
        %v1391 = vpop.xlane.xlu0 %1390
        %v1392 = vrcp.pop %v1382
        %v1393 = vmul.f32 %v1373, %v1392
        %v1394 = vrcp.pop %v1385
        %v1395 = vmul.f32 %v1375, %v1394
        %v1396 = vrcp.pop %v1388
        %v1397 = vmul.f32 %v1377, %v1396
        %v1398 = vrcp.pop %v1391
        %v1399 = vmul.f32 %v1379, %v1398
        %v1400 = vpack.c.bf16 %v1395, %v1393
        %v1401 = vpack.c.bf16 %v1399, %v1397
        %1402 = vrot.lane.b32.xlu0 %v644, 48
        %v1403 = vpop.permute.xlu0 %1402
        %v1406 = vsel %vm747, %v1400, 0
        %1408 = vmatprep.subr.bf16.mxu0 0
        %1409 = vmatpush1.bf16.msra.mxu0 0
        %1410 = vmatprep.subr.bf16.mxu0 0
        %1411 = vmatpush1.bf16.msra.mxu0 0
        %1412 = vmatprep.subr.bf16.mxu0 0
        %1413 = vmatpush1.bf16.msra.mxu0 0
        %1414 = vmatprep.subr.bf16.mxu0 0
        %1415 = vmatpush1.bf16.msra.mxu0 0
        %1416 = vmatprep.subr.bf16.mxu0 0
        %1417 = vmatpush1.bf16.msra.mxu0 0
        %1418 = vmatprep.subr.bf16.mxu0 0
        %1419 = vmatpush1.bf16.msra.mxu0 0
        %1420 = vmatprep.subr.bf16.mxu0 0
        %1421 = vmatpush1.bf16.msra.mxu0 0
        %1422 = vmatprep.subr.bf16.mxu0 0
        %1423 = vmatpush1.bf16.msra.mxu0 %v1403
        %1424 = vmatprep.subr.bf16.mxu0 0
        %1425 = vmatpush2.bf16.msra.mxu0 0
        %1426 = vmatprep.subr.bf16.mxu0 0
        %1427 = vmatpush2.bf16.msra.mxu0 0
        %1428 = vmatprep.subr.bf16.mxu0 0
        %1429 = vmatpush2.bf16.msra.mxu0 0
        %1430 = vmatprep.subr.bf16.mxu0 0
        %1431 = vmatpush2.bf16.msra.mxu0 0
        %1432 = vmatprep.subr.bf16.mxu0 0
        %1433 = vmatpush2.bf16.msra.mxu0 0
        %1434 = vmatprep.subr.bf16.mxu0 0
        %1435 = vmatpush2.bf16.msra.mxu0 0
        %1436 = vmatprep.subr.bf16.mxu0 0
        %1437 = vmatpush2.bf16.msra.mxu0 0
        %1438 = vmatprep.subr.bf16.mxu0 0
        %1439 = vmatpush2.bf16.msra.mxu0 0
        %1440 = vmatprep.mubr.bf16.mxu0 0
        %1441 = vmatmul.mubr.bf16.gmra.mxu0 %v1406
        %v1442 = vpop.f32.mrf.mxu0
        %v1443 = vadd.f32 0.0, %v1442
        %v1444 = vpop.f32.mrf.mxu0
        %v1445 = vpop.f32.mrf.mxu0
        %v1446 = vadd.f32 0.0, %v1445
        %v1447 = vpop.f32.mrf.mxu0
        %1448 = vdwg.mxu0
        %1449 = vrot.lane.b32.xlu0 %v645, 48
        %v1450 = vpop.permute.xlu0 %1449
        %v1453 = vsel %vm747, %v1401, 0
        %1455 = vmatprep.subr.bf16.mxu0 0
        %1456 = vmatpush1.bf16.msra.mxu0 0
        %1457 = vmatprep.subr.bf16.mxu0 0
        %1458 = vmatpush1.bf16.msra.mxu0 0
        %1459 = vmatprep.subr.bf16.mxu0 0
        %1460 = vmatpush1.bf16.msra.mxu0 0
        %1461 = vmatprep.subr.bf16.mxu0 0
        %1462 = vmatpush1.bf16.msra.mxu0 0
        %1463 = vmatprep.subr.bf16.mxu0 0
        %1464 = vmatpush1.bf16.msra.mxu0 0
        %1465 = vmatprep.subr.bf16.mxu0 0
        %1466 = vmatpush1.bf16.msra.mxu0 0
        %1467 = vmatprep.subr.bf16.mxu0 0
        %1468 = vmatpush1.bf16.msra.mxu0 0
        %1469 = vmatprep.subr.bf16.mxu0 0
        %1470 = vmatpush1.bf16.msra.mxu0 %v1450
        %1471 = vmatprep.subr.bf16.mxu0 0
        %1472 = vmatpush2.bf16.msra.mxu0 0
        %1473 = vmatprep.subr.bf16.mxu0 0
        %1474 = vmatpush2.bf16.msra.mxu0 0
        %1475 = vmatprep.subr.bf16.mxu0 0
        %1476 = vmatpush2.bf16.msra.mxu0 0
        %1477 = vmatprep.subr.bf16.mxu0 0
        %1478 = vmatpush2.bf16.msra.mxu0 0
        %1479 = vmatprep.subr.bf16.mxu0 0
        %1480 = vmatpush2.bf16.msra.mxu0 0
        %1481 = vmatprep.subr.bf16.mxu0 0
        %1482 = vmatpush2.bf16.msra.mxu0 0
        %1483 = vmatprep.subr.bf16.mxu0 0
        %1484 = vmatpush2.bf16.msra.mxu0 0
        %1485 = vmatprep.subr.bf16.mxu0 0
        %1486 = vmatpush2.bf16.msra.mxu0 0
        %1487 = vmatprep.mubr.bf16.mxu0 0
        %1488 = vmatmul.mubr.bf16.gmra.mxu0 %v1453
        %v1489 = vpop.f32.mrf.mxu0
        %v1490 = vadd.f32 0.0, %v1489
        %v1491 = vpop.f32.mrf.mxu0
        %v1492 = vpop.f32.mrf.mxu0
        %v1493 = vadd.f32 0.0, %v1492
        %v1494 = vpop.f32.mrf.mxu0
        %1495 = vdwg.mxu0
        %v1496 = vpack.c.bf16 %v1446, %v1443
        %v1497 = vpack.c.bf16 %v1493, %v1490
        %s1498 = scalar_lea.vmem %s461, 8
        %v1499 = vld [vmem:[%s1498] sm:$0xf]
        %v1501 = vsel %vm649, %v1496, 0
        %v1504 = vsel %vm649, %v1497, 0
        %v1507 = vsel %vm1143, %v1499, 0
        %1509 = vmatprep.subr.bf16.mxu0 0
        %1510 = vmatpush1.bf16.msra.mxu0 0
        %1511 = vmatprep.subr.bf16.mxu0 0
        %1512 = vmatpush1.bf16.msra.mxu0 0
        %1513 = vmatprep.subr.bf16.mxu0 0
        %1514 = vmatpush1.bf16.msra.mxu0 0
        %1515 = vmatprep.subr.bf16.mxu0 0
        %1516 = vmatpush1.bf16.msra.mxu0 0
        %1517 = vmatprep.subr.bf16.mxu0 0
        %1518 = vmatpush1.bf16.msra.mxu0 0
        %1519 = vmatprep.subr.bf16.mxu0 0
        %1520 = vmatpush1.bf16.msra.mxu0 0
        %1521 = vmatprep.subr.bf16.mxu0 0
        %1522 = vmatpush1.bf16.msra.mxu0 0
        %1523 = vmatprep.subr.bf16.mxu0 0
        %1524 = vmatpush1.bf16.msra.mxu0 %v1507
        %1525 = vmatprep.subr.bf16.mxu0 0
        %1526 = vmatpush2.bf16.msra.mxu0 0
        %1527 = vmatprep.subr.bf16.mxu0 0
        %1528 = vmatpush2.bf16.msra.mxu0 0
        %1529 = vmatprep.subr.bf16.mxu0 0
        %1530 = vmatpush2.bf16.msra.mxu0 0
        %1531 = vmatprep.subr.bf16.mxu0 0
        %1532 = vmatpush2.bf16.msra.mxu0 0
        %1533 = vmatprep.subr.bf16.mxu0 0
        %1534 = vmatpush2.bf16.msra.mxu0 0
        %1535 = vmatprep.subr.bf16.mxu0 0
        %1536 = vmatpush2.bf16.msra.mxu0 0
        %1537 = vmatprep.subr.bf16.mxu0 0
        %1538 = vmatpush2.bf16.msra.mxu0 0
        %1539 = vmatprep.subr.bf16.mxu0 0
        %1540 = vmatpush2.bf16.msra.mxu0 0
        %1541 = vmatprep.mubr.bf16.mxu0 0
        %1542 = vmatmul.mubr.bf16.gmra.mxu0 %v1501
        %v1543 = vpop.f32.mrf.mxu0
        %v1544 = vadd.f32 0.0, %v1543
        %v1545 = vpop.f32.mrf.mxu0
        %v1546 = vpop.f32.mrf.mxu0
        %v1547 = vadd.f32 0.0, %v1546
        %v1548 = vpop.f32.mrf.mxu0
        %1549 = vmatprep.mubr.bf16.mxu0 0
        %1550 = vmatmul.mubr.bf16.gmra.mxu0 %v1504
        %v1551 = vpop.f32.mrf.mxu0
        %v1552 = vadd.f32 0.0, %v1551
        %v1553 = vpop.f32.mrf.mxu0
        %v1554 = vpop.f32.mrf.mxu0
        %v1555 = vadd.f32 0.0, %v1554
        %v1556 = vpop.f32.mrf.mxu0
        %1557 = vdwg.mxu0
        %v1558 = vadd.f32 %v1240, %v1544
        %v1559 = vadd.f32 %v1243, %v1547
        %v1560 = vadd.f32 %v1248, %v1552
        %v1561 = vadd.f32 %v1251, %v1555
        %1562 = vrot.lane.b32.xlu0 %v644, 104
        %v1563 = vpop.permute.xlu0 %1562
        %1564 = vrot.lane.b32.xlu0 %v644, 72
        %v1565 = vpop.permute.xlu0 %1564
        %v1567 = vsel %vm649, %v1563, 0
        %v1570 = vsel %vm649, %v1565, 0
        %1572 = vmatprep.subr.bf16.mxu0 0
        %1573 = vmatpush1.bf16.xpose.msra.mxu0 0
        %1574 = vmatprep.subr.bf16.mxu0 0
        %1575 = vmatpush1.bf16.xpose.msra.mxu0 0
        %1576 = vmatprep.subr.bf16.mxu0 0
        %1577 = vmatpush1.bf16.xpose.msra.mxu0 0
        %1578 = vmatprep.subr.bf16.mxu0 0
        %1579 = vmatpush1.bf16.xpose.msra.mxu0 0
        %1580 = vmatprep.subr.bf16.mxu0 0
        %1581 = vmatpush1.bf16.xpose.msra.mxu0 0
        %1582 = vmatprep.subr.bf16.mxu0 0
        %1583 = vmatpush1.bf16.xpose.msra.mxu0 0
        %1584 = vmatprep.subr.bf16.mxu0 0
        %1585 = vmatpush1.bf16.xpose.msra.mxu0 0
        %1586 = vmatprep.subr.bf16.mxu0 0
        %1587 = vmatpush1.bf16.xpose.msra.mxu0 %v1570
        %1588 = vmatprep.subr.bf16.mxu0 0
        %1589 = vmatpush2.bf16.xpose.msra.mxu0 0
        %1590 = vmatprep.subr.bf16.mxu0 0
        %1591 = vmatpush2.bf16.xpose.msra.mxu0 0
        %1592 = vmatprep.subr.bf16.mxu0 0
        %1593 = vmatpush2.bf16.xpose.msra.mxu0 0
        %1594 = vmatprep.subr.bf16.mxu0 0
        %1595 = vmatpush2.bf16.xpose.msra.mxu0 0
        %1596 = vmatprep.subr.bf16.mxu0 0
        %1597 = vmatpush2.bf16.xpose.msra.mxu0 0
        %1598 = vmatprep.subr.bf16.mxu0 0
        %1599 = vmatpush2.bf16.xpose.msra.mxu0 0
        %1600 = vmatprep.subr.bf16.mxu0 0
        %1601 = vmatpush2.bf16.xpose.msra.mxu0 0
        %1602 = vmatprep.subr.bf16.mxu0 0
        %1603 = vmatpush2.bf16.xpose.msra.mxu0 0
        %1604 = vmatprep.mubr.bf16.mxu0 0
        %1605 = vmatmul.mubr.bf16.gmra.mxu0 %v1567
        %v1606 = vpop.f32.mrf.mxu0
        %v1607 = vadd.f32 0.0, %v1606
        %v1608 = vpop.f32.mrf.mxu0
        %v1609 = vpop.f32.mrf.mxu0
        %v1610 = vadd.f32 0.0, %v1609
        %v1611 = vpop.f32.mrf.mxu0
        %1612 = vdwg.mxu0
        %1613 = vrot.lane.b32.xlu0 %v645, 104
        %v1614 = vpop.permute.xlu0 %1613
        %1615 = vrot.lane.b32.xlu0 %v645, 72
        %v1616 = vpop.permute.xlu0 %1615
        %v1618 = vsel %vm649, %v1614, 0
        %v1621 = vsel %vm649, %v1616, 0
        %1623 = vmatprep.subr.bf16.mxu0 0
        %1624 = vmatpush1.bf16.xpose.msra.mxu0 0
        %1625 = vmatprep.subr.bf16.mxu0 0
        %1626 = vmatpush1.bf16.xpose.msra.mxu0 0
        %1627 = vmatprep.subr.bf16.mxu0 0
        %1628 = vmatpush1.bf16.xpose.msra.mxu0 0
        %1629 = vmatprep.subr.bf16.mxu0 0
        %1630 = vmatpush1.bf16.xpose.msra.mxu0 0
        %1631 = vmatprep.subr.bf16.mxu0 0
        %1632 = vmatpush1.bf16.xpose.msra.mxu0 0
        %1633 = vmatprep.subr.bf16.mxu0 0
        %1634 = vmatpush1.bf16.xpose.msra.mxu0 0
        %1635 = vmatprep.subr.bf16.mxu0 0
        %1636 = vmatpush1.bf16.xpose.msra.mxu0 0
        %1637 = vmatprep.subr.bf16.mxu0 0
        %1638 = vmatpush1.bf16.xpose.msra.mxu0 %v1621
        %1639 = vmatprep.subr.bf16.mxu0 0
        %1640 = vmatpush2.bf16.xpose.msra.mxu0 0
        %1641 = vmatprep.subr.bf16.mxu0 0
        %1642 = vmatpush2.bf16.xpose.msra.mxu0 0
        %1643 = vmatprep.subr.bf16.mxu0 0
        %1644 = vmatpush2.bf16.xpose.msra.mxu0 0
        %1645 = vmatprep.subr.bf16.mxu0 0
        %1646 = vmatpush2.bf16.xpose.msra.mxu0 0
        %1647 = vmatprep.subr.bf16.mxu0 0
        %1648 = vmatpush2.bf16.xpose.msra.mxu0 0
        %1649 = vmatprep.subr.bf16.mxu0 0
        %1650 = vmatpush2.bf16.xpose.msra.mxu0 0
        %1651 = vmatprep.subr.bf16.mxu0 0
        %1652 = vmatpush2.bf16.xpose.msra.mxu0 0
        %1653 = vmatprep.subr.bf16.mxu0 0
        %1654 = vmatpush2.bf16.xpose.msra.mxu0 0
        %1655 = vmatprep.mubr.bf16.mxu0 0
        %1656 = vmatmul.mubr.bf16.gmra.mxu0 %v1618
        %v1657 = vpop.f32.mrf.mxu0
        %v1658 = vadd.f32 0.0, %v1657
        %v1659 = vpop.f32.mrf.mxu0
        %v1660 = vpop.f32.mrf.mxu0
        %v1661 = vadd.f32 0.0, %v1660
        %v1662 = vpop.f32.mrf.mxu0
        %1663 = vdwg.mxu0
        %v1664 = vsel %vm747, %v1607, -inf
        %1665 = vmax.xlane.f32.xlu0 %v1664
        %v1666 = vpop.xlane.xlu0 %1665
        %v1667 = vsel %vm747, %v1610, -inf
        %1668 = vmax.xlane.f32.xlu0 %v1667
        %v1669 = vpop.xlane.xlu0 %1668
        %v1670 = vsel %vm747, %v1658, -inf
        %1671 = vmax.xlane.f32.xlu0 %v1670
        %v1672 = vpop.xlane.xlu0 %1671
        %v1673 = vsel %vm747, %v1661, -inf
        %1674 = vmax.xlane.f32.xlu0 %v1673
        %v1675 = vpop.xlane.xlu0 %1674
        %v1676 = vsub.f32 %v1607, %v1666
        %v1677 = vsub.f32 %v1610, %v1669
        %v1678 = vsub.f32 %v1658, %v1672
        %v1679 = vsub.f32 %v1661, %v1675
        %v1680 = vmul.f32 %v1676, 1.442695
        %v1681 = vpow.pop %v1680
        %v1682 = vmul.f32 %v1677, 1.442695
        %v1683 = vpow.pop %v1682
        %v1684 = vmul.f32 %v1678, 1.442695
        %v1685 = vpow.pop %v1684
        %v1686 = vmul.f32 %v1679, 1.442695
        %v1687 = vpow.pop %v1686
        %v1688 = vsel %vm747, %v1681, 0.0
        %1689 = vadd.xlane.f32.xlu0 %v1688
        %v1690 = vpop.xlane.xlu0 %1689
        %v1691 = vsel %vm747, %v1683, 0.0
        %1692 = vadd.xlane.f32.xlu0 %v1691
        %v1693 = vpop.xlane.xlu0 %1692
        %v1694 = vsel %vm747, %v1685, 0.0
        %1695 = vadd.xlane.f32.xlu0 %v1694
        %v1696 = vpop.xlane.xlu0 %1695
        %v1697 = vsel %vm747, %v1687, 0.0
        %1698 = vadd.xlane.f32.xlu0 %v1697
        %v1699 = vpop.xlane.xlu0 %1698
        %v1700 = vrcp.pop %v1690
        %v1701 = vmul.f32 %v1681, %v1700
        %v1702 = vrcp.pop %v1693
        %v1703 = vmul.f32 %v1683, %v1702
        %v1704 = vrcp.pop %v1696
        %v1705 = vmul.f32 %v1685, %v1704
        %v1706 = vrcp.pop %v1699
        %v1707 = vmul.f32 %v1687, %v1706
        %v1708 = vpack.c.bf16 %v1703, %v1701
        %v1709 = vpack.c.bf16 %v1707, %v1705
        %1710 = vrot.lane.b32.xlu0 %v644, 40
        %v1711 = vpop.permute.xlu0 %1710
        %v1714 = vsel %vm747, %v1708, 0
        %1716 = vmatprep.subr.bf16.mxu0 0
        %1717 = vmatpush1.bf16.msra.mxu0 0
        %1718 = vmatprep.subr.bf16.mxu0 0
        %1719 = vmatpush1.bf16.msra.mxu0 0
        %1720 = vmatprep.subr.bf16.mxu0 0
        %1721 = vmatpush1.bf16.msra.mxu0 0
        %1722 = vmatprep.subr.bf16.mxu0 0
        %1723 = vmatpush1.bf16.msra.mxu0 0
        %1724 = vmatprep.subr.bf16.mxu0 0
        %1725 = vmatpush1.bf16.msra.mxu0 0
        %1726 = vmatprep.subr.bf16.mxu0 0
        %1727 = vmatpush1.bf16.msra.mxu0 0
        %1728 = vmatprep.subr.bf16.mxu0 0
        %1729 = vmatpush1.bf16.msra.mxu0 0
        %1730 = vmatprep.subr.bf16.mxu0 0
        %1731 = vmatpush1.bf16.msra.mxu0 %v1711
        %1732 = vmatprep.subr.bf16.mxu0 0
        %1733 = vmatpush2.bf16.msra.mxu0 0
        %1734 = vmatprep.subr.bf16.mxu0 0
        %1735 = vmatpush2.bf16.msra.mxu0 0
        %1736 = vmatprep.subr.bf16.mxu0 0
        %1737 = vmatpush2.bf16.msra.mxu0 0
        %1738 = vmatprep.subr.bf16.mxu0 0
        %1739 = vmatpush2.bf16.msra.mxu0 0
        %1740 = vmatprep.subr.bf16.mxu0 0
        %1741 = vmatpush2.bf16.msra.mxu0 0
        %1742 = vmatprep.subr.bf16.mxu0 0
        %1743 = vmatpush2.bf16.msra.mxu0 0
        %1744 = vmatprep.subr.bf16.mxu0 0
        %1745 = vmatpush2.bf16.msra.mxu0 0
        %1746 = vmatprep.subr.bf16.mxu0 0
        %1747 = vmatpush2.bf16.msra.mxu0 0
        %1748 = vmatprep.mubr.bf16.mxu0 0
        %1749 = vmatmul.mubr.bf16.gmra.mxu0 %v1714
        %v1750 = vpop.f32.mrf.mxu0
        %v1751 = vadd.f32 0.0, %v1750
        %v1752 = vpop.f32.mrf.mxu0
        %v1753 = vpop.f32.mrf.mxu0
        %v1754 = vadd.f32 0.0, %v1753
        %v1755 = vpop.f32.mrf.mxu0
        %1756 = vdwg.mxu0
        %1757 = vrot.lane.b32.xlu0 %v645, 40
        %v1758 = vpop.permute.xlu0 %1757
        %v1761 = vsel %vm747, %v1709, 0
        %1763 = vmatprep.subr.bf16.mxu0 0
        %1764 = vmatpush1.bf16.msra.mxu0 0
        %1765 = vmatprep.subr.bf16.mxu0 0
        %1766 = vmatpush1.bf16.msra.mxu0 0
        %1767 = vmatprep.subr.bf16.mxu0 0
        %1768 = vmatpush1.bf16.msra.mxu0 0
        %1769 = vmatprep.subr.bf16.mxu0 0
        %1770 = vmatpush1.bf16.msra.mxu0 0
        %1771 = vmatprep.subr.bf16.mxu0 0
        %1772 = vmatpush1.bf16.msra.mxu0 0
        %1773 = vmatprep.subr.bf16.mxu0 0
        %1774 = vmatpush1.bf16.msra.mxu0 0
        %1775 = vmatprep.subr.bf16.mxu0 0
        %1776 = vmatpush1.bf16.msra.mxu0 0
        %1777 = vmatprep.subr.bf16.mxu0 0
        %1778 = vmatpush1.bf16.msra.mxu0 %v1758
        %1779 = vmatprep.subr.bf16.mxu0 0
        %1780 = vmatpush2.bf16.msra.mxu0 0
        %1781 = vmatprep.subr.bf16.mxu0 0
        %1782 = vmatpush2.bf16.msra.mxu0 0
        %1783 = vmatprep.subr.bf16.mxu0 0
        %1784 = vmatpush2.bf16.msra.mxu0 0
        %1785 = vmatprep.subr.bf16.mxu0 0
        %1786 = vmatpush2.bf16.msra.mxu0 0
        %1787 = vmatprep.subr.bf16.mxu0 0
        %1788 = vmatpush2.bf16.msra.mxu0 0
        %1789 = vmatprep.subr.bf16.mxu0 0
        %1790 = vmatpush2.bf16.msra.mxu0 0
        %1791 = vmatprep.subr.bf16.mxu0 0
        %1792 = vmatpush2.bf16.msra.mxu0 0
        %1793 = vmatprep.subr.bf16.mxu0 0
        %1794 = vmatpush2.bf16.msra.mxu0 0
        %1795 = vmatprep.mubr.bf16.mxu0 0
        %1796 = vmatmul.mubr.bf16.gmra.mxu0 %v1761
        %v1797 = vpop.f32.mrf.mxu0
        %v1798 = vadd.f32 0.0, %v1797
        %v1799 = vpop.f32.mrf.mxu0
        %v1800 = vpop.f32.mrf.mxu0
        %v1801 = vadd.f32 0.0, %v1800
        %v1802 = vpop.f32.mrf.mxu0
        %1803 = vdwg.mxu0
        %v1804 = vpack.c.bf16 %v1754, %v1751
        %v1805 = vpack.c.bf16 %v1801, %v1798
        %s1806 = scalar_lea.vmem %s461, 12
        %v1807 = vld [vmem:[%s1806] sm:$0xf]
        %v1809 = vsel %vm649, %v1804, 0
        %v1812 = vsel %vm649, %v1805, 0
        %v1815 = vsel %vm1143, %v1807, 0
        %1817 = vmatprep.subr.bf16.mxu0 0
        %1818 = vmatpush1.bf16.msra.mxu0 0
        %1819 = vmatprep.subr.bf16.mxu0 0
        %1820 = vmatpush1.bf16.msra.mxu0 0
        %1821 = vmatprep.subr.bf16.mxu0 0
        %1822 = vmatpush1.bf16.msra.mxu0 0
        %1823 = vmatprep.subr.bf16.mxu0 0
        %1824 = vmatpush1.bf16.msra.mxu0 0
        %1825 = vmatprep.subr.bf16.mxu0 0
        %1826 = vmatpush1.bf16.msra.mxu0 0
        %1827 = vmatprep.subr.bf16.mxu0 0
        %1828 = vmatpush1.bf16.msra.mxu0 0
        %1829 = vmatprep.subr.bf16.mxu0 0
        %1830 = vmatpush1.bf16.msra.mxu0 0
        %1831 = vmatprep.subr.bf16.mxu0 0
        %1832 = vmatpush1.bf16.msra.mxu0 %v1815
        %1833 = vmatprep.subr.bf16.mxu0 0
        %1834 = vmatpush2.bf16.msra.mxu0 0
        %1835 = vmatprep.subr.bf16.mxu0 0
        %1836 = vmatpush2.bf16.msra.mxu0 0
        %1837 = vmatprep.subr.bf16.mxu0 0
        %1838 = vmatpush2.bf16.msra.mxu0 0
        %1839 = vmatprep.subr.bf16.mxu0 0
        %1840 = vmatpush2.bf16.msra.mxu0 0
        %1841 = vmatprep.subr.bf16.mxu0 0
        %1842 = vmatpush2.bf16.msra.mxu0 0
        %1843 = vmatprep.subr.bf16.mxu0 0
        %1844 = vmatpush2.bf16.msra.mxu0 0
        %1845 = vmatprep.subr.bf16.mxu0 0
        %1846 = vmatpush2.bf16.msra.mxu0 0
        %1847 = vmatprep.subr.bf16.mxu0 0
        %1848 = vmatpush2.bf16.msra.mxu0 0
        %1849 = vmatprep.mubr.bf16.mxu0 0
        %1850 = vmatmul.mubr.bf16.gmra.mxu0 %v1809
        %v1851 = vpop.f32.mrf.mxu0
        %v1852 = vadd.f32 0.0, %v1851
        %v1853 = vpop.f32.mrf.mxu0
        %v1854 = vpop.f32.mrf.mxu0
        %v1855 = vadd.f32 0.0, %v1854
        %v1856 = vpop.f32.mrf.mxu0
        %1857 = vmatprep.mubr.bf16.mxu0 0
        %1858 = vmatmul.mubr.bf16.gmra.mxu0 %v1812
        %v1859 = vpop.f32.mrf.mxu0
        %v1860 = vadd.f32 0.0, %v1859
        %v1861 = vpop.f32.mrf.mxu0
        %v1862 = vpop.f32.mrf.mxu0
        %v1863 = vadd.f32 0.0, %v1862
        %v1864 = vpop.f32.mrf.mxu0
        %1865 = vdwg.mxu0
        %v1866 = vadd.f32 %v1558, %v1852
        %v1867 = vadd.f32 %v1559, %v1855
        %v1868 = vadd.f32 %v1560, %v1860
        %v1869 = vadd.f32 %v1561, %v1863
        %v1870 = vadd.f32 %v492, %v1866
        %v1871 = vadd.f32 %v493, %v1867
        %v1872 = vadd.f32 %v494, %v1868
        %v1873 = vadd.f32 %v495, %v1869
        %v1874 = vlaneseq
        %v1875 = vshrl.u32 %v1874, 7
        %v1876 = vsub.s32 5, %v1875
        %v1877 = vrot.slane %v496, %v1876
        %v1878 = vadd.f32 %v1870, %v1877
        %v1879 = vadd.f32 %v1871, %v1877
        %v1880 = vadd.f32 %v1872, %v1877
        %v1881 = vadd.f32 %v1873, %v1877
        %v1882 = vsel %vm497, %v1878, 0.0
        %1883 = vadd.xlane.f32.xlu0 %v1882
        %v1884 = vpop.xlane.xlu0 %1883
        %v1885 = vsel %vm497, %v1879, 0.0
        %1886 = vadd.xlane.f32.xlu0 %v1885
        %v1887 = vpop.xlane.xlu0 %1886
        %v1888 = vsel %vm497, %v1880, 0.0
        %1889 = vadd.xlane.f32.xlu0 %v1888
        %v1890 = vpop.xlane.xlu0 %1889
        %v1891 = vsel %vm497, %v1881, 0.0
        %1892 = vadd.xlane.f32.xlu0 %v1891
        %v1893 = vpop.xlane.xlu0 %1892
        %v1894 = vmul.f32 %v1884, %v510
        %v1895 = vmul.f32 %v1887, %v510
        %v1896 = vmul.f32 %v1890, %v510
        %v1897 = vmul.f32 %v1893, %v510
        %v1898 = vsub.f32 %v1878, %v1894
        %v1899 = vsub.f32 %v1879, %v1895
        %v1900 = vsub.f32 %v1880, %v1896
        %v1901 = vsub.f32 %v1881, %v1897
        %v1902 = vmul.f32 %v1898, %v1898
        %v1903 = vmul.f32 %v1899, %v1899
        %v1904 = vmul.f32 %v1900, %v1900
        %v1905 = vmul.f32 %v1901, %v1901
        %v1906 = vsel %vm497, %v1902, 0.0
        %1907 = vadd.xlane.f32.xlu0 %v1906
        %v1908 = vpop.xlane.xlu0 %1907
        %v1909 = vsel %vm497, %v1903, 0.0
        %1910 = vadd.xlane.f32.xlu0 %v1909
        %v1911 = vpop.xlane.xlu0 %1910
        %v1912 = vsel %vm497, %v1904, 0.0
        %1913 = vadd.xlane.f32.xlu0 %v1912
        %v1914 = vpop.xlane.xlu0 %1913
        %v1915 = vsel %vm497, %v1905, 0.0
        %1916 = vadd.xlane.f32.xlu0 %v1915
        %v1917 = vpop.xlane.xlu0 %1916
        %v1918 = vmul.f32 %v1908, %v510
        %v1919 = vmul.f32 %v1911, %v510
        %v1920 = vmul.f32 %v1914, %v510
        %v1921 = vmul.f32 %v1917, %v510
        %v1922 = vadd.f32 %v1918, 1e-05
        %v1923 = vadd.f32 %v1919, 1e-05
        %v1924 = vadd.f32 %v1920, 1e-05
        %v1925 = vadd.f32 %v1921, 1e-05
        %v1926 = vrsqrt.pop %v1922
        %v1927 = vrsqrt.pop %v1923
        %v1928 = vrsqrt.pop %v1924
        %v1929 = vrsqrt.pop %v1925
        %v1930 = vmul.f32 %v1898, %v1926
        %v1931 = vmul.f32 %v1899, %v1927
        %v1932 = vmul.f32 %v1900, %v1928
        %v1933 = vmul.f32 %v1901, %v1929
        %v1934 = vlaneseq
        %v1935 = vshrl.u32 %v1934, 7
        %v1936 = vsub.s32 2, %v1935
        %v1937 = vrot.slane %v496, %v1936
        %v1938 = vmul.f32 %v1930, %v1937
        %v1939 = vmul.f32 %v1931, %v1937
        %v1940 = vmul.f32 %v1932, %v1937
        %v1941 = vmul.f32 %v1933, %v1937
        %v1942 = vlaneseq
        %v1943 = vshrl.u32 %v1942, 7
        %v1944 = vsub.s32 3, %v1943
        %v1945 = vrot.slane %v496, %v1944
        %v1946 = vadd.f32 %v1938, %v1945
        %v1947 = vadd.f32 %v1939, %v1945
        %v1948 = vadd.f32 %v1940, %v1945
        %v1949 = vadd.f32 %v1941, %v1945
        %v1950 = vpack.c.bf16 %v1947, %v1946
        %v1951 = vpack.c.bf16 %v1949, %v1948
        %v1952 = vld [vmem:[%s466] sm:$0xf]
        %v1953 = vld [vmem:[%s466 + $0x4] sm:$0xf]
        %v1954 = vld [vmem:[%s466 + $0x8] sm:$0xf]
        %v1955 = vld [vmem:[%s466 + $0xc] sm:$0xf]
        %v1956 = vlaneseq
        %v1957 = vshrl.u32 %v1956, 7
        %v1958 = vsub.s32 6, %v1957
        %v1959 = vrot.slane %v496, %v1958
        %v1964 = vunpack.c.l.b16 %v1952
        %v1965 = vunpack.c.l.b16 %v1953
        %v1966 = vunpack.c.l.b16 %v1954
        %v1967 = vunpack.c.l.b16 %v1955
        %v1968 = vpack.c.b16 %v1965, %v1964
        %v1969 = vpack.c.b16 %v1967, %v1966
        %v1973 = vsel %vm497, %v1950, 0
        %v1976 = vsel %vm497, %v1951, 0
        %1978 = vmatprep.subr.bf16.mxu0 0
        %1979 = vmatpush1.bf16.msra.mxu0 0
        %1980 = vmatprep.subr.bf16.mxu0 0
        %1981 = vmatpush1.bf16.msra.mxu0 0
        %1982 = vmatprep.subr.bf16.mxu0 0
        %1983 = vmatpush1.bf16.msra.mxu0 0
        %1984 = vmatprep.subr.bf16.mxu0 0
        %1985 = vmatpush1.bf16.msra.mxu0 0
        %1986 = vmatprep.subr.bf16.mxu0 0
        %1987 = vmatpush1.bf16.msra.mxu0 0
        %1988 = vmatprep.subr.bf16.mxu0 0
        %1989 = vmatpush1.bf16.msra.mxu0 0
        %1990 = vmatprep.subr.bf16.mxu0 0
        %1991 = vmatpush1.bf16.msra.mxu0 %v1969
        %1992 = vmatprep.subr.bf16.mxu0 0
        %1993 = vmatpush1.bf16.msra.mxu0 %v1968
        %1994 = vmatprep.subr.bf16.mxu0 0
        %1995 = vmatpush2.bf16.msra.mxu0 0
        %1996 = vmatprep.subr.bf16.mxu0 0
        %1997 = vmatpush2.bf16.msra.mxu0 0
        %1998 = vmatprep.subr.bf16.mxu0 0
        %1999 = vmatpush2.bf16.msra.mxu0 0
        %2000 = vmatprep.subr.bf16.mxu0 0
        %2001 = vmatpush2.bf16.msra.mxu0 0
        %2002 = vmatprep.subr.bf16.mxu0 0
        %2003 = vmatpush2.bf16.msra.mxu0 0
        %2004 = vmatprep.subr.bf16.mxu0 0
        %2005 = vmatpush2.bf16.msra.mxu0 0
        %2006 = vmatprep.subr.bf16.mxu0 0
        %2007 = vmatpush2.bf16.msra.mxu0 0
        %2008 = vmatprep.subr.bf16.mxu0 0
        %2009 = vmatpush2.bf16.msra.mxu0 0
        %2010 = vmatprep.mubr.bf16.mxu0 0
        %2011 = vmatmul.mubr.bf16.gmra.mxu0 %v1973
        %v2012 = vpop.f32.mrf.mxu0
        %v2013 = vadd.f32 %v1959, %v2012
        %v2014 = vpop.f32.mrf.mxu0
        %v2015 = vpop.f32.mrf.mxu0
        %v2016 = vadd.f32 %v1959, %v2015
        %v2017 = vpop.f32.mrf.mxu0
        %2018 = vmatprep.mubr.bf16.mxu0 0
        %2019 = vmatmul.mubr.bf16.gmra.mxu0 %v1976
        %v2020 = vpop.f32.mrf.mxu0
        %v2021 = vadd.f32 %v1959, %v2020
        %v2022 = vpop.f32.mrf.mxu0
        %v2023 = vpop.f32.mrf.mxu0
        %v2024 = vadd.f32 %v1959, %v2023
        %v2025 = vpop.f32.mrf.mxu0
        %2026 = vdwg.mxu0
        %v2027 = vmul.f32 %v2013, 0.5
        %v2028 = vmul.f32 %v2016, 0.5
        %v2029 = vmul.f32 %v2021, 0.5
        %v2030 = vmul.f32 %v2024, 0.5
        %v2031 = vmul.f32 %v2013, 0.70710677
        %v2032 = vmul.f32 %v2016, 0.70710677
        %v2033 = vmul.f32 %v2021, 0.70710677
        %v2034 = vmul.f32 %v2024, 0.70710677
        %vm2035 = vcmp.ge.f32.partialorder %v2031, 0.0
        %vm2036 = vcmp.ge.f32.partialorder %v2032, 0.0
        %vm2037 = vcmp.ge.f32.partialorder %v2033, 0.0
        %vm2038 = vcmp.ge.f32.partialorder %v2034, 0.0
        %v2039 = vsel %vm2035, 1.0, -1.0
        %v2040 = vsel %vm2036, 1.0, -1.0
        %v2041 = vsel %vm2037, 1.0, -1.0
        %v2042 = vsel %vm2038, 1.0, -1.0
        %v2043 = vand.u32 2147483647, %v2031
        %v2044 = vand.u32 2147483647, %v2032
        %v2045 = vand.u32 2147483647, %v2033
        %v2046 = vand.u32 2147483647, %v2034
        %v2047 = vmul.f32 %v2043, 0.3275911
        %v2048 = vmul.f32 %v2044, 0.3275911
        %v2049 = vmul.f32 %v2045, 0.3275911
        %v2050 = vmul.f32 %v2046, 0.3275911
        %v2051 = vadd.f32 %v2047, 1.0
        %v2052 = vadd.f32 %v2048, 1.0
        %v2053 = vadd.f32 %v2049, 1.0
        %v2054 = vadd.f32 %v2050, 1.0
        %v2055 = vrcp.pop %v2051
        %v2056 = vmul.f32 1.0, %v2055
        %v2057 = vrcp.pop %v2052
        %v2058 = vmul.f32 1.0, %v2057
        %v2059 = vrcp.pop %v2053
        %v2060 = vmul.f32 1.0, %v2059
        %v2061 = vrcp.pop %v2054
        %v2062 = vmul.f32 1.0, %v2061
        %v2063 = vmul.f32 %v2056, 1.0614054
        %v2064 = vmul.f32 %v2058, 1.0614054
        %v2065 = vmul.f32 %v2060, 1.0614054
        %v2066 = vmul.f32 %v2062, 1.0614054
        %v2067 = vadd.f32 %v2063, -1.4531521
        %v2068 = vadd.f32 %v2064, -1.4531521
        %v2069 = vadd.f32 %v2065, -1.4531521
        %v2070 = vadd.f32 %v2066, -1.4531521
        %v2071 = vmul.f32 %v2056, %v2067
        %v2072 = vmul.f32 %v2058, %v2068
        %v2073 = vmul.f32 %v2060, %v2069
        %v2074 = vmul.f32 %v2062, %v2070
        %v2075 = vadd.f32 %v2071, 1.4214138
        %v2076 = vadd.f32 %v2072, 1.4214138
        %v2077 = vadd.f32 %v2073, 1.4214138
        %v2078 = vadd.f32 %v2074, 1.4214138
        %v2079 = vmul.f32 %v2056, %v2075
        %v2080 = vmul.f32 %v2058, %v2076
        %v2081 = vmul.f32 %v2060, %v2077
        %v2082 = vmul.f32 %v2062, %v2078
        %v2083 = vadd.f32 %v2079, -0.28449672
        %v2084 = vadd.f32 %v2080, -0.28449672
        %v2085 = vadd.f32 %v2081, -0.28449672
        %v2086 = vadd.f32 %v2082, -0.28449672
        %v2087 = vmul.f32 %v2056, %v2083
        %v2088 = vmul.f32 %v2058, %v2084
        %v2089 = vmul.f32 %v2060, %v2085
        %v2090 = vmul.f32 %v2062, %v2086
        %v2091 = vadd.f32 %v2087, 0.2548296
        %v2092 = vadd.f32 %v2088, 0.2548296
        %v2093 = vadd.f32 %v2089, 0.2548296
        %v2094 = vadd.f32 %v2090, 0.2548296
        %v2095 = vmul.f32 %v2056, %v2091
        %v2096 = vmul.f32 %v2058, %v2092
        %v2097 = vmul.f32 %v2060, %v2093
        %v2098 = vmul.f32 %v2062, %v2094
        %v2099 = vsub.f32 0.0, %v2043
        %v2100 = vsub.f32 0.0, %v2044
        %v2101 = vsub.f32 0.0, %v2045
        %v2102 = vsub.f32 0.0, %v2046
        %v2103 = vmul.f32 %v2099, %v2043
        %v2104 = vmul.f32 %v2100, %v2044
        %v2105 = vmul.f32 %v2101, %v2045
        %v2106 = vmul.f32 %v2102, %v2046
        %v2107 = vmul.f32 %v2103, 1.442695
        %v2108 = vpow.pop %v2107
        %v2109 = vmul.f32 %v2104, 1.442695
        %v2110 = vpow.pop %v2109
        %v2111 = vmul.f32 %v2105, 1.442695
        %v2112 = vpow.pop %v2111
        %v2113 = vmul.f32 %v2106, 1.442695
        %v2114 = vpow.pop %v2113
        %v2115 = vmul.f32 %v2095, %v2108
        %v2116 = vmul.f32 %v2096, %v2110
        %v2117 = vmul.f32 %v2097, %v2112
        %v2118 = vmul.f32 %v2098, %v2114
        %v2119 = vsub.f32 1.0, %v2115
        %v2120 = vsub.f32 1.0, %v2116
        %v2121 = vsub.f32 1.0, %v2117
        %v2122 = vsub.f32 1.0, %v2118
        %v2123 = vmul.f32 %v2039, %v2119
        %v2124 = vmul.f32 %v2040, %v2120
        %v2125 = vmul.f32 %v2041, %v2121
        %v2126 = vmul.f32 %v2042, %v2122
        %v2127 = vadd.f32 %v2123, 1.0
        %v2128 = vadd.f32 %v2124, 1.0
        %v2129 = vadd.f32 %v2125, 1.0
        %v2130 = vadd.f32 %v2126, 1.0
        %v2131 = vmul.f32 %v2027, %v2127
        %v2132 = vmul.f32 %v2028, %v2128
        %v2133 = vmul.f32 %v2029, %v2129
        %v2134 = vmul.f32 %v2030, %v2130
        %v2135 = vpack.c.bf16 %v2132, %v2131
        %v2136 = vpack.c.bf16 %v2134, %v2133
        %v2137 = vld [vmem:[%s471] sm:$0xf]
        %v2138 = vld [vmem:[%s471 + $0x4] sm:$0xf]
        %v2139 = vld [vmem:[%s471 + $0x8] sm:$0xf]
        %v2140 = vld [vmem:[%s471 + $0xc] sm:$0xf]
        %v2141 = vld [vmem:[%s471 + $0x10] sm:$0xf]
        %v2142 = vld [vmem:[%s471 + $0x14] sm:$0xf]
        %v2143 = vld [vmem:[%s471 + $0x18] sm:$0xf]
        %v2144 = vld [vmem:[%s471 + $0x1c] sm:$0xf]
        %v2145 = vld [vmem:[%s471 + $0x20] sm:$0xf]
        %v2146 = vld [vmem:[%s471 + $0x24] sm:$0xf]
        %v2147 = vld [vmem:[%s471 + $0x28] sm:$0xf]
        %v2148 = vld [vmem:[%s471 + $0x2c] sm:$0xf]
        %v2149 = vld [vmem:[%s471 + $0x30] sm:$0xf]
        %v2150 = vld [vmem:[%s471 + $0x34] sm:$0xf]
        %v2151 = vld [vmem:[%s471 + $0x38] sm:$0xf]
        %v2152 = vld [vmem:[%s471 + $0x3c] sm:$0xf]
        %v2153 = vlaneseq
        %v2154 = vshrl.u32 %v2153, 7
        %v2155 = vsub.s32 7, %v2154
        %v2156 = vrot.slane %v496, %v2155
        %v2173 = vunpack.c.l.b16 %v2137
        %v2174 = vunpack.c.l.b16 %v2138
        %v2175 = vunpack.c.l.b16 %v2139
        %v2176 = vunpack.c.l.b16 %v2140
        %v2177 = vunpack.c.l.b16 %v2141
        %v2178 = vunpack.c.l.b16 %v2142
        %v2179 = vunpack.c.l.b16 %v2143
        %v2180 = vunpack.c.l.b16 %v2144
        %v2181 = vunpack.c.l.b16 %v2145
        %v2182 = vunpack.c.l.b16 %v2146
        %v2183 = vunpack.c.l.b16 %v2147
        %v2184 = vunpack.c.l.b16 %v2148
        %v2185 = vunpack.c.l.b16 %v2149
        %v2186 = vunpack.c.l.b16 %v2150
        %v2187 = vunpack.c.l.b16 %v2151
        %v2188 = vunpack.c.l.b16 %v2152
        %v2189 = vpack.c.b16 %v2174, %v2173
        %v2190 = vpack.c.b16 %v2176, %v2175
        %v2191 = vpack.c.b16 %v2178, %v2177
        %v2192 = vpack.c.b16 %v2180, %v2179
        %v2193 = vpack.c.b16 %v2182, %v2181
        %v2194 = vpack.c.b16 %v2184, %v2183
        %v2195 = vpack.c.b16 %v2186, %v2185
        %v2196 = vpack.c.b16 %v2188, %v2187
        %2205 = vmatprep.subr.bf16.mxu0 0
        %2206 = vmatpush1.bf16.msra.mxu0 %v2196
        %2207 = vmatprep.subr.bf16.mxu0 0
        %2208 = vmatpush1.bf16.msra.mxu0 %v2195
        %2209 = vmatprep.subr.bf16.mxu0 0
        %2210 = vmatpush1.bf16.msra.mxu0 %v2194
        %2211 = vmatprep.subr.bf16.mxu0 0
        %2212 = vmatpush1.bf16.msra.mxu0 %v2193
        %2213 = vmatprep.subr.bf16.mxu0 0
        %2214 = vmatpush1.bf16.msra.mxu0 %v2192
        %2215 = vmatprep.subr.bf16.mxu0 0
        %2216 = vmatpush1.bf16.msra.mxu0 %v2191
        %2217 = vmatprep.subr.bf16.mxu0 0
        %2218 = vmatpush1.bf16.msra.mxu0 %v2190
        %2219 = vmatprep.subr.bf16.mxu0 0
        %2220 = vmatpush1.bf16.msra.mxu0 %v2189
        %2221 = vmatprep.subr.bf16.mxu0 0
        %2222 = vmatpush2.bf16.msra.mxu0 0
        %2223 = vmatprep.subr.bf16.mxu0 0
        %2224 = vmatpush2.bf16.msra.mxu0 0
        %2225 = vmatprep.subr.bf16.mxu0 0
        %2226 = vmatpush2.bf16.msra.mxu0 0
        %2227 = vmatprep.subr.bf16.mxu0 0
        %2228 = vmatpush2.bf16.msra.mxu0 0
        %2229 = vmatprep.subr.bf16.mxu0 0
        %2230 = vmatpush2.bf16.msra.mxu0 0
        %2231 = vmatprep.subr.bf16.mxu0 0
        %2232 = vmatpush2.bf16.msra.mxu0 0
        %2233 = vmatprep.subr.bf16.mxu0 0
        %2234 = vmatpush2.bf16.msra.mxu0 0
        %2235 = vmatprep.subr.bf16.mxu0 0
        %2236 = vmatpush2.bf16.msra.mxu0 0
        %2237 = vmatprep.mubr.bf16.mxu0 0
        %2238 = vmatmul.mubr.bf16.gmra.mxu0 %v2135
        %v2239 = vpop.f32.mrf.mxu0
        %v2240 = vadd.f32 %v2156, %v2239
        %v2241 = vpop.f32.mrf.mxu0
        %v2242 = vpop.f32.mrf.mxu0
        %v2243 = vadd.f32 %v2156, %v2242
        %v2244 = vpop.f32.mrf.mxu0
        %2245 = vmatprep.mubr.bf16.mxu0 0
        %2246 = vmatmul.mubr.bf16.gmra.mxu0 %v2136
        %v2247 = vpop.f32.mrf.mxu0
        %v2248 = vadd.f32 %v2156, %v2247
        %v2249 = vpop.f32.mrf.mxu0
        %v2250 = vpop.f32.mrf.mxu0
        %v2251 = vadd.f32 %v2156, %v2250
        %v2252 = vpop.f32.mrf.mxu0
        %2253 = vdwg.mxu0
        %v2254 = vadd.f32 %v1878, %v2240
        %v2255 = vadd.f32 %v1879, %v2243
        %v2256 = vadd.f32 %v1880, %v2248
        %v2257 = vadd.f32 %v1881, %v2251
        %2258 = vst.msk [vmem:[#allocation2] sm:$0xff] %vm497, %v2254
        %2259 = vst.msk [vmem:[#allocation2 + $0x8] sm:$0xff] %vm497, %v2255
        %2260 = vst.msk [vmem:[#allocation2 + $0x10] sm:$0xff] %vm497, %v2256
        %2261 = vst.msk [vmem:[#allocation2 + $0x18] sm:$0xff] %vm497, %v2257
        %p2262 = scmp.eq.s32.totalorder %s29, 2
        // Predicated region
        $region65: #{cct_forward.3} parent=59 // pred_check
          %p2263 = pneg %p2262
        $region66: #{cct_forward.3} parent=59 // pred_check_branch
          %2265 = sbr.rel (%p2263) target = $region68
        $region67: #{cct_forward.3} parent=59 // pred_region
          %v2266 = vld [vmem:[%s7] sm:$0x1]
          %v2267 = vld [vmem:[%s7 + $0x1] sm:$0x1]
          %v2268 = vsel %vm497, %v2254, 0.0
          %2269 = vadd.xlane.f32.xlu0 %v2268
          %v2270 = vpop.xlane.xlu0 %2269
          %v2271 = vsel %vm497, %v2255, 0.0
          %2272 = vadd.xlane.f32.xlu0 %v2271
          %v2273 = vpop.xlane.xlu0 %2272
          %v2274 = vsel %vm497, %v2256, 0.0
          %2275 = vadd.xlane.f32.xlu0 %v2274
          %v2276 = vpop.xlane.xlu0 %2275
          %v2277 = vsel %vm497, %v2257, 0.0
          %2278 = vadd.xlane.f32.xlu0 %v2277
          %v2279 = vpop.xlane.xlu0 %2278
          %v2280 = vmul.f32 %v2270, %v510
          %v2281 = vmul.f32 %v2273, %v510
          %v2282 = vmul.f32 %v2276, %v510
          %v2283 = vmul.f32 %v2279, %v510
          %v2284 = vsub.f32 %v2254, %v2280
          %v2285 = vsub.f32 %v2255, %v2281
          %v2286 = vsub.f32 %v2256, %v2282
          %v2287 = vsub.f32 %v2257, %v2283
          %v2288 = vmul.f32 %v2284, %v2284
          %v2289 = vmul.f32 %v2285, %v2285
          %v2290 = vmul.f32 %v2286, %v2286
          %v2291 = vmul.f32 %v2287, %v2287
          %v2292 = vsel %vm497, %v2288, 0.0
          %2293 = vadd.xlane.f32.xlu0 %v2292
          %v2294 = vpop.xlane.xlu0 %2293
          %v2295 = vsel %vm497, %v2289, 0.0
          %2296 = vadd.xlane.f32.xlu0 %v2295
          %v2297 = vpop.xlane.xlu0 %2296
          %v2298 = vsel %vm497, %v2290, 0.0
          %2299 = vadd.xlane.f32.xlu0 %v2298
          %v2300 = vpop.xlane.xlu0 %2299
          %v2301 = vsel %vm497, %v2291, 0.0
          %2302 = vadd.xlane.f32.xlu0 %v2301
          %v2303 = vpop.xlane.xlu0 %2302
          %v2304 = vmul.f32 %v2294, %v510
          %v2305 = vmul.f32 %v2297, %v510
          %v2306 = vmul.f32 %v2300, %v510
          %v2307 = vmul.f32 %v2303, %v510
          %v2308 = vadd.f32 %v2304, 1e-05
          %v2309 = vadd.f32 %v2305, 1e-05
          %v2310 = vadd.f32 %v2306, 1e-05
          %v2311 = vadd.f32 %v2307, 1e-05
          %v2312 = vrsqrt.pop %v2308
          %v2313 = vrsqrt.pop %v2309
          %v2314 = vrsqrt.pop %v2310
          %v2315 = vrsqrt.pop %v2311
          %v2316 = vmul.f32 %v2284, %v2312
          %v2317 = vmul.f32 %v2285, %v2313
          %v2318 = vmul.f32 %v2286, %v2314
          %v2319 = vmul.f32 %v2287, %v2315
          %v2320 = vlaneseq
          %v2321 = vshrl.u32 %v2320, 7
          %v2322 = vsub.s32 0, %v2321
          %v2323 = vrot.slane %v2266, %v2322
          %v2324 = vmul.f32 %v2316, %v2323
          %v2325 = vmul.f32 %v2317, %v2323
          %v2326 = vmul.f32 %v2318, %v2323
          %v2327 = vmul.f32 %v2319, %v2323
          %v2328 = vlaneseq
          %v2329 = vshrl.u32 %v2328, 7
          %v2330 = vsub.s32 0, %v2329
          %v2331 = vrot.slane %v2267, %v2330
          %v2332 = vadd.f32 %v2324, %v2331
          %v2333 = vadd.f32 %v2325, %v2331
          %v2334 = vadd.f32 %v2326, %v2331
          %v2335 = vadd.f32 %v2327, %v2331
          %v2336 = vsel %vm497, %v2332, 0.0
          %v2337 = vsel %vm497, %v2333, 0.0
          %v2338 = vadd.f32 %v2336, %v2337
          %v2339 = vrot.slane %v2338, 4
          %v2340 = vadd.f32 %v2338, %v2339
          %v2341 = vrot.slane %v2340, 2
          %v2342 = vadd.f32 %v2340, %v2341
          %v2343 = vrot.slane %v2342, 1
          %v2344 = vadd.f32 %v2342, %v2343
          %v2345 = vsel %vm497, %v2334, 0.0
          %v2346 = vsel %vm497, %v2335, 0.0
          %v2347 = vadd.f32 %v2345, %v2346
          %v2348 = vrot.slane %v2347, 4
          %v2349 = vadd.f32 %v2347, %v2348
          %v2350 = vrot.slane %v2349, 2
          %v2351 = vadd.f32 %v2349, %v2350
          %v2352 = vrot.slane %v2351, 1
          %v2353 = vadd.f32 %v2351, %v2352
          %v2354 = vpack.c.bf16 %v2344, %v2344
          %v2355 = vpack.c.bf16 %v2353, %v2353
          %v2356 = vld [vmem:[%s8] sm:$0xf]
          %v2357 = vld [vmem:[%s8 + $0x4] sm:$0xf]
          %v2358 = vld [vmem:[%s8 + $0x8] sm:$0xf]
          %v2359 = vld [vmem:[%s8 + $0xc] sm:$0xf]
          %v2360 = vld [vmem:[%s9] sm:$0x1]
          %v2362 = vlaneseq
          %v2363 = vshrl.u32 %v2362, 7
          %v2364 = vsub.s32 0, %v2363
          %v2365 = vrot.slane %v2360, %v2364
          %v2369 = vunpack.c.l.b16 %v2354
          %v2370 = vunpack.c.l.b16 %v2355
          %vm2371 = vcmask 1041409
          %v2372 = vsel %vm2371, %v2370, %v2369
          %v2373 = vpack.c.b16 %v2372, %v2372
          %v2378 = vunpack.c.l.b16 %v2356
          %v2379 = vunpack.c.l.b16 %v2357
          %v2380 = vunpack.c.l.b16 %v2358
          %v2381 = vunpack.c.l.b16 %v2359
          %v2382 = vpack.c.b16 %v2379, %v2378
          %v2383 = vpack.c.b16 %v2381, %v2380
          %v2387 = vsel %vm497, %v2373, 0
          %2389 = vmatprep.subr.bf16.mxu0 0
          %2390 = vmatpush1.bf16.msra.mxu0 0
          %2391 = vmatprep.subr.bf16.mxu0 0
          %2392 = vmatpush1.bf16.msra.mxu0 0
          %2393 = vmatprep.subr.bf16.mxu0 0
          %2394 = vmatpush1.bf16.msra.mxu0 0
          %2395 = vmatprep.subr.bf16.mxu0 0
          %2396 = vmatpush1.bf16.msra.mxu0 0
          %2397 = vmatprep.subr.bf16.mxu0 0
          %2398 = vmatpush1.bf16.msra.mxu0 0
          %2399 = vmatprep.subr.bf16.mxu0 0
          %2400 = vmatpush1.bf16.msra.mxu0 0
          %2401 = vmatprep.subr.bf16.mxu0 0
          %2402 = vmatpush1.bf16.msra.mxu0 %v2383
          %2403 = vmatprep.subr.bf16.mxu0 0
          %2404 = vmatpush1.bf16.msra.mxu0 %v2382
          %2405 = vmatprep.subr.bf16.mxu0 0
          %2406 = vmatpush2.bf16.msra.mxu0 0
          %2407 = vmatprep.subr.bf16.mxu0 0
          %2408 = vmatpush2.bf16.msra.mxu0 0
          %2409 = vmatprep.subr.bf16.mxu0 0
          %2410 = vmatpush2.bf16.msra.mxu0 0
          %2411 = vmatprep.subr.bf16.mxu0 0
          %2412 = vmatpush2.bf16.msra.mxu0 0
          %2413 = vmatprep.subr.bf16.mxu0 0
          %2414 = vmatpush2.bf16.msra.mxu0 0
          %2415 = vmatprep.subr.bf16.mxu0 0
          %2416 = vmatpush2.bf16.msra.mxu0 0
          %2417 = vmatprep.subr.bf16.mxu0 0
          %2418 = vmatpush2.bf16.msra.mxu0 0
          %2419 = vmatprep.subr.bf16.mxu0 0
          %2420 = vmatpush2.bf16.msra.mxu0 0
          %2421 = vmatprep.mubr.bf16.mxu0 0
          %2422 = vmatmul.mubr.bf16.gmra.mxu0 %v2387
          %v2423 = vpop.f32.mrf.mxu0
          %v2424 = vadd.f32 %v2365, %v2423
          %v2425 = vpop.f32.mrf.mxu0
          %v2426 = vpop.f32.mrf.mxu0
          %v2427 = vpop.f32.mrf.mxu0
          %2428 = vdwg.mxu0
          %2429 = vst [vmem:[%s440] sm:$0x3] %v2424
        $region68: #{cct_forward.3} parent=59 // pred_fallthru
          _
        %s2430 = sand.u32 %s284, 1
        %s2431 = scalar_lea.sflag [#allocation4], %s2430
        %s2432 = sand.u32 %s284, 1
        %s2433 = smul.addr %s2432, 2
        %s2434 = scalar_lea.vmem [#allocation3], %s2433
        // Predicated region
        $region69: #{cct_forward.3} parent=59 // pred_check
          %p2435 = pneg %p294
        $region70: #{cct_forward.3} parent=59 // pred_check_branch
          %2437 = sbr.rel (%p2435) target = $region72
        $region71: #{cct_forward.3} parent=59 // pred_region
          %s2439 = ssub.s32 32, 32
          %2440 = vsyncadd %s2431, %s2439
          %s2441 = smul.addr %s28, 32
          %s2442 = scalar_lea.hbm %s10, %s2441
          %s2444 = sshll.u32 %s2434, 4
          %s2445 = int_to_ptr.vmem [resolvable:$true] %s2444
          %2447 = dma.vmem_to_hbm [thread:$0]  %s2445, 32, %s2442, %s2431
        $region72: #{cct_forward.3} parent=59 // pred_fallthru
          _
      $region60: #{cct_forward.3} parent=5 // pred_fallthru
        _
      %p2448 = scmp.le.s32.totalorder 2, %s19
      // Predicated region
      $region73: #{cct_forward.3} parent=5 // pred_check
        %p2449 = pneg %p2448
      $region74: #{cct_forward.3} parent=5 // pred_check_branch
        %2451 = sbr.rel (%p2449) target = $region76
      $region75: #{cct_forward.3} parent=5 // pred_region
        %s2452 = ssub.s32 %s19, 2
        // Predicated region
        $region77: #{cct_forward.3} parent=75 // pred_check
          %p2453 = pneg %p300
        $region78: #{cct_forward.3} parent=75 // pred_check_branch
          %2455 = sbr.rel (%p2453) target = $region80
        $region79: #{cct_forward.3} parent=75 // pred_region
          %s2456 = sand.u32 %s285, 1
          %s2457 = scalar_lea.sflag [#allocation4], %s2456
          %s2458 = sand.u32 %s285, 1
          %s2459 = smul.addr %s2458, 2
          %s2460 = scalar_lea.vmem [#allocation3], %s2459
          %2461 = dma.done %s2457, 32
        $region80: #{cct_forward.3} parent=75 // pred_fallthru
          _
      $region76: #{cct_forward.3} parent=5 // pred_fallthru
        _
    $region6: #{cct_forward.3} parent=1 // loop_footer
      %s23 = sadd.s32 1, %s19
    $region7: #{cct_forward.3} parent=1 // loop_footer_branch
      %18 = sbr.rel target = $region3
    $region8: #{cct_forward.3} parent=1 // loop_exit
      _
    %2462 = vsyncpa [#allocation4], 1
    %s2463 = scalar_lea.sflag [#allocation4], 1
    %2464 = vsyncpa %s2463, 1

</llo_original>
